<compile_context>
chip_gen: v5e
topology: v5e:2x2
jax: 0.10.0
libtpu: 0.0.40
codegen_flags: <defaults>
</compile_context>

<pallas_src>
import math

import numpy as np
import jax
import jax.numpy as jnp
from jax.experimental import pallas as pl
from jax.experimental.pallas import tpu as pltpu


def make_angular_frequencies(embedding_dim: int = 32,
                             period_range=(math.tau, 10000 * math.tau),
                             progression: str = "geometric") -> np.ndarray:
    """Replicates SinusoidalEncoding.__init__ (default period-range path)."""
    assert embedding_dim > 0 and embedding_dim % 2 == 0
    half_dim = embedding_dim // 2
    min_period, max_period = period_range
    assert 0 < min_period < max_period
    if progression == "geometric":
        w = np.geomspace(math.tau / min_period, math.tau / max_period,
                         num=half_dim, endpoint=True)
    elif progression == "arithmetic":
        w = 1.0 / np.linspace(min_period / math.tau, max_period / math.tau,
                              num=half_dim, endpoint=True)
    else:
        raise ValueError(f"Unknown progression mode {progression}")
    return w  # float64 numpy array, shape [half_dim]


def _sincos_kernel(x_ref, r_ref, w_ref, b_ref, out_ref):
    """x_ref:  (tile_r, pack)      scalars to encode
       r_ref:  (3*pack, lanes)     exact {0,1} block-diagonal replication matrix (bf16)
       w_ref:  (1, lanes)          tiled angular frequencies (f32)
       b_ref:  (1, lanes)          phase bias: 0 for sin half, pi/2 for cos half (f32)
       out_ref:(tile_r, lanes)     lanes = pack * emb_dim (lane-dense, unmasked stores)."""
    xf = x_ref[...].astype(jnp.float32)
    # Exact 3-way bf16 split of x: bf16(xf) + bf16(r1) + bf16(r2) == xf to ~1 ulp.
    # (Operates on the small (tile_r, pack) block — negligible VPU cost.)
    hi = xf.astype(jnp.bfloat16).astype(jnp.float32)
    r1 = xf - hi
    mid = r1.astype(jnp.bfloat16).astype(jnp.float32)
    r2 = r1 - mid
    lhs = jnp.concatenate([xf, r1, r2], axis=-1).astype(jnp.bfloat16)  # (tile_r, 3*pack)
    # One native bf16 MXU pass replicates each scalar exactly across its
    # emb_dim lane group (products with 0/1 are exact, MXU accumulates in f32).
    rep = jnp.dot(lhs, r_ref[...], preferred_element_type=jnp.float32)
    # Frequency multiply in true f32 on the VPU + phase bias;
    # cos(z) = sin(z + pi/2): one full-width sin pass, one unmasked store.
    out_ref[...] = jnp.sin(rep * w_ref[...] + b_ref[...]).astype(out_ref.dtype)


def _cdiv(a: int, b: int) -> int:
    return -(-a // b)


def _round_up(a: int, b: int) -> int:
    return ((a + b - 1) // b) * b


def sinusoidal_encoding(x: jax.Array, w: np.ndarray,
                        *, out_dtype=None,
                        tile_rows: int = 2048,
                        lane_target: int = 512) -> jax.Array:
    """Pallas TPU implementation of SinusoidalEncoding.forward.

    x: array of arbitrary shape (*); w: numpy float64 angular frequencies
    [half_dim].  Returns (*x.shape, 2*half_dim).  Output dtype is `out_dtype`
    if given (e.g. jnp.bfloat16 to halve HBM writeback), else x.dtype if x is
    floating, else float32 (module semantics).  Phase math is always f32.
    """
    orig_shape = x.shape
    compute_dtype = x.dtype if jnp.issubdtype(x.dtype, jnp.floating) else jnp.float32
    if out_dtype is None:
        out_dtype = compute_dtype
    half_dim = int(w.shape[0])
    emb_dim = 2 * half_dim

    # Scalars packed per lane-dense output row: pack*emb_dim is a multiple of
    # 128 lanes, targeting ~512 lanes (unmasked stores; keeps MXU MACs small).
    base_pack = 128 // math.gcd(emb_dim, 128)
    pack = base_pack * max(1, lane_target // (base_pack * emb_dim))
    lanes = pack * emb_dim

    n = int(np.prod(orig_shape)) if orig_shape else 1
    rows = _cdiv(n, pack)

    # Balanced tiling: near-equal tiles (<= 7 rows of sublane padding each)
    # instead of rounding rows up to a multiple of tile_rows.  Force >= 2 grid
    # steps when possible so v7x's two TensorCores both get work.
    num_tiles = _cdiv(rows, tile_rows)
    if rows >= 16:
        num_tiles = max(num_tiles, 2)
    tile_r = _round_up(_cdiv(rows, num_tiles), 8)
    num_tiles = _cdiv(rows, tile_r)
    rows_pad = tile_r * num_tiles
    n_pad = rows_pad * pack

    x_flat = x.astype(compute_dtype).reshape(-1)
    if n_pad != n:
        # TODO(synk): mask the ragged tail inside the last tile instead of
        # padding the input + slicing the expanded output.
        x_flat = jnp.pad(x_flat, (0, n_pad - n))
    x2 = x_flat.reshape(rows_pad, pack)

    # Host-built constants, already in the packed lane layout.
    w64 = np.asarray(w, dtype=np.float64)
    w_pattern = np.concatenate([w64, w64])                            # (emb_dim,)
    bias_pattern = np.concatenate(
        [np.zeros(half_dim), np.full(half_dim, np.pi / 2)])           # (emb_dim,)
    # Exact {0,1} replication matrix, stacked 3x along K for the hi/mid/lo split.
    rep1 = np.zeros((pack, lanes), dtype=np.float32)
    for p in range(pack):
        rep1[p, p * emb_dim:(p + 1) * emb_dim] = 1.0
    r_mat = jnp.asarray(np.concatenate([rep1, rep1, rep1], axis=0),
                        dtype=jnp.bfloat16)                           # (3*pack, lanes)
    w_row = jnp.asarray(np.tile(w_pattern, pack)[None, :],
                        dtype=jnp.float32)                            # (1, lanes)
    bias = jnp.asarray(np.tile(bias_pattern, pack)[None, :],
                       dtype=jnp.float32)                             # (1, lanes)

    out = pl.pallas_call(
        _sincos_kernel,
        out_shape=jax.ShapeDtypeStruct((rows_pad, lanes), out_dtype),
        grid_spec=pltpu.PrefetchScalarGridSpec(
            num_scalar_prefetch=0,
            grid=(num_tiles,),
            in_specs=[
                pl.BlockSpec((tile_r, pack), lambda i: (i, 0)),
                pl.BlockSpec((3 * pack, lanes), lambda i: (0, 0)),   # constant: DMA'd once
                pl.BlockSpec((1, lanes), lambda i: (0, 0)),          # constant: DMA'd once
                pl.BlockSpec((1, lanes), lambda i: (0, 0)),          # constant: DMA'd once
            ],
            out_specs=pl.BlockSpec((tile_r, lanes), lambda i: (i, 0)),
        ),
        compiler_params=pltpu.CompilerParams(
            dimension_semantics=("parallel",),
            vmem_limit_bytes=32 * 1024 * 1024,
        ),
    )(x2, r_mat, w_row, bias)

    # (rows_pad, pack*emb_dim) -> (n_pad, emb_dim) is a free row-major view.
    out = out.reshape(n_pad, emb_dim)
    if n_pad != n:
        out = out[:n]
    return out.reshape(*orig_shape, emb_dim)


def sinusoidal_encoding_ref(x: jax.Array, w: np.ndarray) -> jax.Array:
    """Pure-JAX reference mirroring the PyTorch forward."""
    dtype = x.dtype if jnp.issubdtype(x.dtype, jnp.floating) else jnp.float32
    wj = jnp.asarray(w, dtype=dtype)
    half = x.astype(dtype)[..., None] * wj
    return jnp.concatenate((jnp.sin(half), jnp.cos(half)), axis=-1)


if __name__ == "__main__":
    key = jax.random.PRNGKey(0)
    # Small input consistent with "arbitrary real-valued tensor" semantics.
    x = jax.random.normal(key, (2, 4, 16, 16), dtype=jnp.float32) * 10.0

    embedding_dim = 32
    w = make_angular_frequencies(embedding_dim=embedding_dim)

    out = jax.block_until_ready(sinusoidal_encoding(x, w))
    ref = sinusoidal_encoding_ref(x, w)

    assert out.shape == (2, 4, 16, 16, embedding_dim), out.shape
    assert out.dtype == x.dtype
    # cos(z) = sin(z + pi/2) plus a few ULPs of phase error at large |x*w|
    # (max |phase| ~ 45 here) -> allow a slightly wider absolute tolerance
    # than pure element-wise f32 would need.
    np.testing.assert_allclose(np.asarray(out), np.asarray(ref),
                               rtol=1e-5, atol=3e-5)

    # bf16 writeback path (halves the dominant HBM store cost; phase math
    # stays f32 inside the kernel).
    out_bf16 = jax.block_until_ready(
        sinusoidal_encoding(x, w, out_dtype=jnp.bfloat16))
    assert out_bf16.shape == (2, 4, 16, 16, embedding_dim)
    assert out_bf16.dtype == jnp.bfloat16
    np.testing.assert_allclose(np.asarray(out_bf16.astype(jnp.float32)),
                               np.asarray(ref), rtol=0, atol=1e-2)

    print("KERNEL_OK")
</pallas_src>

<mosaic_0001>
module attributes {stable_mosaic.version = 11 : i64} {
  func.func @_sincos_kernel(%arg0: i32, %arg1: memref<64x16xf32, #tpu.memory_space<vmem>>, %arg2: memref<48x512xbf16, #tpu.memory_space<vmem>>, %arg3: memref<1x512xf32, #tpu.memory_space<vmem>>, %arg4: memref<1x512xf32, #tpu.memory_space<vmem>>, %arg5: memref<64x512xf32, #tpu.memory_space<vmem>>) attributes {dimension_semantics = [#tpu.dimension_semantics<parallel>], iteration_bounds = array<i64: 2>, scalar_prefetch = 0 : i64, scratch_operands = 0 : i64, tpu.core_type = #tpu.core_type<tc>, window_params = [{transform_indices = @transform_0, window_bounds = array<i64: 64, 16>}, {pipeline_mode = #tpu.pipeline_mode<synchronous>, transform_indices = @transform_1, window_bounds = array<i64: 48, 512>}, {pipeline_mode = #tpu.pipeline_mode<synchronous>, transform_indices = @transform_2, window_bounds = array<i64: 1, 512>}, {pipeline_mode = #tpu.pipeline_mode<synchronous>, transform_indices = @transform_3, window_bounds = array<i64: 1, 512>}, {transform_indices = @transform_4, window_bounds = array<i64: 64, 512>}]} {
    %c0 = arith.constant 0 : index
    %c0_0 = arith.constant 0 : index
    %0 = vector.load %arg1[%c0, %c0_0] : memref<64x16xf32, #tpu.memory_space<vmem>>, vector<64x16xf32>
    %1 = arith.truncf %0 : vector<64x16xf32> to vector<64x16xbf16>
    %2 = arith.extf %1 : vector<64x16xbf16> to vector<64x16xf32>
    %3 = arith.subf %0, %2 : vector<64x16xf32>
    %4 = arith.truncf %3 : vector<64x16xf32> to vector<64x16xbf16>
    %5 = arith.extf %4 : vector<64x16xbf16> to vector<64x16xf32>
    %6 = arith.subf %3, %5 : vector<64x16xf32>
    %7 = tpu.concatenate %0, %3, %6 in 1 : vector<64x16xf32>, vector<64x16xf32>, vector<64x16xf32> -> vector<64x48xf32>
    %8 = arith.truncf %7 : vector<64x48xf32> to vector<64x48xbf16>
    %c0_1 = arith.constant 0 : index
    %c0_2 = arith.constant 0 : index
    %9 = vector.load %arg2[%c0_1, %c0_2] : memref<48x512xbf16, #tpu.memory_space<vmem>>, vector<48x512xbf16>
    %cst = arith.constant dense<0.000000e+00> : vector<64x512xf32>
    %10 = tpu.matmul %8, %9, %cst {dimension_numbers = #tpu.dot_dimension_numbers<[1], [0], [0], [1], [0, 0, 1, 1], [], []>} : vector<64x48xbf16>, vector<48x512xbf16>, vector<64x512xf32> -> vector<64x512xf32>
    %c0_3 = arith.constant 0 : index
    %c0_4 = arith.constant 0 : index
    %11 = vector.load %arg3[%c0_3, %c0_4] : memref<1x512xf32, #tpu.memory_space<vmem>>, vector<1x512xf32>
    %12 = vector.broadcast %11 : vector<1x512xf32> to vector<64x512xf32>
    %13 = arith.mulf %10, %12 : vector<64x512xf32>
    %c0_5 = arith.constant 0 : index
    %c0_6 = arith.constant 0 : index
    %14 = vector.load %arg4[%c0_5, %c0_6] : memref<1x512xf32, #tpu.memory_space<vmem>>, vector<1x512xf32>
    %15 = vector.broadcast %14 : vector<1x512xf32> to vector<64x512xf32>
    %16 = arith.addf %13, %15 : vector<64x512xf32>
    %17 = math.sin %16 : vector<64x512xf32>
    %c0_7 = arith.constant 0 : index
    %c0_8 = arith.constant 0 : index
    %18 = vector.load %arg5[%c0_7, %c0_8] : memref<64x512xf32, #tpu.memory_space<vmem>>, vector<64x512xf32>
    tpu.vector_store %arg5[%c0_7, %c0_8], %17 {strides = array<i32>} : memref<64x512xf32, #tpu.memory_space<vmem>>, vector<64x512xf32>,
    return
  }
  func.func @transform_0(%arg0: i32) -> (i32, i32) {
    %c0_i32 = arith.constant 0 : i32
    %c0_i32_0 = arith.constant 0 : i32
    return %arg0, %c0_i32 : i32, i32
  }
  func.func @transform_1(%arg0: i32) -> (i32, i32) {
    %c0_i32 = arith.constant 0 : i32
    %c0_i32_0 = arith.constant 0 : i32
    %c0_i32_1 = arith.constant 0 : i32
    return %c0_i32, %c0_i32_0 : i32, i32
  }
  func.func @transform_2(%arg0: i32) -> (i32, i32) {
    %c0_i32 = arith.constant 0 : i32
    %c0_i32_0 = arith.constant 0 : i32
    %c0_i32_1 = arith.constant 0 : i32
    return %c0_i32, %c0_i32_0 : i32, i32
  }
  func.func @transform_3(%arg0: i32) -> (i32, i32) {
    %c0_i32 = arith.constant 0 : i32
    %c0_i32_0 = arith.constant 0 : i32
    %c0_i32_1 = arith.constant 0 : i32
    return %c0_i32, %c0_i32_0 : i32, i32
  }
  func.func @transform_4(%arg0: i32) -> (i32, i32) {
    %c0_i32 = arith.constant 0 : i32
    %c0_i32_0 = arith.constant 0 : i32
    return %arg0, %c0_i32 : i32, i32
  }
}

</mosaic_0001>

<llo_original>
// kernel: tpu_custom_call.1
$region0: #{tpu_custom_call.1}
  #allocation0 [shape = 'u32[]', space=smem, size = 0x4, offset = 0x4, fixed_abs, tag = 'smem constant byte address 0x4 - core index']
  #allocation1 [shape = 'u32[72,128]{1,0:T(1,128)}', space=vmem, size = 0x9000, scoped, tag = 'internal scratch']
  %s0 = inlined_call_operand.vmem [shape: f32[128,16], index: 0, kind: input, shape index: {}]
  %s1 = inlined_call_operand.vmem [shape: bf16[48,512], index: 1, kind: input, shape index: {}]
  %s2 = inlined_call_operand.vmem [shape: f32[1,512], index: 2, kind: input, shape index: {}]
  %s3 = inlined_call_operand.vmem [shape: f32[1,512], index: 3, kind: input, shape index: {}]
  %s4 = inlined_call_operand.hbm [shape: f32[128,512], index: 4, kind: output, shape index: {}]
  %s5 = sld [smem:[#allocation0]]
  $region49: #{tpu_custom_call.1} parent=0
    _
  %s7 = ssub.s32 1, %s5
  %s8 = scalar_select 0, %s7, %s5
  $region1: #{tpu_custom_call.1} parent=0
    #allocation2 [shape = 'u8[262144]{0}', space=vmem, size = 0x40000, scoped, tag = 'output window, operand 0']
    #allocation3 [shape = 's32[2]{0}', space=sflag, size = 0x8, scoped, tag = 'scoped memory for tpu_custom_call.1']
    %9 = vsyncpa [#allocation3], 0
    %s10 = scalar_lea.sflag [#allocation3], 1
    %11 = vsyncpa %s10, 0
    loop: start=0, step=1, limit=4
    $region2: #{tpu_custom_call.1} parent=1 // loop_pre_header
      _
    $region3: #{tpu_custom_call.1} parent=1 // loop_header
      %s13 = sphi 0, %s17
      %p14 = scmp.ge.s32.totalorder %s13, 4
      %s23 = sphi 0, %s25
      %s26 = sphi 0, %s23
      %s27 = sphi 0, %s26
      %s43 = sphi 0, %s27
      %s47 = sphi 0, %s47
      %s49 = sphi 0, %s47
      %s50 = sphi 0, %s49
      %s64 = sphi 0, %s50
      %s68 = sphi 0, %s68
      %s70 = sphi 0, %s68
      %s71 = sphi 0, %s70
      %s85 = sphi 0, %s71
      %s89 = sphi 0, %s89
      %s91 = sphi 0, %s89
      %s92 = sphi 0, %s91
      %s106 = sphi 0, %s92
      %s112 = sphi 0, %s114
      %s115 = sphi 0, %s112
      %s116 = sphi 0, %s115
      %s132 = sphi 0, %s116
    $region4: #{tpu_custom_call.1} parent=1 // loop_header_branch
      %16 = sbr.rel (%p14) target = $region8
    $region5: #{tpu_custom_call.1} parent=1 // loop_body
      %s18 = ssub.s32 %s13, 1
      %s19 = ssub.s32 %s13, 2
      %s20 = sadd.s32 %s13, 1
      %s21 = ssub.s32 %s13, %s20
      %p22 = scmp.eq.s32.totalorder %s21, 0
      %s24 = sadd.s32 %s23, 1
      %s25 = scalar_select %p22, %s23, %s24
      %p28 = pneg %p22
      %p29 = scmp.eq.s32.totalorder %s13, 1
      %p30 = por %p28, %p29
      %p31 = scmp.ne.s32.totalorder %s23, %s26
      %p32 = scmp.eq.s32.totalorder %s13, 0
      %p33 = por %p31, %p32
      %p34 = scmp.ne.s32.totalorder %s23, %s26
      %p35 = scmp.eq.s32.totalorder %s18, 1
      %p36 = por %p34, %p35
      %p37 = scmp.ne.s32.totalorder %s26, %s27
      %p38 = scmp.eq.s32.totalorder %s18, 0
      %p39 = por %p37, %p38
      %p40 = scmp.ne.s32.totalorder %s26, %s27
      %p41 = scmp.eq.s32.totalorder %s19, 1
      %p42 = por %p40, %p41
      %p44 = scmp.ne.s32.totalorder %s27, %s43
      %p45 = scmp.eq.s32.totalorder %s19, 0
      %p46 = por %p44, %p45
      %s48 = sadd.s32 %s47, 1
      %p51 = scmp.eq.s32.totalorder %s13, 1
      %p52 = scmp.ne.s32.totalorder %s47, %s49
      %p53 = scmp.eq.s32.totalorder %s13, 0
      %p54 = por %p52, %p53
      %p55 = scmp.ne.s32.totalorder %s47, %s49
      %p56 = scmp.eq.s32.totalorder %s18, 1
      %p57 = por %p55, %p56
      %p58 = scmp.ne.s32.totalorder %s49, %s50
      %p59 = scmp.eq.s32.totalorder %s18, 0
      %p60 = por %p58, %p59
      %p61 = scmp.ne.s32.totalorder %s49, %s50
      %p62 = scmp.eq.s32.totalorder %s19, 1
      %p63 = por %p61, %p62
      %p65 = scmp.ne.s32.totalorder %s50, %s64
      %p66 = scmp.eq.s32.totalorder %s19, 0
      %p67 = por %p65, %p66
      %s69 = sadd.s32 %s68, 1
      %p72 = scmp.eq.s32.totalorder %s13, 1
      %p73 = scmp.ne.s32.totalorder %s68, %s70
      %p74 = scmp.eq.s32.totalorder %s13, 0
      %p75 = por %p73, %p74
      %p76 = scmp.ne.s32.totalorder %s68, %s70
      %p77 = scmp.eq.s32.totalorder %s18, 1
      %p78 = por %p76, %p77
      %p79 = scmp.ne.s32.totalorder %s70, %s71
      %p80 = scmp.eq.s32.totalorder %s18, 0
      %p81 = por %p79, %p80
      %p82 = scmp.ne.s32.totalorder %s70, %s71
      %p83 = scmp.eq.s32.totalorder %s19, 1
      %p84 = por %p82, %p83
      %p86 = scmp.ne.s32.totalorder %s71, %s85
      %p87 = scmp.eq.s32.totalorder %s19, 0
      %p88 = por %p86, %p87
      %s90 = sadd.s32 %s89, 1
      %p93 = scmp.eq.s32.totalorder %s13, 1
      %p94 = scmp.ne.s32.totalorder %s89, %s91
      %p95 = scmp.eq.s32.totalorder %s13, 0
      %p96 = por %p94, %p95
      %p97 = scmp.ne.s32.totalorder %s89, %s91
      %p98 = scmp.eq.s32.totalorder %s18, 1
      %p99 = por %p97, %p98
      %p100 = scmp.ne.s32.totalorder %s91, %s92
      %p101 = scmp.eq.s32.totalorder %s18, 0
      %p102 = por %p100, %p101
      %p103 = scmp.ne.s32.totalorder %s91, %s92
      %p104 = scmp.eq.s32.totalorder %s19, 1
      %p105 = por %p103, %p104
      %p107 = scmp.ne.s32.totalorder %s92, %s106
      %p108 = scmp.eq.s32.totalorder %s19, 0
      %p109 = por %p107, %p108
      %s110 = ssub.s32 %s13, %s20
      %p111 = scmp.eq.s32.totalorder %s110, 0
      %s113 = sadd.s32 %s112, 1
      %s114 = scalar_select %p111, %s112, %s113
      %p117 = pneg %p111
      %p118 = scmp.eq.s32.totalorder %s13, 1
      %p119 = por %p117, %p118
      %p120 = scmp.ne.s32.totalorder %s112, %s115
      %p121 = scmp.eq.s32.totalorder %s13, 0
      %p122 = por %p120, %p121
      %p123 = scmp.ne.s32.totalorder %s112, %s115
      %p124 = scmp.eq.s32.totalorder %s18, 1
      %p125 = por %p123, %p124
      %p126 = scmp.ne.s32.totalorder %s115, %s116
      %p127 = scmp.eq.s32.totalorder %s18, 0
      %p128 = por %p126, %p127
      %p129 = scmp.ne.s32.totalorder %s115, %s116
      %p130 = scmp.eq.s32.totalorder %s19, 1
      %p131 = por %p129, %p130
      %p133 = scmp.ne.s32.totalorder %s116, %s132
      %p134 = scmp.eq.s32.totalorder %s19, 0
      %p135 = por %p133, %p134
      %p136 = scmp.le.s32.totalorder 1, %s13
      %p137 = scmp.lt.s32.totalorder %s13, 3
      %p138 = pnand %p136, %p137
      %p139 = pneg %p138
      // Predicated region
      $region9: #{tpu_custom_call.1} parent=5 // pred_check
        _
      $region10: #{tpu_custom_call.1} parent=5 // pred_check_branch
        %141 = sbr.rel (%p138) target = $region12
      $region11: #{tpu_custom_call.1} parent=5 // pred_region
        %s142 = ssub.s32 %s13, 1
        // Predicated region
        $region13: #{tpu_custom_call.1} parent=11 // pred_check
          %p143 = pneg %p60
        $region14: #{tpu_custom_call.1} parent=11 // pred_check_branch
          %145 = sbr.rel (%p143) target = $region16
        $region15: #{tpu_custom_call.1} parent=11 // pred_region
          _
        $region16: #{tpu_custom_call.1} parent=11 // pred_fallthru
          _
        // Predicated region
        $region17: #{tpu_custom_call.1} parent=11 // pred_check
          %p146 = pneg %p81
        $region18: #{tpu_custom_call.1} parent=11 // pred_check_branch
          %148 = sbr.rel (%p146) target = $region20
        $region19: #{tpu_custom_call.1} parent=11 // pred_region
          _
        $region20: #{tpu_custom_call.1} parent=11 // pred_fallthru
          _
        // Predicated region
        $region21: #{tpu_custom_call.1} parent=11 // pred_check
          %p149 = pneg %p102
        $region22: #{tpu_custom_call.1} parent=11 // pred_check_branch
          %151 = sbr.rel (%p149) target = $region24
        $region23: #{tpu_custom_call.1} parent=11 // pred_region
          _
        $region24: #{tpu_custom_call.1} parent=11 // pred_fallthru
          _
      $region12: #{tpu_custom_call.1} parent=5 // pred_fallthru
        _
      %p152 = scmp.lt.s32.totalorder %s13, 2
      // Predicated region
      $region25: #{tpu_custom_call.1} parent=5 // pred_check
        %p153 = pneg %p152
      $region26: #{tpu_custom_call.1} parent=5 // pred_check_branch
        %155 = sbr.rel (%p153) target = $region28
      $region27: #{tpu_custom_call.1} parent=5 // pred_region
        // Predicated region
        $region29: #{tpu_custom_call.1} parent=27 // pred_check
          %p156 = pneg %p33
        $region30: #{tpu_custom_call.1} parent=27 // pred_check_branch
          %158 = sbr.rel (%p156) target = $region32
        $region31: #{tpu_custom_call.1} parent=27 // pred_region
          %s159 = smul.u32 8, %s13
          %p160 = scmp.lt.s32.totalorder %s159, 15
          %s161 = scalar_select %p160, %s159, 15
          %s162 = smul.addr %s161, 8
          %s163 = scalar_lea.vmem %s0, %s162
          %s164 = smul.u32 8, %s13
        $region32: #{tpu_custom_call.1} parent=27 // pred_fallthru
          _
      $region28: #{tpu_custom_call.1} parent=5 // pred_fallthru
        _
      %p165 = scmp.le.s32.totalorder 1, %s13
      %p166 = scmp.lt.s32.totalorder %s13, 3
      %p167 = pnand %p165, %p166
      %p168 = pneg %p167
      // Predicated region
      $region33: #{tpu_custom_call.1} parent=5 // pred_check
        _
      $region34: #{tpu_custom_call.1} parent=5 // pred_check_branch
        %170 = sbr.rel (%p167) target = $region36
      $region35: #{tpu_custom_call.1} parent=5 // pred_region
        %s171 = ssub.s32 %s13, 1
        %s172 = smul.u32 8, %s18
        %p173 = scmp.lt.s32.totalorder %s172, 15
        %s174 = scalar_select %p173, %s172, 15
        %s175 = smul.addr %s174, 8
        %s176 = scalar_lea.vmem %s0, %s175
        %p177 = pneg %p39
        %p178 = pneg %p36
        %p179 = pneg %p60
        %p180 = pneg %p57
        %p181 = pneg %p81
        %p182 = pneg %p78
        %p183 = pneg %p102
        %p184 = pneg %p99
        %p185 = pneg %p128
        %p186 = pneg %p125
        %s187 = sand.u32 %s115, 1
        %s188 = scalar_lea.sflag [#allocation3], %s187
        %s189 = sand.u32 %s115, 1
        %s190 = smul.addr %s189, 256
        %s191 = scalar_lea.vmem [#allocation2], %s190
        %s192 = smul.u32 8, %s18
        %p193 = scmp.lt.s32.totalorder %s192, 15
        %s194 = scalar_select %p193, %s192, 15
        %s195 = smul.addr %s194, 8
        %s196 = scalar_lea.vmem %s0, %s195
        %s197 = smul.u32 8, %s18
        %s198 = smul.u32 8, %s18
        %v200 = vld [vmem:[%s196] sm:$0xff]
        %v201 = vld [vmem:[%s196 + $0x8] sm:$0xff]
        %v202 = vld [vmem:[%s196 + $0x10] sm:$0xff]
        %v203 = vld [vmem:[%s196 + $0x18] sm:$0xff]
        %v204 = vld [vmem:[%s196 + $0x20] sm:$0xff]
        %v205 = vld [vmem:[%s196 + $0x28] sm:$0xff]
        %v206 = vld [vmem:[%s196 + $0x30] sm:$0xff]
        %v207 = vld [vmem:[%s196 + $0x38] sm:$0xff]
        %v208 = vpack.c.bf16 %v200, %v200
        %v209 = vpack.c.bf16 %v201, %v201
        %v210 = vpack.c.bf16 %v202, %v202
        %v211 = vpack.c.bf16 %v203, %v203
        %v212 = vpack.c.bf16 %v204, %v204
        %v213 = vpack.c.bf16 %v205, %v205
        %v214 = vpack.c.bf16 %v206, %v206
        %v215 = vpack.c.bf16 %v207, %v207
        %v216 = vunpack.c.l.bf16 %v208
        %v217 = vunpack.c.l.bf16 %v209
        %v218 = vunpack.c.l.bf16 %v210
        %v219 = vunpack.c.l.bf16 %v211
        %v220 = vunpack.c.l.bf16 %v212
        %v221 = vunpack.c.l.bf16 %v213
        %v222 = vunpack.c.l.bf16 %v214
        %v223 = vunpack.c.l.bf16 %v215
        %v224 = vsub.f32 %v200, %v216
        %v225 = vsub.f32 %v201, %v217
        %v226 = vsub.f32 %v202, %v218
        %v227 = vsub.f32 %v203, %v219
        %v228 = vsub.f32 %v204, %v220
        %v229 = vsub.f32 %v205, %v221
        %v230 = vsub.f32 %v206, %v222
        %v231 = vsub.f32 %v207, %v223
        %v232 = vpack.c.bf16 %v224, %v224
        %v233 = vpack.c.bf16 %v225, %v225
        %v234 = vpack.c.bf16 %v226, %v226
        %v235 = vpack.c.bf16 %v227, %v227
        %v236 = vpack.c.bf16 %v228, %v228
        %v237 = vpack.c.bf16 %v229, %v229
        %v238 = vpack.c.bf16 %v230, %v230
        %v239 = vpack.c.bf16 %v231, %v231
        %v240 = vunpack.c.l.bf16 %v232
        %v241 = vunpack.c.l.bf16 %v233
        %v242 = vunpack.c.l.bf16 %v234
        %v243 = vunpack.c.l.bf16 %v235
        %v244 = vunpack.c.l.bf16 %v236
        %v245 = vunpack.c.l.bf16 %v237
        %v246 = vunpack.c.l.bf16 %v238
        %v247 = vunpack.c.l.bf16 %v239
        %v248 = vsub.f32 %v224, %v240
        %v249 = vsub.f32 %v225, %v241
        %v250 = vsub.f32 %v226, %v242
        %v251 = vsub.f32 %v227, %v243
        %v252 = vsub.f32 %v228, %v244
        %v253 = vsub.f32 %v229, %v245
        %v254 = vsub.f32 %v230, %v246
        %v255 = vsub.f32 %v231, %v247
        %264 = vrot.lane.b32.xlu0 %v224, 16
        %v265 = vpop.permute.xlu0 %264
        %266 = vrot.lane.b32.xlu0 %v225, 16
        %v267 = vpop.permute.xlu0 %266
        %268 = vrot.lane.b32.xlu0 %v226, 16
        %v269 = vpop.permute.xlu0 %268
        %270 = vrot.lane.b32.xlu0 %v227, 16
        %v271 = vpop.permute.xlu0 %270
        %272 = vrot.lane.b32.xlu0 %v228, 16
        %v273 = vpop.permute.xlu0 %272
        %274 = vrot.lane.b32.xlu0 %v229, 16
        %v275 = vpop.permute.xlu0 %274
        %276 = vrot.lane.b32.xlu0 %v230, 16
        %v277 = vpop.permute.xlu0 %276
        %278 = vrot.lane.b32.xlu0 %v231, 16
        %v279 = vpop.permute.xlu0 %278
        %296 = vrot.lane.b32.xlu0 %v248, 32
        %v297 = vpop.permute.xlu0 %296
        %298 = vrot.lane.b32.xlu0 %v249, 32
        %v299 = vpop.permute.xlu0 %298
        %300 = vrot.lane.b32.xlu0 %v250, 32
        %v301 = vpop.permute.xlu0 %300
        %302 = vrot.lane.b32.xlu0 %v251, 32
        %v303 = vpop.permute.xlu0 %302
        %304 = vrot.lane.b32.xlu0 %v252, 32
        %v305 = vpop.permute.xlu0 %304
        %306 = vrot.lane.b32.xlu0 %v253, 32
        %v307 = vpop.permute.xlu0 %306
        %308 = vrot.lane.b32.xlu0 %v254, 32
        %v309 = vpop.permute.xlu0 %308
        %310 = vrot.lane.b32.xlu0 %v255, 32
        %v311 = vpop.permute.xlu0 %310
        %vm320 = vcmask 130048
        %v321 = vsel %vm320, %v200, %v265
        %v322 = vsel %vm320, %v201, %v267
        %v323 = vsel %vm320, %v202, %v269
        %v324 = vsel %vm320, %v203, %v271
        %v325 = vsel %vm320, %v204, %v273
        %v326 = vsel %vm320, %v205, %v275
        %v327 = vsel %vm320, %v206, %v277
        %v328 = vsel %vm320, %v207, %v279
        %vm329 = vcmask 261120
        %v330 = vsel %vm329, %v321, %v297
        %v331 = vsel %vm329, %v322, %v299
        %v332 = vsel %vm329, %v323, %v301
        %v333 = vsel %vm329, %v324, %v303
        %v334 = vsel %vm329, %v325, %v305
        %v335 = vsel %vm329, %v326, %v307
        %v336 = vsel %vm329, %v327, %v309
        %v337 = vsel %vm329, %v328, %v311
        %v338 = vpack.c.bf16 %v331, %v330
        %v339 = vpack.c.bf16 %v333, %v332
        %v340 = vpack.c.bf16 %v335, %v334
        %v341 = vpack.c.bf16 %v337, %v336
        %v342 = vld [vmem:[%s1] sm:$0xff]
        %v343 = vld [vmem:[%s1 + $0x8] sm:$0xff]
        %v344 = vld [vmem:[%s1 + $0x10] sm:$0xff]
        %v345 = vld [vmem:[%s1 + $0x18] sm:$0xff]
        %v346 = vld [vmem:[%s1 + $0x20] sm:$0xff]
        %v347 = vld [vmem:[%s1 + $0x28] sm:$0xff]
        %v348 = vld [vmem:[%s1 + $0x30] sm:$0xff]
        %v349 = vld [vmem:[%s1 + $0x38] sm:$0xff]
        %v350 = vld [vmem:[%s1 + $0x40] sm:$0xff]
        %v351 = vld [vmem:[%s1 + $0x48] sm:$0xff]
        %v352 = vld [vmem:[%s1 + $0x50] sm:$0xff]
        %v353 = vld [vmem:[%s1 + $0x58] sm:$0xff]
        %v366 = vunpack.c.l.b16 %v342
        %v367 = vunpack.c.h.b16 %v342
        %v368 = vunpack.c.l.b16 %v343
        %v369 = vunpack.c.h.b16 %v343
        %v370 = vunpack.c.l.b16 %v344
        %v371 = vunpack.c.h.b16 %v344
        %v372 = vunpack.c.l.b16 %v345
        %v373 = vunpack.c.h.b16 %v345
        %v374 = vunpack.c.l.b16 %v346
        %v375 = vunpack.c.h.b16 %v346
        %v376 = vunpack.c.l.b16 %v347
        %v377 = vunpack.c.h.b16 %v347
        %v378 = vunpack.c.l.b16 %v348
        %v379 = vunpack.c.h.b16 %v348
        %v380 = vunpack.c.l.b16 %v349
        %v381 = vunpack.c.h.b16 %v349
        %v382 = vunpack.c.l.b16 %v350
        %v383 = vunpack.c.h.b16 %v350
        %v384 = vunpack.c.l.b16 %v351
        %v385 = vunpack.c.h.b16 %v351
        %v386 = vunpack.c.l.b16 %v352
        %v387 = vunpack.c.h.b16 %v352
        %v388 = vunpack.c.l.b16 %v353
        %v389 = vunpack.c.h.b16 %v353
        %v390 = vpack.c.b16 %v370, %v366
        %v391 = vpack.c.b16 %v371, %v367
        %v392 = vpack.c.b16 %v372, %v368
        %v393 = vpack.c.b16 %v373, %v369
        %v394 = vpack.c.b16 %v378, %v374
        %v395 = vpack.c.b16 %v379, %v375
        %v396 = vpack.c.b16 %v380, %v376
        %v397 = vpack.c.b16 %v381, %v377
        %v398 = vpack.c.b16 %v386, %v382
        %v399 = vpack.c.b16 %v387, %v383
        %v400 = vpack.c.b16 %v388, %v384
        %v401 = vpack.c.b16 %v389, %v385
        %vm414 = vcmask 392192
        %v416 = vsel %vm414, %v338, 0
        %v419 = vsel %vm414, %v339, 0
        %v422 = vsel %vm414, %v340, 0
        %v425 = vsel %vm414, %v341, 0
        %427 = vmatpush.bf16.msra.mxu0 0
        %428 = vmatpush.bf16.msra.mxu0 0
        %429 = vmatpush.bf16.msra.mxu0 0
        %430 = vmatpush.bf16.msra.mxu0 0
        %431 = vmatpush.bf16.msra.mxu0 0
        %432 = vmatpush.bf16.msra.mxu0 %v398
        %433 = vmatpush.bf16.msra.mxu0 %v394
        %434 = vmatpush.bf16.msra.mxu0 %v390
        %435 = vmatmul.bf16.gmra.mxu0 %v416
        %v436 = vpop.f32.mrf.mxu0
        %v437 = vadd.f32 0.0, %v436
        %v438 = vpop.f32.mrf.mxu0
        %v439 = vadd.f32 0.0, %v438
        %440 = vmatmul.bf16.gmra.mxu0 %v419
        %v441 = vpop.f32.mrf.mxu0
        %v442 = vadd.f32 0.0, %v441
        %v443 = vpop.f32.mrf.mxu0
        %v444 = vadd.f32 0.0, %v443
        %445 = vmatmul.bf16.gmra.mxu0 %v422
        %v446 = vpop.f32.mrf.mxu0
        %v447 = vadd.f32 0.0, %v446
        %v448 = vpop.f32.mrf.mxu0
        %v449 = vadd.f32 0.0, %v448
        %450 = vmatmul.bf16.gmra.mxu0 %v425
        %v451 = vpop.f32.mrf.mxu0
        %v452 = vadd.f32 0.0, %v451
        %v453 = vpop.f32.mrf.mxu0
        %v454 = vadd.f32 0.0, %v453
        %455 = vdwg.mxu0
        %456 = vmatpush.bf16.msra.mxu0 0
        %457 = vmatpush.bf16.msra.mxu0 0
        %458 = vmatpush.bf16.msra.mxu0 0
        %459 = vmatpush.bf16.msra.mxu0 0
        %460 = vmatpush.bf16.msra.mxu0 0
        %461 = vmatpush.bf16.msra.mxu0 %v399
        %462 = vmatpush.bf16.msra.mxu0 %v395
        %463 = vmatpush.bf16.msra.mxu0 %v391
        %464 = vmatmul.bf16.gmra.mxu0 %v416
        %v465 = vpop.f32.mrf.mxu0
        %v466 = vadd.f32 0.0, %v465
        %v467 = vpop.f32.mrf.mxu0
        %v468 = vadd.f32 0.0, %v467
        %469 = vmatmul.bf16.gmra.mxu0 %v419
        %v470 = vpop.f32.mrf.mxu0
        %v471 = vadd.f32 0.0, %v470
        %v472 = vpop.f32.mrf.mxu0
        %v473 = vadd.f32 0.0, %v472
        %474 = vmatmul.bf16.gmra.mxu0 %v422
        %v475 = vpop.f32.mrf.mxu0
        %v476 = vadd.f32 0.0, %v475
        %v477 = vpop.f32.mrf.mxu0
        %v478 = vadd.f32 0.0, %v477
        %479 = vmatmul.bf16.gmra.mxu0 %v425
        %v480 = vpop.f32.mrf.mxu0
        %v481 = vadd.f32 0.0, %v480
        %v482 = vpop.f32.mrf.mxu0
        %v483 = vadd.f32 0.0, %v482
        %484 = vdwg.mxu0
        %485 = vmatpush.bf16.msra.mxu0 0
        %486 = vmatpush.bf16.msra.mxu0 0
        %487 = vmatpush.bf16.msra.mxu0 0
        %488 = vmatpush.bf16.msra.mxu0 0
        %489 = vmatpush.bf16.msra.mxu0 0
        %490 = vmatpush.bf16.msra.mxu0 %v400
        %491 = vmatpush.bf16.msra.mxu0 %v396
        %492 = vmatpush.bf16.msra.mxu0 %v392
        %493 = vmatmul.bf16.gmra.mxu0 %v416
        %v494 = vpop.f32.mrf.mxu0
        %v495 = vadd.f32 0.0, %v494
        %v496 = vpop.f32.mrf.mxu0
        %v497 = vadd.f32 0.0, %v496
        %498 = vmatmul.bf16.gmra.mxu0 %v419
        %v499 = vpop.f32.mrf.mxu0
        %v500 = vadd.f32 0.0, %v499
        %v501 = vpop.f32.mrf.mxu0
        %v502 = vadd.f32 0.0, %v501
        %503 = vmatmul.bf16.gmra.mxu0 %v422
        %v504 = vpop.f32.mrf.mxu0
        %v505 = vadd.f32 0.0, %v504
        %v506 = vpop.f32.mrf.mxu0
        %v507 = vadd.f32 0.0, %v506
        %508 = vmatmul.bf16.gmra.mxu0 %v425
        %v509 = vpop.f32.mrf.mxu0
        %v510 = vadd.f32 0.0, %v509
        %v511 = vpop.f32.mrf.mxu0
        %v512 = vadd.f32 0.0, %v511
        %513 = vdwg.mxu0
        %514 = vmatpush.bf16.msra.mxu0 0
        %515 = vmatpush.bf16.msra.mxu0 0
        %516 = vmatpush.bf16.msra.mxu0 0
        %517 = vmatpush.bf16.msra.mxu0 0
        %518 = vmatpush.bf16.msra.mxu0 0
        %519 = vmatpush.bf16.msra.mxu0 %v401
        %520 = vmatpush.bf16.msra.mxu0 %v397
        %521 = vmatpush.bf16.msra.mxu0 %v393
        %522 = vmatmul.bf16.gmra.mxu0 %v416
        %v523 = vpop.f32.mrf.mxu0
        %v524 = vadd.f32 0.0, %v523
        %v525 = vpop.f32.mrf.mxu0
        %v526 = vadd.f32 0.0, %v525
        %527 = vmatmul.bf16.gmra.mxu0 %v419
        %v528 = vpop.f32.mrf.mxu0
        %v529 = vadd.f32 0.0, %v528
        %v530 = vpop.f32.mrf.mxu0
        %v531 = vadd.f32 0.0, %v530
        %532 = vmatmul.bf16.gmra.mxu0 %v422
        %v533 = vpop.f32.mrf.mxu0
        %v534 = vadd.f32 0.0, %v533
        %v535 = vpop.f32.mrf.mxu0
        %v536 = vadd.f32 0.0, %v535
        %537 = vmatmul.bf16.gmra.mxu0 %v425
        %v538 = vpop.f32.mrf.mxu0
        %v539 = vadd.f32 0.0, %v538
        %v540 = vpop.f32.mrf.mxu0
        %v541 = vadd.f32 0.0, %v540
        %542 = vdwg.mxu0
        %v543 = vld [vmem:[%s2] sm:$0xf]
        %v545 = vperm.slane %v543, 0
        %v546 = vperm.slane %v543, 1
        %v547 = vperm.slane %v543, 2
        %v548 = vperm.slane %v543, 3
        %v553 = vmul.f32 %v437, %v545
        %v554 = vmul.f32 %v466, %v546
        %v555 = vmul.f32 %v495, %v547
        %v556 = vmul.f32 %v524, %v548
        %v557 = vmul.f32 %v439, %v545
        %v558 = vmul.f32 %v468, %v546
        %v559 = vmul.f32 %v497, %v547
        %v560 = vmul.f32 %v526, %v548
        %v561 = vmul.f32 %v442, %v545
        %v562 = vmul.f32 %v471, %v546
        %v563 = vmul.f32 %v500, %v547
        %v564 = vmul.f32 %v529, %v548
        %v565 = vmul.f32 %v444, %v545
        %v566 = vmul.f32 %v473, %v546
        %v567 = vmul.f32 %v502, %v547
        %v568 = vmul.f32 %v531, %v548
        %v569 = vmul.f32 %v447, %v545
        %v570 = vmul.f32 %v476, %v546
        %v571 = vmul.f32 %v505, %v547
        %v572 = vmul.f32 %v534, %v548
        %v573 = vmul.f32 %v449, %v545
        %v574 = vmul.f32 %v478, %v546
        %v575 = vmul.f32 %v507, %v547
        %v576 = vmul.f32 %v536, %v548
        %v577 = vmul.f32 %v452, %v545
        %v578 = vmul.f32 %v481, %v546
        %v579 = vmul.f32 %v510, %v547
        %v580 = vmul.f32 %v539, %v548
        %v581 = vmul.f32 %v454, %v545
        %v582 = vmul.f32 %v483, %v546
        %v583 = vmul.f32 %v512, %v547
        %v584 = vmul.f32 %v541, %v548
        %v585 = vld [vmem:[%s3] sm:$0xf]
        %v587 = vperm.slane %v585, 0
        %v588 = vperm.slane %v585, 1
        %v589 = vperm.slane %v585, 2
        %v590 = vperm.slane %v585, 3
        %v595 = vadd.f32 %v553, %v587
        %v596 = vadd.f32 %v554, %v588
        %v597 = vadd.f32 %v555, %v589
        %v598 = vadd.f32 %v556, %v590
        %v599 = vadd.f32 %v557, %v587
        %v600 = vadd.f32 %v558, %v588
        %v601 = vadd.f32 %v559, %v589
        %v602 = vadd.f32 %v560, %v590
        %v603 = vadd.f32 %v561, %v587
        %v604 = vadd.f32 %v562, %v588
        %v605 = vadd.f32 %v563, %v589
        %v606 = vadd.f32 %v564, %v590
        %v607 = vadd.f32 %v565, %v587
        %v608 = vadd.f32 %v566, %v588
        %v609 = vadd.f32 %v567, %v589
        %v610 = vadd.f32 %v568, %v590
        %v611 = vadd.f32 %v569, %v587
        %v612 = vadd.f32 %v570, %v588
        %v613 = vadd.f32 %v571, %v589
        %v614 = vadd.f32 %v572, %v590
        %v615 = vadd.f32 %v573, %v587
        %v616 = vadd.f32 %v574, %v588
        %v617 = vadd.f32 %v575, %v589
        %v618 = vadd.f32 %v576, %v590
        %v619 = vadd.f32 %v577, %v587
        %v620 = vadd.f32 %v578, %v588
        %v621 = vadd.f32 %v579, %v589
        %v622 = vadd.f32 %v580, %v590
        %v623 = vadd.f32 %v581, %v587
        %v624 = vadd.f32 %v582, %v588
        %v625 = vadd.f32 %v583, %v589
        %v626 = vadd.f32 %v584, %v590
        %v627 = vand.u32 2147483647, %v595
        %vm628 = vcmp.le.f32.partialorder %v627, 0.7853982
        %vm629 = vcmp.lt.s32.totalorder %v595, 0
        %v630 = vand.u32 %v595, 2139095040
        %v631 = vshrl.u32 %v630, 23
        %v632 = vsub.s32 %v631, 127
        %v633 = vand.u32 2147483647, %v595
        %v634 = vand.u32 %v633, 8388607
        %v635 = vor.u32 %v634, 8388608
        %v636 = vsub.s32 0, %v635
        %v637 = vadd.s32 %v632, 1
        %vm638 = vcmp.gt.s32.totalorder %v637, 0
        %v639 = vsel %vm638, %v637, 0
        %v640 = vshrl.u32 %v639, 5
        %v641 = vand.u32 %v639, 31
        %v642 = vsub.s32 32, %v641
        %v643 = vshrl.u32 683565275, %v642
        %v644 = vshll.u32 683565275, %v641
        %v645 = vshrl.u32 2475754826, %v642
        %v646 = vor.u32 %v644, %v645
        %v647 = vshll.u32 2475754826, %v641
        %v648 = vshrl.u32 2131351028, %v642
        %v649 = vor.u32 %v647, %v648
        %v650 = vshll.u32 2131351028, %v641
        %v651 = vshrl.u32 2102212464, %v642
        %v652 = vor.u32 %v650, %v651
        %v653 = vshll.u32 2102212464, %v641
        %v654 = vshrl.u32 920167782, %v642
        %v655 = vor.u32 %v653, %v654
        %v656 = vshll.u32 920167782, %v641
        %v657 = vshrl.u32 1326507024, %v642
        %v658 = vor.u32 %v656, %v657
        %vm659 = vcmp.lt.s32.totalorder %v640, 1
        %vm660 = vcmp.lt.s32.totalorder %v640, 2
        %vm661 = vcmp.lt.s32.totalorder %v640, 3
        %vm662 = vcmp.lt.s32.totalorder %v640, 4
        %v663 = vsel %vm659, %v643, %v646
        %v664 = vsel %vm662, %v652, 2102212464
        %v665 = vsel %vm661, %v649, %v664
        %v666 = vsel %vm660, %v663, %v665
        %v667 = vsel %vm659, %v646, %v649
        %v668 = vsel %vm662, %v655, 920167782
        %v669 = vsel %vm661, %v652, %v668
        %v670 = vsel %vm660, %v667, %v669
        %v671 = vsel %vm659, %v649, %v652
        %v672 = vsel %vm662, %v658, 1326507024
        %v673 = vsel %vm661, %v655, %v672
        %v674 = vsel %vm660, %v671, %v673
        %v675 = vshll.u32 %v635, 8
        %v676 = vand.u32 %v675, 65535
        %v677 = vshrl.u32 %v675, 16
        %v678 = vand.u32 %v674, 65535
        %v679 = vshrl.u32 %v674, 16
        %v680 = vmul.u32 %v676, %v678
        %v681 = vmul.u32 %v676, %v679
        %v682 = vmul.u32 %v677, %v678
        %v683 = vmul.u32 %v677, %v679
        %v684 = vshll.u32 %v681, 16
        %v685 = vshrl.u32 %v681, 16
        %v686 = vshll.u32 %v682, 16
        %v687 = vshrl.u32 %v682, 16
        %vm688 = vc.u32 %v680, %v684
        %v689 = vsel %vm688, 1, 0
        %v690 = vadd.s32 %v680, %v684
        %v691 = vadd.s32 %v683, %v689
        %vm692 = vc.u32 %v690, %v686
        %v693 = vsel %vm692, 1, 0
        %v694 = vadd.s32 %v690, %v686
        %v695 = vadd.s32 %v691, %v693
        %v696 = vadd.s32 %v695, %v685
        %v697 = vadd.s32 %v696, %v687
        %v698 = vand.u32 %v675, 65535
        %v699 = vshrl.u32 %v675, 16
        %v700 = vand.u32 %v670, 65535
        %v701 = vshrl.u32 %v670, 16
        %v702 = vmul.u32 %v698, %v700
        %v703 = vmul.u32 %v698, %v701
        %v704 = vmul.u32 %v699, %v700
        %v705 = vmul.u32 %v699, %v701
        %v706 = vshll.u32 %v703, 16
        %v707 = vshrl.u32 %v703, 16
        %v708 = vshll.u32 %v704, 16
        %v709 = vshrl.u32 %v704, 16
        %vm710 = vc.u32 %v702, %v706
        %v711 = vsel %vm710, 1, 0
        %v712 = vadd.s32 %v702, %v706
        %v713 = vadd.s32 %v705, %v711
        %vm714 = vc.u32 %v712, %v708
        %v715 = vsel %vm714, 1, 0
        %v716 = vadd.s32 %v712, %v708
        %v717 = vadd.s32 %v713, %v715
        %v718 = vadd.s32 %v717, %v707
        %v719 = vadd.s32 %v718, %v709
        %v720 = vmul.u32 %v675, %v666
        %v721 = vadd.s32 %v697, %v716
        %vm722 = vc.u32 %v697, %v716
        %v723 = vadd.s32 %v719, 1
        %v724 = vsel %vm722, %v723, %v719
        %v725 = vadd.s32 %v720, %v724
        %v726 = vadd.s32 %v725, 536870912
        %v727 = vshrl.u32 %v726, 30
        %v728 = vshll.u32 %v727, 30
        %v729 = vsub.s32 %v725, %v728
        %vm730 = vcmp.lt.s32.totalorder %v729, 0
        %v731 = vsub.s32 0, %v729
        %v732 = vsel %vm730, %v731, %v729
        %v733 = vclz %v732
        %v734 = vsub.s32 %v733, 2
        %vm735 = vcmp.gt.s32.totalorder 0, %v734
        %v736 = vsel %vm735, 0, %v734
        %v737 = vsub.s32 32, %v736
        %v738 = vshll.u32 %v729, %v736
        %v739 = vshrl.u32 %v721, %v737
        %v740 = vor.u32 %v738, %v739
        %v741 = vsub.s32 4294967266, %v736
        %v742 = vadd.s32 %v741, 127
        %v743 = vshll.u32 %v742, 23
        %v744 = vor.u32 4788187, %v743
        %v745 = vand.u32 2147483647, %v744
        %v747 = vcvt.s32.f32 %v740
        %v748 = vmul.f32 %v747, %v745
        %v749 = vxor.u32 %v748, 2147483648
        %v750 = vsel %vm629, %v749, %v748
        %v751 = vsub.s32 4, %v727
        %v752 = vsel %vm629, %v751, %v727
        %v753 = vsel %vm628, %v595, %v750
        %v754 = vsel %vm628, 0, %v752
        %v755 = vmul.f32 %v753, %v753
        %v756 = vmul.f32 %v755, -0.001358992
        %v757 = vadd.f32 %v756, 0.041655596
        %v758 = vmul.f32 %v755, %v757
        %v759 = vadd.f32 %v758, -0.4999988
        %v760 = vmul.f32 %v755, %v759
        %v761 = vadd.f32 1.0, %v760
        %v762 = vmul.f32 %v753, %v753
        %v763 = vmul.f32 %v762, -0.00019511016
        %v764 = vadd.f32 %v763, 0.008332121
        %v765 = vmul.f32 %v762, %v764
        %v766 = vadd.f32 %v765, -0.16666654
        %v767 = vmul.f32 %v762, %v766
        %v768 = vadd.f32 %v767, 1.0
        %v769 = vmul.f32 %v768, %v753
        %vm770 = vweird.f32 %v595
        %v771 = vadd.s32 %v754, 3
        %v772 = vand.u32 %v771, 3
        %vm773 = vcmp.lt.s32.totalorder %v772, 2
        %vm774 = vcmp.eq.s32.totalorder %v772, 0
        %v775 = vxor.u32 %v769, 2147483648
        %v776 = vsel %vm774, %v761, %v775
        %vm777 = vcmp.eq.s32.totalorder %v772, 2
        %v778 = vxor.u32 %v761, 2147483648
        %v779 = vsel %vm777, %v778, %v769
        %v780 = vsel %vm773, %v776, %v779
        %v781 = vsel %vm770, nan, %v780
        %v782 = vand.u32 2147483647, %v596
        %vm783 = vcmp.le.f32.partialorder %v782, 0.7853982
        %vm784 = vcmp.lt.s32.totalorder %v596, 0
        %v785 = vand.u32 %v596, 2139095040
        %v786 = vshrl.u32 %v785, 23
        %v787 = vsub.s32 %v786, 127
        %v788 = vand.u32 2147483647, %v596
        %v789 = vand.u32 %v788, 8388607
        %v790 = vor.u32 %v789, 8388608
        %v791 = vsub.s32 0, %v790
        %v792 = vadd.s32 %v787, 1
        %vm793 = vcmp.gt.s32.totalorder %v792, 0
        %v794 = vsel %vm793, %v792, 0
        %v795 = vshrl.u32 %v794, 5
        %v796 = vand.u32 %v794, 31
        %v797 = vsub.s32 32, %v796
        %v798 = vshrl.u32 683565275, %v797
        %v799 = vshll.u32 683565275, %v796
        %v800 = vshrl.u32 2475754826, %v797
        %v801 = vor.u32 %v799, %v800
        %v802 = vshll.u32 2475754826, %v796
        %v803 = vshrl.u32 2131351028, %v797
        %v804 = vor.u32 %v802, %v803
        %v805 = vshll.u32 2131351028, %v796
        %v806 = vshrl.u32 2102212464, %v797
        %v807 = vor.u32 %v805, %v806
        %v808 = vshll.u32 2102212464, %v796
        %v809 = vshrl.u32 920167782, %v797
        %v810 = vor.u32 %v808, %v809
        %v811 = vshll.u32 920167782, %v796
        %v812 = vshrl.u32 1326507024, %v797
        %v813 = vor.u32 %v811, %v812
        %vm814 = vcmp.lt.s32.totalorder %v795, 1
        %vm815 = vcmp.lt.s32.totalorder %v795, 2
        %vm816 = vcmp.lt.s32.totalorder %v795, 3
        %vm817 = vcmp.lt.s32.totalorder %v795, 4
        %v818 = vsel %vm814, %v798, %v801
        %v819 = vsel %vm817, %v807, 2102212464
        %v820 = vsel %vm816, %v804, %v819
        %v821 = vsel %vm815, %v818, %v820
        %v822 = vsel %vm814, %v801, %v804
        %v823 = vsel %vm817, %v810, 920167782
        %v824 = vsel %vm816, %v807, %v823
        %v825 = vsel %vm815, %v822, %v824
        %v826 = vsel %vm814, %v804, %v807
        %v827 = vsel %vm817, %v813, 1326507024
        %v828 = vsel %vm816, %v810, %v827
        %v829 = vsel %vm815, %v826, %v828
        %v830 = vshll.u32 %v790, 8
        %v831 = vand.u32 %v830, 65535
        %v832 = vshrl.u32 %v830, 16
        %v833 = vand.u32 %v829, 65535
        %v834 = vshrl.u32 %v829, 16
        %v835 = vmul.u32 %v831, %v833
        %v836 = vmul.u32 %v831, %v834
        %v837 = vmul.u32 %v832, %v833
        %v838 = vmul.u32 %v832, %v834
        %v839 = vshll.u32 %v836, 16
        %v840 = vshrl.u32 %v836, 16
        %v841 = vshll.u32 %v837, 16
        %v842 = vshrl.u32 %v837, 16
        %vm843 = vc.u32 %v835, %v839
        %v844 = vsel %vm843, 1, 0
        %v845 = vadd.s32 %v835, %v839
        %v846 = vadd.s32 %v838, %v844
        %vm847 = vc.u32 %v845, %v841
        %v848 = vsel %vm847, 1, 0
        %v849 = vadd.s32 %v845, %v841
        %v850 = vadd.s32 %v846, %v848
        %v851 = vadd.s32 %v850, %v840
        %v852 = vadd.s32 %v851, %v842
        %v853 = vand.u32 %v830, 65535
        %v854 = vshrl.u32 %v830, 16
        %v855 = vand.u32 %v825, 65535
        %v856 = vshrl.u32 %v825, 16
        %v857 = vmul.u32 %v853, %v855
        %v858 = vmul.u32 %v853, %v856
        %v859 = vmul.u32 %v854, %v855
        %v860 = vmul.u32 %v854, %v856
        %v861 = vshll.u32 %v858, 16
        %v862 = vshrl.u32 %v858, 16
        %v863 = vshll.u32 %v859, 16
        %v864 = vshrl.u32 %v859, 16
        %vm865 = vc.u32 %v857, %v861
        %v866 = vsel %vm865, 1, 0
        %v867 = vadd.s32 %v857, %v861
        %v868 = vadd.s32 %v860, %v866
        %vm869 = vc.u32 %v867, %v863
        %v870 = vsel %vm869, 1, 0
        %v871 = vadd.s32 %v867, %v863
        %v872 = vadd.s32 %v868, %v870
        %v873 = vadd.s32 %v872, %v862
        %v874 = vadd.s32 %v873, %v864
        %v875 = vmul.u32 %v830, %v821
        %v876 = vadd.s32 %v852, %v871
        %vm877 = vc.u32 %v852, %v871
        %v878 = vadd.s32 %v874, 1
        %v879 = vsel %vm877, %v878, %v874
        %v880 = vadd.s32 %v875, %v879
        %v881 = vadd.s32 %v880, 536870912
        %v882 = vshrl.u32 %v881, 30
        %v883 = vshll.u32 %v882, 30
        %v884 = vsub.s32 %v880, %v883
        %vm885 = vcmp.lt.s32.totalorder %v884, 0
        %v886 = vsub.s32 0, %v884
        %v887 = vsel %vm885, %v886, %v884
        %v888 = vclz %v887
        %v889 = vsub.s32 %v888, 2
        %vm890 = vcmp.gt.s32.totalorder 0, %v889
        %v891 = vsel %vm890, 0, %v889
        %v892 = vsub.s32 32, %v891
        %v893 = vshll.u32 %v884, %v891
        %v894 = vshrl.u32 %v876, %v892
        %v895 = vor.u32 %v893, %v894
        %v896 = vsub.s32 4294967266, %v891
        %v897 = vadd.s32 %v896, 127
        %v898 = vshll.u32 %v897, 23
        %v899 = vor.u32 4788187, %v898
        %v900 = vand.u32 2147483647, %v899
        %v902 = vcvt.s32.f32 %v895
        %v903 = vmul.f32 %v902, %v900
        %v904 = vxor.u32 %v903, 2147483648
        %v905 = vsel %vm784, %v904, %v903
        %v906 = vsub.s32 4, %v882
        %v907 = vsel %vm784, %v906, %v882
        %v908 = vsel %vm783, %v596, %v905
        %v909 = vsel %vm783, 0, %v907
        %v910 = vmul.f32 %v908, %v908
        %v911 = vmul.f32 %v910, -0.001358992
        %v912 = vadd.f32 %v911, 0.041655596
        %v913 = vmul.f32 %v910, %v912
        %v914 = vadd.f32 %v913, -0.4999988
        %v915 = vmul.f32 %v910, %v914
        %v916 = vadd.f32 1.0, %v915
        %v917 = vmul.f32 %v908, %v908
        %v918 = vmul.f32 %v917, -0.00019511016
        %v919 = vadd.f32 %v918, 0.008332121
        %v920 = vmul.f32 %v917, %v919
        %v921 = vadd.f32 %v920, -0.16666654
        %v922 = vmul.f32 %v917, %v921
        %v923 = vadd.f32 %v922, 1.0
        %v924 = vmul.f32 %v923, %v908
        %vm925 = vweird.f32 %v596
        %v926 = vadd.s32 %v909, 3
        %v927 = vand.u32 %v926, 3
        %vm928 = vcmp.lt.s32.totalorder %v927, 2
        %vm929 = vcmp.eq.s32.totalorder %v927, 0
        %v930 = vxor.u32 %v924, 2147483648
        %v931 = vsel %vm929, %v916, %v930
        %vm932 = vcmp.eq.s32.totalorder %v927, 2
        %v933 = vxor.u32 %v916, 2147483648
        %v934 = vsel %vm932, %v933, %v924
        %v935 = vsel %vm928, %v931, %v934
        %v936 = vsel %vm925, nan, %v935
        %v937 = vand.u32 2147483647, %v597
        %vm938 = vcmp.le.f32.partialorder %v937, 0.7853982
        %vm939 = vcmp.lt.s32.totalorder %v597, 0
        %v940 = vand.u32 %v597, 2139095040
        %v941 = vshrl.u32 %v940, 23
        %v942 = vsub.s32 %v941, 127
        %v943 = vand.u32 2147483647, %v597
        %v944 = vand.u32 %v943, 8388607
        %v945 = vor.u32 %v944, 8388608
        %v946 = vsub.s32 0, %v945
        %v947 = vadd.s32 %v942, 1
        %vm948 = vcmp.gt.s32.totalorder %v947, 0
        %v949 = vsel %vm948, %v947, 0
        %v950 = vshrl.u32 %v949, 5
        %v951 = vand.u32 %v949, 31
        %v952 = vsub.s32 32, %v951
        %v953 = vshrl.u32 683565275, %v952
        %v954 = vshll.u32 683565275, %v951
        %v955 = vshrl.u32 2475754826, %v952
        %v956 = vor.u32 %v954, %v955
        %v957 = vshll.u32 2475754826, %v951
        %v958 = vshrl.u32 2131351028, %v952
        %v959 = vor.u32 %v957, %v958
        %v960 = vshll.u32 2131351028, %v951
        %v961 = vshrl.u32 2102212464, %v952
        %v962 = vor.u32 %v960, %v961
        %v963 = vshll.u32 2102212464, %v951
        %v964 = vshrl.u32 920167782, %v952
        %v965 = vor.u32 %v963, %v964
        %v966 = vshll.u32 920167782, %v951
        %v967 = vshrl.u32 1326507024, %v952
        %v968 = vor.u32 %v966, %v967
        %vm969 = vcmp.lt.s32.totalorder %v950, 1
        %vm970 = vcmp.lt.s32.totalorder %v950, 2
        %vm971 = vcmp.lt.s32.totalorder %v950, 3
        %vm972 = vcmp.lt.s32.totalorder %v950, 4
        %v973 = vsel %vm969, %v953, %v956
        %v974 = vsel %vm972, %v962, 2102212464
        %v975 = vsel %vm971, %v959, %v974
        %v976 = vsel %vm970, %v973, %v975
        %v977 = vsel %vm969, %v956, %v959
        %v978 = vsel %vm972, %v965, 920167782
        %v979 = vsel %vm971, %v962, %v978
        %v980 = vsel %vm970, %v977, %v979
        %v981 = vsel %vm969, %v959, %v962
        %v982 = vsel %vm972, %v968, 1326507024
        %v983 = vsel %vm971, %v965, %v982
        %v984 = vsel %vm970, %v981, %v983
        %v985 = vshll.u32 %v945, 8
        %v986 = vand.u32 %v985, 65535
        %v987 = vshrl.u32 %v985, 16
        %v988 = vand.u32 %v984, 65535
        %v989 = vshrl.u32 %v984, 16
        %v990 = vmul.u32 %v986, %v988
        %v991 = vmul.u32 %v986, %v989
        %v992 = vmul.u32 %v987, %v988
        %v993 = vmul.u32 %v987, %v989
        %v994 = vshll.u32 %v991, 16
        %v995 = vshrl.u32 %v991, 16
        %v996 = vshll.u32 %v992, 16
        %v997 = vshrl.u32 %v992, 16
        %vm998 = vc.u32 %v990, %v994
        %v999 = vsel %vm998, 1, 0
        %v1000 = vadd.s32 %v990, %v994
        %v1001 = vadd.s32 %v993, %v999
        %vm1002 = vc.u32 %v1000, %v996
        %v1003 = vsel %vm1002, 1, 0
        %v1004 = vadd.s32 %v1000, %v996
        %v1005 = vadd.s32 %v1001, %v1003
        %v1006 = vadd.s32 %v1005, %v995
        %v1007 = vadd.s32 %v1006, %v997
        %v1008 = vand.u32 %v985, 65535
        %v1009 = vshrl.u32 %v985, 16
        %v1010 = vand.u32 %v980, 65535
        %v1011 = vshrl.u32 %v980, 16
        %v1012 = vmul.u32 %v1008, %v1010
        %v1013 = vmul.u32 %v1008, %v1011
        %v1014 = vmul.u32 %v1009, %v1010
        %v1015 = vmul.u32 %v1009, %v1011
        %v1016 = vshll.u32 %v1013, 16
        %v1017 = vshrl.u32 %v1013, 16
        %v1018 = vshll.u32 %v1014, 16
        %v1019 = vshrl.u32 %v1014, 16
        %vm1020 = vc.u32 %v1012, %v1016
        %v1021 = vsel %vm1020, 1, 0
        %v1022 = vadd.s32 %v1012, %v1016
        %v1023 = vadd.s32 %v1015, %v1021
        %vm1024 = vc.u32 %v1022, %v1018
        %v1025 = vsel %vm1024, 1, 0
        %v1026 = vadd.s32 %v1022, %v1018
        %v1027 = vadd.s32 %v1023, %v1025
        %v1028 = vadd.s32 %v1027, %v1017
        %v1029 = vadd.s32 %v1028, %v1019
        %v1030 = vmul.u32 %v985, %v976
        %v1031 = vadd.s32 %v1007, %v1026
        %vm1032 = vc.u32 %v1007, %v1026
        %v1033 = vadd.s32 %v1029, 1
        %v1034 = vsel %vm1032, %v1033, %v1029
        %v1035 = vadd.s32 %v1030, %v1034
        %v1036 = vadd.s32 %v1035, 536870912
        %v1037 = vshrl.u32 %v1036, 30
        %v1038 = vshll.u32 %v1037, 30
        %v1039 = vsub.s32 %v1035, %v1038
        %vm1040 = vcmp.lt.s32.totalorder %v1039, 0
        %v1041 = vsub.s32 0, %v1039
        %v1042 = vsel %vm1040, %v1041, %v1039
        %v1043 = vclz %v1042
        %v1044 = vsub.s32 %v1043, 2
        %vm1045 = vcmp.gt.s32.totalorder 0, %v1044
        %v1046 = vsel %vm1045, 0, %v1044
        %v1047 = vsub.s32 32, %v1046
        %v1048 = vshll.u32 %v1039, %v1046
        %v1049 = vshrl.u32 %v1031, %v1047
        %v1050 = vor.u32 %v1048, %v1049
        %v1051 = vsub.s32 4294967266, %v1046
        %v1052 = vadd.s32 %v1051, 127
        %v1053 = vshll.u32 %v1052, 23
        %v1054 = vor.u32 4788187, %v1053
        %v1055 = vand.u32 2147483647, %v1054
        %v1057 = vcvt.s32.f32 %v1050
        %v1058 = vmul.f32 %v1057, %v1055
        %v1059 = vxor.u32 %v1058, 2147483648
        %v1060 = vsel %vm939, %v1059, %v1058
        %v1061 = vsub.s32 4, %v1037
        %v1062 = vsel %vm939, %v1061, %v1037
        %v1063 = vsel %vm938, %v597, %v1060
        %v1064 = vsel %vm938, 0, %v1062
        %v1065 = vmul.f32 %v1063, %v1063
        %v1066 = vmul.f32 %v1065, -0.001358992
        %v1067 = vadd.f32 %v1066, 0.041655596
        %v1068 = vmul.f32 %v1065, %v1067
        %v1069 = vadd.f32 %v1068, -0.4999988
        %v1070 = vmul.f32 %v1065, %v1069
        %v1071 = vadd.f32 1.0, %v1070
        %v1072 = vmul.f32 %v1063, %v1063
        %v1073 = vmul.f32 %v1072, -0.00019511016
        %v1074 = vadd.f32 %v1073, 0.008332121
        %v1075 = vmul.f32 %v1072, %v1074
        %v1076 = vadd.f32 %v1075, -0.16666654
        %v1077 = vmul.f32 %v1072, %v1076
        %v1078 = vadd.f32 %v1077, 1.0
        %v1079 = vmul.f32 %v1078, %v1063
        %vm1080 = vweird.f32 %v597
        %v1081 = vadd.s32 %v1064, 3
        %v1082 = vand.u32 %v1081, 3
        %vm1083 = vcmp.lt.s32.totalorder %v1082, 2
        %vm1084 = vcmp.eq.s32.totalorder %v1082, 0
        %v1085 = vxor.u32 %v1079, 2147483648
        %v1086 = vsel %vm1084, %v1071, %v1085
        %vm1087 = vcmp.eq.s32.totalorder %v1082, 2
        %v1088 = vxor.u32 %v1071, 2147483648
        %v1089 = vsel %vm1087, %v1088, %v1079
        %v1090 = vsel %vm1083, %v1086, %v1089
        %v1091 = vsel %vm1080, nan, %v1090
        %v1092 = vand.u32 2147483647, %v598
        %vm1093 = vcmp.le.f32.partialorder %v1092, 0.7853982
        %vm1094 = vcmp.lt.s32.totalorder %v598, 0
        %v1095 = vand.u32 %v598, 2139095040
        %v1096 = vshrl.u32 %v1095, 23
        %v1097 = vsub.s32 %v1096, 127
        %v1098 = vand.u32 2147483647, %v598
        %v1099 = vand.u32 %v1098, 8388607
        %v1100 = vor.u32 %v1099, 8388608
        %v1101 = vsub.s32 0, %v1100
        %v1102 = vadd.s32 %v1097, 1
        %vm1103 = vcmp.gt.s32.totalorder %v1102, 0
        %v1104 = vsel %vm1103, %v1102, 0
        %v1105 = vshrl.u32 %v1104, 5
        %v1106 = vand.u32 %v1104, 31
        %v1107 = vsub.s32 32, %v1106
        %v1108 = vshrl.u32 683565275, %v1107
        %v1109 = vshll.u32 683565275, %v1106
        %v1110 = vshrl.u32 2475754826, %v1107
        %v1111 = vor.u32 %v1109, %v1110
        %v1112 = vshll.u32 2475754826, %v1106
        %v1113 = vshrl.u32 2131351028, %v1107
        %v1114 = vor.u32 %v1112, %v1113
        %v1115 = vshll.u32 2131351028, %v1106
        %v1116 = vshrl.u32 2102212464, %v1107
        %v1117 = vor.u32 %v1115, %v1116
        %v1118 = vshll.u32 2102212464, %v1106
        %v1119 = vshrl.u32 920167782, %v1107
        %v1120 = vor.u32 %v1118, %v1119
        %v1121 = vshll.u32 920167782, %v1106
        %v1122 = vshrl.u32 1326507024, %v1107
        %v1123 = vor.u32 %v1121, %v1122
        %vm1124 = vcmp.lt.s32.totalorder %v1105, 1
        %vm1125 = vcmp.lt.s32.totalorder %v1105, 2
        %vm1126 = vcmp.lt.s32.totalorder %v1105, 3
        %vm1127 = vcmp.lt.s32.totalorder %v1105, 4
        %v1128 = vsel %vm1124, %v1108, %v1111
        %v1129 = vsel %vm1127, %v1117, 2102212464
        %v1130 = vsel %vm1126, %v1114, %v1129
        %v1131 = vsel %vm1125, %v1128, %v1130
        %v1132 = vsel %vm1124, %v1111, %v1114
        %v1133 = vsel %vm1127, %v1120, 920167782
        %v1134 = vsel %vm1126, %v1117, %v1133
        %v1135 = vsel %vm1125, %v1132, %v1134
        %v1136 = vsel %vm1124, %v1114, %v1117
        %v1137 = vsel %vm1127, %v1123, 1326507024
        %v1138 = vsel %vm1126, %v1120, %v1137
        %v1139 = vsel %vm1125, %v1136, %v1138
        %v1140 = vshll.u32 %v1100, 8
        %v1141 = vand.u32 %v1140, 65535
        %v1142 = vshrl.u32 %v1140, 16
        %v1143 = vand.u32 %v1139, 65535
        %v1144 = vshrl.u32 %v1139, 16
        %v1145 = vmul.u32 %v1141, %v1143
        %v1146 = vmul.u32 %v1141, %v1144
        %v1147 = vmul.u32 %v1142, %v1143
        %v1148 = vmul.u32 %v1142, %v1144
        %v1149 = vshll.u32 %v1146, 16
        %v1150 = vshrl.u32 %v1146, 16
        %v1151 = vshll.u32 %v1147, 16
        %v1152 = vshrl.u32 %v1147, 16
        %vm1153 = vc.u32 %v1145, %v1149
        %v1154 = vsel %vm1153, 1, 0
        %v1155 = vadd.s32 %v1145, %v1149
        %v1156 = vadd.s32 %v1148, %v1154
        %vm1157 = vc.u32 %v1155, %v1151
        %v1158 = vsel %vm1157, 1, 0
        %v1159 = vadd.s32 %v1155, %v1151
        %v1160 = vadd.s32 %v1156, %v1158
        %v1161 = vadd.s32 %v1160, %v1150
        %v1162 = vadd.s32 %v1161, %v1152
        %v1163 = vand.u32 %v1140, 65535
        %v1164 = vshrl.u32 %v1140, 16
        %v1165 = vand.u32 %v1135, 65535
        %v1166 = vshrl.u32 %v1135, 16
        %v1167 = vmul.u32 %v1163, %v1165
        %v1168 = vmul.u32 %v1163, %v1166
        %v1169 = vmul.u32 %v1164, %v1165
        %v1170 = vmul.u32 %v1164, %v1166
        %v1171 = vshll.u32 %v1168, 16
        %v1172 = vshrl.u32 %v1168, 16
        %v1173 = vshll.u32 %v1169, 16
        %v1174 = vshrl.u32 %v1169, 16
        %vm1175 = vc.u32 %v1167, %v1171
        %v1176 = vsel %vm1175, 1, 0
        %v1177 = vadd.s32 %v1167, %v1171
        %v1178 = vadd.s32 %v1170, %v1176
        %vm1179 = vc.u32 %v1177, %v1173
        %v1180 = vsel %vm1179, 1, 0
        %v1181 = vadd.s32 %v1177, %v1173
        %v1182 = vadd.s32 %v1178, %v1180
        %v1183 = vadd.s32 %v1182, %v1172
        %v1184 = vadd.s32 %v1183, %v1174
        %v1185 = vmul.u32 %v1140, %v1131
        %v1186 = vadd.s32 %v1162, %v1181
        %vm1187 = vc.u32 %v1162, %v1181
        %v1188 = vadd.s32 %v1184, 1
        %v1189 = vsel %vm1187, %v1188, %v1184
        %v1190 = vadd.s32 %v1185, %v1189
        %v1191 = vadd.s32 %v1190, 536870912
        %v1192 = vshrl.u32 %v1191, 30
        %v1193 = vshll.u32 %v1192, 30
        %v1194 = vsub.s32 %v1190, %v1193
        %vm1195 = vcmp.lt.s32.totalorder %v1194, 0
        %v1196 = vsub.s32 0, %v1194
        %v1197 = vsel %vm1195, %v1196, %v1194
        %v1198 = vclz %v1197
        %v1199 = vsub.s32 %v1198, 2
        %vm1200 = vcmp.gt.s32.totalorder 0, %v1199
        %v1201 = vsel %vm1200, 0, %v1199
        %v1202 = vsub.s32 32, %v1201
        %v1203 = vshll.u32 %v1194, %v1201
        %v1204 = vshrl.u32 %v1186, %v1202
        %v1205 = vor.u32 %v1203, %v1204
        %v1206 = vsub.s32 4294967266, %v1201
        %v1207 = vadd.s32 %v1206, 127
        %v1208 = vshll.u32 %v1207, 23
        %v1209 = vor.u32 4788187, %v1208
        %v1210 = vand.u32 2147483647, %v1209
        %v1212 = vcvt.s32.f32 %v1205
        %v1213 = vmul.f32 %v1212, %v1210
        %v1214 = vxor.u32 %v1213, 2147483648
        %v1215 = vsel %vm1094, %v1214, %v1213
        %v1216 = vsub.s32 4, %v1192
        %v1217 = vsel %vm1094, %v1216, %v1192
        %v1218 = vsel %vm1093, %v598, %v1215
        %v1219 = vsel %vm1093, 0, %v1217
        %v1220 = vmul.f32 %v1218, %v1218
        %v1221 = vmul.f32 %v1220, -0.001358992
        %v1222 = vadd.f32 %v1221, 0.041655596
        %v1223 = vmul.f32 %v1220, %v1222
        %v1224 = vadd.f32 %v1223, -0.4999988
        %v1225 = vmul.f32 %v1220, %v1224
        %v1226 = vadd.f32 1.0, %v1225
        %v1227 = vmul.f32 %v1218, %v1218
        %v1228 = vmul.f32 %v1227, -0.00019511016
        %v1229 = vadd.f32 %v1228, 0.008332121
        %v1230 = vmul.f32 %v1227, %v1229
        %v1231 = vadd.f32 %v1230, -0.16666654
        %v1232 = vmul.f32 %v1227, %v1231
        %v1233 = vadd.f32 %v1232, 1.0
        %v1234 = vmul.f32 %v1233, %v1218
        %vm1235 = vweird.f32 %v598
        %v1236 = vadd.s32 %v1219, 3
        %v1237 = vand.u32 %v1236, 3
        %vm1238 = vcmp.lt.s32.totalorder %v1237, 2
        %vm1239 = vcmp.eq.s32.totalorder %v1237, 0
        %v1240 = vxor.u32 %v1234, 2147483648
        %v1241 = vsel %vm1239, %v1226, %v1240
        %vm1242 = vcmp.eq.s32.totalorder %v1237, 2
        %v1243 = vxor.u32 %v1226, 2147483648
        %v1244 = vsel %vm1242, %v1243, %v1234
        %v1245 = vsel %vm1238, %v1241, %v1244
        %v1246 = vsel %vm1235, nan, %v1245
        %v1247 = vand.u32 2147483647, %v599
        %vm1248 = vcmp.le.f32.partialorder %v1247, 0.7853982
        %vm1249 = vcmp.lt.s32.totalorder %v599, 0
        %v1250 = vand.u32 %v599, 2139095040
        %v1251 = vshrl.u32 %v1250, 23
        %v1252 = vsub.s32 %v1251, 127
        %v1253 = vand.u32 2147483647, %v599
        %v1254 = vand.u32 %v1253, 8388607
        %v1255 = vor.u32 %v1254, 8388608
        %v1256 = vsub.s32 0, %v1255
        %v1257 = vadd.s32 %v1252, 1
        %vm1258 = vcmp.gt.s32.totalorder %v1257, 0
        %v1259 = vsel %vm1258, %v1257, 0
        %v1260 = vshrl.u32 %v1259, 5
        %v1261 = vand.u32 %v1259, 31
        %v1262 = vsub.s32 32, %v1261
        %v1263 = vshrl.u32 683565275, %v1262
        %v1264 = vshll.u32 683565275, %v1261
        %v1265 = vshrl.u32 2475754826, %v1262
        %v1266 = vor.u32 %v1264, %v1265
        %v1267 = vshll.u32 2475754826, %v1261
        %v1268 = vshrl.u32 2131351028, %v1262
        %v1269 = vor.u32 %v1267, %v1268
        %v1270 = vshll.u32 2131351028, %v1261
        %v1271 = vshrl.u32 2102212464, %v1262
        %v1272 = vor.u32 %v1270, %v1271
        %v1273 = vshll.u32 2102212464, %v1261
        %v1274 = vshrl.u32 920167782, %v1262
        %v1275 = vor.u32 %v1273, %v1274
        %v1276 = vshll.u32 920167782, %v1261
        %v1277 = vshrl.u32 1326507024, %v1262
        %v1278 = vor.u32 %v1276, %v1277
        %vm1279 = vcmp.lt.s32.totalorder %v1260, 1
        %vm1280 = vcmp.lt.s32.totalorder %v1260, 2
        %vm1281 = vcmp.lt.s32.totalorder %v1260, 3
        %vm1282 = vcmp.lt.s32.totalorder %v1260, 4
        %v1283 = vsel %vm1279, %v1263, %v1266
        %v1284 = vsel %vm1282, %v1272, 2102212464
        %v1285 = vsel %vm1281, %v1269, %v1284
        %v1286 = vsel %vm1280, %v1283, %v1285
        %v1287 = vsel %vm1279, %v1266, %v1269
        %v1288 = vsel %vm1282, %v1275, 920167782
        %v1289 = vsel %vm1281, %v1272, %v1288
        %v1290 = vsel %vm1280, %v1287, %v1289
        %v1291 = vsel %vm1279, %v1269, %v1272
        %v1292 = vsel %vm1282, %v1278, 1326507024
        %v1293 = vsel %vm1281, %v1275, %v1292
        %v1294 = vsel %vm1280, %v1291, %v1293
        %v1295 = vshll.u32 %v1255, 8
        %v1296 = vand.u32 %v1295, 65535
        %v1297 = vshrl.u32 %v1295, 16
        %v1298 = vand.u32 %v1294, 65535
        %v1299 = vshrl.u32 %v1294, 16
        %v1300 = vmul.u32 %v1296, %v1298
        %v1301 = vmul.u32 %v1296, %v1299
        %v1302 = vmul.u32 %v1297, %v1298
        %v1303 = vmul.u32 %v1297, %v1299
        %v1304 = vshll.u32 %v1301, 16
        %v1305 = vshrl.u32 %v1301, 16
        %v1306 = vshll.u32 %v1302, 16
        %v1307 = vshrl.u32 %v1302, 16
        %vm1308 = vc.u32 %v1300, %v1304
        %v1309 = vsel %vm1308, 1, 0
        %v1310 = vadd.s32 %v1300, %v1304
        %v1311 = vadd.s32 %v1303, %v1309
        %vm1312 = vc.u32 %v1310, %v1306
        %v1313 = vsel %vm1312, 1, 0
        %v1314 = vadd.s32 %v1310, %v1306
        %v1315 = vadd.s32 %v1311, %v1313
        %v1316 = vadd.s32 %v1315, %v1305
        %v1317 = vadd.s32 %v1316, %v1307
        %v1318 = vand.u32 %v1295, 65535
        %v1319 = vshrl.u32 %v1295, 16
        %v1320 = vand.u32 %v1290, 65535
        %v1321 = vshrl.u32 %v1290, 16
        %v1322 = vmul.u32 %v1318, %v1320
        %v1323 = vmul.u32 %v1318, %v1321
        %v1324 = vmul.u32 %v1319, %v1320
        %v1325 = vmul.u32 %v1319, %v1321
        %v1326 = vshll.u32 %v1323, 16
        %v1327 = vshrl.u32 %v1323, 16
        %v1328 = vshll.u32 %v1324, 16
        %v1329 = vshrl.u32 %v1324, 16
        %vm1330 = vc.u32 %v1322, %v1326
        %v1331 = vsel %vm1330, 1, 0
        %v1332 = vadd.s32 %v1322, %v1326
        %v1333 = vadd.s32 %v1325, %v1331
        %vm1334 = vc.u32 %v1332, %v1328
        %v1335 = vsel %vm1334, 1, 0
        %v1336 = vadd.s32 %v1332, %v1328
        %v1337 = vadd.s32 %v1333, %v1335
        %v1338 = vadd.s32 %v1337, %v1327
        %v1339 = vadd.s32 %v1338, %v1329
        %v1340 = vmul.u32 %v1295, %v1286
        %v1341 = vadd.s32 %v1317, %v1336
        %vm1342 = vc.u32 %v1317, %v1336
        %v1343 = vadd.s32 %v1339, 1
        %v1344 = vsel %vm1342, %v1343, %v1339
        %v1345 = vadd.s32 %v1340, %v1344
        %v1346 = vadd.s32 %v1345, 536870912
        %v1347 = vshrl.u32 %v1346, 30
        %v1348 = vshll.u32 %v1347, 30
        %v1349 = vsub.s32 %v1345, %v1348
        %vm1350 = vcmp.lt.s32.totalorder %v1349, 0
        %v1351 = vsub.s32 0, %v1349
        %v1352 = vsel %vm1350, %v1351, %v1349
        %v1353 = vclz %v1352
        %v1354 = vsub.s32 %v1353, 2
        %vm1355 = vcmp.gt.s32.totalorder 0, %v1354
        %v1356 = vsel %vm1355, 0, %v1354
        %v1357 = vsub.s32 32, %v1356
        %v1358 = vshll.u32 %v1349, %v1356
        %v1359 = vshrl.u32 %v1341, %v1357
        %v1360 = vor.u32 %v1358, %v1359
        %v1361 = vsub.s32 4294967266, %v1356
        %v1362 = vadd.s32 %v1361, 127
        %v1363 = vshll.u32 %v1362, 23
        %v1364 = vor.u32 4788187, %v1363
        %v1365 = vand.u32 2147483647, %v1364
        %v1367 = vcvt.s32.f32 %v1360
        %v1368 = vmul.f32 %v1367, %v1365
        %v1369 = vxor.u32 %v1368, 2147483648
        %v1370 = vsel %vm1249, %v1369, %v1368
        %v1371 = vsub.s32 4, %v1347
        %v1372 = vsel %vm1249, %v1371, %v1347
        %v1373 = vsel %vm1248, %v599, %v1370
        %v1374 = vsel %vm1248, 0, %v1372
        %v1375 = vmul.f32 %v1373, %v1373
        %v1376 = vmul.f32 %v1375, -0.001358992
        %v1377 = vadd.f32 %v1376, 0.041655596
        %v1378 = vmul.f32 %v1375, %v1377
        %v1379 = vadd.f32 %v1378, -0.4999988
        %v1380 = vmul.f32 %v1375, %v1379
        %v1381 = vadd.f32 1.0, %v1380
        %v1382 = vmul.f32 %v1373, %v1373
        %v1383 = vmul.f32 %v1382, -0.00019511016
        %v1384 = vadd.f32 %v1383, 0.008332121
        %v1385 = vmul.f32 %v1382, %v1384
        %v1386 = vadd.f32 %v1385, -0.16666654
        %v1387 = vmul.f32 %v1382, %v1386
        %v1388 = vadd.f32 %v1387, 1.0
        %v1389 = vmul.f32 %v1388, %v1373
        %vm1390 = vweird.f32 %v599
        %v1391 = vadd.s32 %v1374, 3
        %v1392 = vand.u32 %v1391, 3
        %vm1393 = vcmp.lt.s32.totalorder %v1392, 2
        %vm1394 = vcmp.eq.s32.totalorder %v1392, 0
        %v1395 = vxor.u32 %v1389, 2147483648
        %v1396 = vsel %vm1394, %v1381, %v1395
        %vm1397 = vcmp.eq.s32.totalorder %v1392, 2
        %v1398 = vxor.u32 %v1381, 2147483648
        %v1399 = vsel %vm1397, %v1398, %v1389
        %v1400 = vsel %vm1393, %v1396, %v1399
        %v1401 = vsel %vm1390, nan, %v1400
        %v1402 = vand.u32 2147483647, %v600
        %vm1403 = vcmp.le.f32.partialorder %v1402, 0.7853982
        %vm1404 = vcmp.lt.s32.totalorder %v600, 0
        %v1405 = vand.u32 %v600, 2139095040
        %v1406 = vshrl.u32 %v1405, 23
        %v1407 = vsub.s32 %v1406, 127
        %v1408 = vand.u32 2147483647, %v600
        %v1409 = vand.u32 %v1408, 8388607
        %v1410 = vor.u32 %v1409, 8388608
        %v1411 = vsub.s32 0, %v1410
        %v1412 = vadd.s32 %v1407, 1
        %vm1413 = vcmp.gt.s32.totalorder %v1412, 0
        %v1414 = vsel %vm1413, %v1412, 0
        %v1415 = vshrl.u32 %v1414, 5
        %v1416 = vand.u32 %v1414, 31
        %v1417 = vsub.s32 32, %v1416
        %v1418 = vshrl.u32 683565275, %v1417
        %v1419 = vshll.u32 683565275, %v1416
        %v1420 = vshrl.u32 2475754826, %v1417
        %v1421 = vor.u32 %v1419, %v1420
        %v1422 = vshll.u32 2475754826, %v1416
        %v1423 = vshrl.u32 2131351028, %v1417
        %v1424 = vor.u32 %v1422, %v1423
        %v1425 = vshll.u32 2131351028, %v1416
        %v1426 = vshrl.u32 2102212464, %v1417
        %v1427 = vor.u32 %v1425, %v1426
        %v1428 = vshll.u32 2102212464, %v1416
        %v1429 = vshrl.u32 920167782, %v1417
        %v1430 = vor.u32 %v1428, %v1429
        %v1431 = vshll.u32 920167782, %v1416
        %v1432 = vshrl.u32 1326507024, %v1417
        %v1433 = vor.u32 %v1431, %v1432
        %vm1434 = vcmp.lt.s32.totalorder %v1415, 1
        %vm1435 = vcmp.lt.s32.totalorder %v1415, 2
        %vm1436 = vcmp.lt.s32.totalorder %v1415, 3
        %vm1437 = vcmp.lt.s32.totalorder %v1415, 4
        %v1438 = vsel %vm1434, %v1418, %v1421
        %v1439 = vsel %vm1437, %v1427, 2102212464
        %v1440 = vsel %vm1436, %v1424, %v1439
        %v1441 = vsel %vm1435, %v1438, %v1440
        %v1442 = vsel %vm1434, %v1421, %v1424
        %v1443 = vsel %vm1437, %v1430, 920167782
        %v1444 = vsel %vm1436, %v1427, %v1443
        %v1445 = vsel %vm1435, %v1442, %v1444
        %v1446 = vsel %vm1434, %v1424, %v1427
        %v1447 = vsel %vm1437, %v1433, 1326507024
        %v1448 = vsel %vm1436, %v1430, %v1447
        %v1449 = vsel %vm1435, %v1446, %v1448
        %v1450 = vshll.u32 %v1410, 8
        %v1451 = vand.u32 %v1450, 65535
        %v1452 = vshrl.u32 %v1450, 16
        %v1453 = vand.u32 %v1449, 65535
        %v1454 = vshrl.u32 %v1449, 16
        %v1455 = vmul.u32 %v1451, %v1453
        %v1456 = vmul.u32 %v1451, %v1454
        %v1457 = vmul.u32 %v1452, %v1453
        %v1458 = vmul.u32 %v1452, %v1454
        %v1459 = vshll.u32 %v1456, 16
        %v1460 = vshrl.u32 %v1456, 16
        %v1461 = vshll.u32 %v1457, 16
        %v1462 = vshrl.u32 %v1457, 16
        %vm1463 = vc.u32 %v1455, %v1459
        %v1464 = vsel %vm1463, 1, 0
        %v1465 = vadd.s32 %v1455, %v1459
        %v1466 = vadd.s32 %v1458, %v1464
        %vm1467 = vc.u32 %v1465, %v1461
        %v1468 = vsel %vm1467, 1, 0
        %v1469 = vadd.s32 %v1465, %v1461
        %v1470 = vadd.s32 %v1466, %v1468
        %v1471 = vadd.s32 %v1470, %v1460
        %v1472 = vadd.s32 %v1471, %v1462
        %v1473 = vand.u32 %v1450, 65535
        %v1474 = vshrl.u32 %v1450, 16
        %v1475 = vand.u32 %v1445, 65535
        %v1476 = vshrl.u32 %v1445, 16
        %v1477 = vmul.u32 %v1473, %v1475
        %v1478 = vmul.u32 %v1473, %v1476
        %v1479 = vmul.u32 %v1474, %v1475
        %v1480 = vmul.u32 %v1474, %v1476
        %v1481 = vshll.u32 %v1478, 16
        %v1482 = vshrl.u32 %v1478, 16
        %v1483 = vshll.u32 %v1479, 16
        %v1484 = vshrl.u32 %v1479, 16
        %vm1485 = vc.u32 %v1477, %v1481
        %v1486 = vsel %vm1485, 1, 0
        %v1487 = vadd.s32 %v1477, %v1481
        %v1488 = vadd.s32 %v1480, %v1486
        %vm1489 = vc.u32 %v1487, %v1483
        %v1490 = vsel %vm1489, 1, 0
        %v1491 = vadd.s32 %v1487, %v1483
        %v1492 = vadd.s32 %v1488, %v1490
        %v1493 = vadd.s32 %v1492, %v1482
        %v1494 = vadd.s32 %v1493, %v1484
        %v1495 = vmul.u32 %v1450, %v1441
        %v1496 = vadd.s32 %v1472, %v1491
        %vm1497 = vc.u32 %v1472, %v1491
        %v1498 = vadd.s32 %v1494, 1
        %v1499 = vsel %vm1497, %v1498, %v1494
        %v1500 = vadd.s32 %v1495, %v1499
        %v1501 = vadd.s32 %v1500, 536870912
        %v1502 = vshrl.u32 %v1501, 30
        %v1503 = vshll.u32 %v1502, 30
        %v1504 = vsub.s32 %v1500, %v1503
        %vm1505 = vcmp.lt.s32.totalorder %v1504, 0
        %v1506 = vsub.s32 0, %v1504
        %v1507 = vsel %vm1505, %v1506, %v1504
        %v1508 = vclz %v1507
        %v1509 = vsub.s32 %v1508, 2
        %vm1510 = vcmp.gt.s32.totalorder 0, %v1509
        %v1511 = vsel %vm1510, 0, %v1509
        %v1512 = vsub.s32 32, %v1511
        %v1513 = vshll.u32 %v1504, %v1511
        %v1514 = vshrl.u32 %v1496, %v1512
        %v1515 = vor.u32 %v1513, %v1514
        %v1516 = vsub.s32 4294967266, %v1511
        %v1517 = vadd.s32 %v1516, 127
        %v1518 = vshll.u32 %v1517, 23
        %v1519 = vor.u32 4788187, %v1518
        %v1520 = vand.u32 2147483647, %v1519
        %v1522 = vcvt.s32.f32 %v1515
        %v1523 = vmul.f32 %v1522, %v1520
        %v1524 = vxor.u32 %v1523, 2147483648
        %v1525 = vsel %vm1404, %v1524, %v1523
        %v1526 = vsub.s32 4, %v1502
        %v1527 = vsel %vm1404, %v1526, %v1502
        %v1528 = vsel %vm1403, %v600, %v1525
        %v1529 = vsel %vm1403, 0, %v1527
        %v1530 = vmul.f32 %v1528, %v1528
        %v1531 = vmul.f32 %v1530, -0.001358992
        %v1532 = vadd.f32 %v1531, 0.041655596
        %v1533 = vmul.f32 %v1530, %v1532
        %v1534 = vadd.f32 %v1533, -0.4999988
        %v1535 = vmul.f32 %v1530, %v1534
        %v1536 = vadd.f32 1.0, %v1535
        %v1537 = vmul.f32 %v1528, %v1528
        %v1538 = vmul.f32 %v1537, -0.00019511016
        %v1539 = vadd.f32 %v1538, 0.008332121
        %v1540 = vmul.f32 %v1537, %v1539
        %v1541 = vadd.f32 %v1540, -0.16666654
        %v1542 = vmul.f32 %v1537, %v1541
        %v1543 = vadd.f32 %v1542, 1.0
        %v1544 = vmul.f32 %v1543, %v1528
        %vm1545 = vweird.f32 %v600
        %v1546 = vadd.s32 %v1529, 3
        %v1547 = vand.u32 %v1546, 3
        %vm1548 = vcmp.lt.s32.totalorder %v1547, 2
        %vm1549 = vcmp.eq.s32.totalorder %v1547, 0
        %v1550 = vxor.u32 %v1544, 2147483648
        %v1551 = vsel %vm1549, %v1536, %v1550
        %vm1552 = vcmp.eq.s32.totalorder %v1547, 2
        %v1553 = vxor.u32 %v1536, 2147483648
        %v1554 = vsel %vm1552, %v1553, %v1544
        %v1555 = vsel %vm1548, %v1551, %v1554
        %v1556 = vsel %vm1545, nan, %v1555
        %v1557 = vand.u32 2147483647, %v601
        %vm1558 = vcmp.le.f32.partialorder %v1557, 0.7853982
        %vm1559 = vcmp.lt.s32.totalorder %v601, 0
        %v1560 = vand.u32 %v601, 2139095040
        %v1561 = vshrl.u32 %v1560, 23
        %v1562 = vsub.s32 %v1561, 127
        %v1563 = vand.u32 2147483647, %v601
        %v1564 = vand.u32 %v1563, 8388607
        %v1565 = vor.u32 %v1564, 8388608
        %v1566 = vsub.s32 0, %v1565
        %v1567 = vadd.s32 %v1562, 1
        %vm1568 = vcmp.gt.s32.totalorder %v1567, 0
        %v1569 = vsel %vm1568, %v1567, 0
        %v1570 = vshrl.u32 %v1569, 5
        %v1571 = vand.u32 %v1569, 31
        %v1572 = vsub.s32 32, %v1571
        %v1573 = vshrl.u32 683565275, %v1572
        %v1574 = vshll.u32 683565275, %v1571
        %v1575 = vshrl.u32 2475754826, %v1572
        %v1576 = vor.u32 %v1574, %v1575
        %v1577 = vshll.u32 2475754826, %v1571
        %v1578 = vshrl.u32 2131351028, %v1572
        %v1579 = vor.u32 %v1577, %v1578
        %v1580 = vshll.u32 2131351028, %v1571
        %v1581 = vshrl.u32 2102212464, %v1572
        %v1582 = vor.u32 %v1580, %v1581
        %v1583 = vshll.u32 2102212464, %v1571
        %v1584 = vshrl.u32 920167782, %v1572
        %v1585 = vor.u32 %v1583, %v1584
        %v1586 = vshll.u32 920167782, %v1571
        %v1587 = vshrl.u32 1326507024, %v1572
        %v1588 = vor.u32 %v1586, %v1587
        %vm1589 = vcmp.lt.s32.totalorder %v1570, 1
        %vm1590 = vcmp.lt.s32.totalorder %v1570, 2
        %vm1591 = vcmp.lt.s32.totalorder %v1570, 3
        %vm1592 = vcmp.lt.s32.totalorder %v1570, 4
        %v1593 = vsel %vm1589, %v1573, %v1576
        %v1594 = vsel %vm1592, %v1582, 2102212464
        %v1595 = vsel %vm1591, %v1579, %v1594
        %v1596 = vsel %vm1590, %v1593, %v1595
        %v1597 = vsel %vm1589, %v1576, %v1579
        %v1598 = vsel %vm1592, %v1585, 920167782
        %v1599 = vsel %vm1591, %v1582, %v1598
        %v1600 = vsel %vm1590, %v1597, %v1599
        %v1601 = vsel %vm1589, %v1579, %v1582
        %v1602 = vsel %vm1592, %v1588, 1326507024
        %v1603 = vsel %vm1591, %v1585, %v1602
        %v1604 = vsel %vm1590, %v1601, %v1603
        %v1605 = vshll.u32 %v1565, 8
        %v1606 = vand.u32 %v1605, 65535
        %v1607 = vshrl.u32 %v1605, 16
        %v1608 = vand.u32 %v1604, 65535
        %v1609 = vshrl.u32 %v1604, 16
        %v1610 = vmul.u32 %v1606, %v1608
        %v1611 = vmul.u32 %v1606, %v1609
        %v1612 = vmul.u32 %v1607, %v1608
        %v1613 = vmul.u32 %v1607, %v1609
        %v1614 = vshll.u32 %v1611, 16
        %v1615 = vshrl.u32 %v1611, 16
        %v1616 = vshll.u32 %v1612, 16
        %v1617 = vshrl.u32 %v1612, 16
        %vm1618 = vc.u32 %v1610, %v1614
        %v1619 = vsel %vm1618, 1, 0
        %v1620 = vadd.s32 %v1610, %v1614
        %v1621 = vadd.s32 %v1613, %v1619
        %vm1622 = vc.u32 %v1620, %v1616
        %v1623 = vsel %vm1622, 1, 0
        %v1624 = vadd.s32 %v1620, %v1616
        %v1625 = vadd.s32 %v1621, %v1623
        %v1626 = vadd.s32 %v1625, %v1615
        %v1627 = vadd.s32 %v1626, %v1617
        %v1628 = vand.u32 %v1605, 65535
        %v1629 = vshrl.u32 %v1605, 16
        %v1630 = vand.u32 %v1600, 65535
        %v1631 = vshrl.u32 %v1600, 16
        %v1632 = vmul.u32 %v1628, %v1630
        %v1633 = vmul.u32 %v1628, %v1631
        %v1634 = vmul.u32 %v1629, %v1630
        %v1635 = vmul.u32 %v1629, %v1631
        %v1636 = vshll.u32 %v1633, 16
        %v1637 = vshrl.u32 %v1633, 16
        %v1638 = vshll.u32 %v1634, 16
        %v1639 = vshrl.u32 %v1634, 16
        %vm1640 = vc.u32 %v1632, %v1636
        %v1641 = vsel %vm1640, 1, 0
        %v1642 = vadd.s32 %v1632, %v1636
        %v1643 = vadd.s32 %v1635, %v1641
        %vm1644 = vc.u32 %v1642, %v1638
        %v1645 = vsel %vm1644, 1, 0
        %v1646 = vadd.s32 %v1642, %v1638
        %v1647 = vadd.s32 %v1643, %v1645
        %v1648 = vadd.s32 %v1647, %v1637
        %v1649 = vadd.s32 %v1648, %v1639
        %v1650 = vmul.u32 %v1605, %v1596
        %v1651 = vadd.s32 %v1627, %v1646
        %vm1652 = vc.u32 %v1627, %v1646
        %v1653 = vadd.s32 %v1649, 1
        %v1654 = vsel %vm1652, %v1653, %v1649
        %v1655 = vadd.s32 %v1650, %v1654
        %v1656 = vadd.s32 %v1655, 536870912
        %v1657 = vshrl.u32 %v1656, 30
        %v1658 = vshll.u32 %v1657, 30
        %v1659 = vsub.s32 %v1655, %v1658
        %vm1660 = vcmp.lt.s32.totalorder %v1659, 0
        %v1661 = vsub.s32 0, %v1659
        %v1662 = vsel %vm1660, %v1661, %v1659
        %v1663 = vclz %v1662
        %v1664 = vsub.s32 %v1663, 2
        %vm1665 = vcmp.gt.s32.totalorder 0, %v1664
        %v1666 = vsel %vm1665, 0, %v1664
        %v1667 = vsub.s32 32, %v1666
        %v1668 = vshll.u32 %v1659, %v1666
        %v1669 = vshrl.u32 %v1651, %v1667
        %v1670 = vor.u32 %v1668, %v1669
        %v1671 = vsub.s32 4294967266, %v1666
        %v1672 = vadd.s32 %v1671, 127
        %v1673 = vshll.u32 %v1672, 23
        %v1674 = vor.u32 4788187, %v1673
        %v1675 = vand.u32 2147483647, %v1674
        %v1677 = vcvt.s32.f32 %v1670
        %v1678 = vmul.f32 %v1677, %v1675
        %v1679 = vxor.u32 %v1678, 2147483648
        %v1680 = vsel %vm1559, %v1679, %v1678
        %v1681 = vsub.s32 4, %v1657
        %v1682 = vsel %vm1559, %v1681, %v1657
        %v1683 = vsel %vm1558, %v601, %v1680
        %v1684 = vsel %vm1558, 0, %v1682
        %v1685 = vmul.f32 %v1683, %v1683
        %v1686 = vmul.f32 %v1685, -0.001358992
        %v1687 = vadd.f32 %v1686, 0.041655596
        %v1688 = vmul.f32 %v1685, %v1687
        %v1689 = vadd.f32 %v1688, -0.4999988
        %v1690 = vmul.f32 %v1685, %v1689
        %v1691 = vadd.f32 1.0, %v1690
        %v1692 = vmul.f32 %v1683, %v1683
        %v1693 = vmul.f32 %v1692, -0.00019511016
        %v1694 = vadd.f32 %v1693, 0.008332121
        %v1695 = vmul.f32 %v1692, %v1694
        %v1696 = vadd.f32 %v1695, -0.16666654
        %v1697 = vmul.f32 %v1692, %v1696
        %v1698 = vadd.f32 %v1697, 1.0
        %v1699 = vmul.f32 %v1698, %v1683
        %vm1700 = vweird.f32 %v601
        %v1701 = vadd.s32 %v1684, 3
        %v1702 = vand.u32 %v1701, 3
        %vm1703 = vcmp.lt.s32.totalorder %v1702, 2
        %vm1704 = vcmp.eq.s32.totalorder %v1702, 0
        %v1705 = vxor.u32 %v1699, 2147483648
        %v1706 = vsel %vm1704, %v1691, %v1705
        %vm1707 = vcmp.eq.s32.totalorder %v1702, 2
        %v1708 = vxor.u32 %v1691, 2147483648
        %v1709 = vsel %vm1707, %v1708, %v1699
        %v1710 = vsel %vm1703, %v1706, %v1709
        %v1711 = vsel %vm1700, nan, %v1710
        %v1712 = vand.u32 2147483647, %v602
        %vm1713 = vcmp.le.f32.partialorder %v1712, 0.7853982
        %vm1714 = vcmp.lt.s32.totalorder %v602, 0
        %v1715 = vand.u32 %v602, 2139095040
        %v1716 = vshrl.u32 %v1715, 23
        %v1717 = vsub.s32 %v1716, 127
        %v1718 = vand.u32 2147483647, %v602
        %v1719 = vand.u32 %v1718, 8388607
        %v1720 = vor.u32 %v1719, 8388608
        %v1721 = vsub.s32 0, %v1720
        %v1722 = vadd.s32 %v1717, 1
        %vm1723 = vcmp.gt.s32.totalorder %v1722, 0
        %v1724 = vsel %vm1723, %v1722, 0
        %v1725 = vshrl.u32 %v1724, 5
        %v1726 = vand.u32 %v1724, 31
        %v1727 = vsub.s32 32, %v1726
        %v1728 = vshrl.u32 683565275, %v1727
        %v1729 = vshll.u32 683565275, %v1726
        %v1730 = vshrl.u32 2475754826, %v1727
        %v1731 = vor.u32 %v1729, %v1730
        %v1732 = vshll.u32 2475754826, %v1726
        %v1733 = vshrl.u32 2131351028, %v1727
        %v1734 = vor.u32 %v1732, %v1733
        %v1735 = vshll.u32 2131351028, %v1726
        %v1736 = vshrl.u32 2102212464, %v1727
        %v1737 = vor.u32 %v1735, %v1736
        %v1738 = vshll.u32 2102212464, %v1726
        %v1739 = vshrl.u32 920167782, %v1727
        %v1740 = vor.u32 %v1738, %v1739
        %v1741 = vshll.u32 920167782, %v1726
        %v1742 = vshrl.u32 1326507024, %v1727
        %v1743 = vor.u32 %v1741, %v1742
        %vm1744 = vcmp.lt.s32.totalorder %v1725, 1
        %vm1745 = vcmp.lt.s32.totalorder %v1725, 2
        %vm1746 = vcmp.lt.s32.totalorder %v1725, 3
        %vm1747 = vcmp.lt.s32.totalorder %v1725, 4
        %v1748 = vsel %vm1744, %v1728, %v1731
        %v1749 = vsel %vm1747, %v1737, 2102212464
        %v1750 = vsel %vm1746, %v1734, %v1749
        %v1751 = vsel %vm1745, %v1748, %v1750
        %v1752 = vsel %vm1744, %v1731, %v1734
        %v1753 = vsel %vm1747, %v1740, 920167782
        %v1754 = vsel %vm1746, %v1737, %v1753
        %v1755 = vsel %vm1745, %v1752, %v1754
        %v1756 = vsel %vm1744, %v1734, %v1737
        %v1757 = vsel %vm1747, %v1743, 1326507024
        %v1758 = vsel %vm1746, %v1740, %v1757
        %v1759 = vsel %vm1745, %v1756, %v1758
        %v1760 = vshll.u32 %v1720, 8
        %v1761 = vand.u32 %v1760, 65535
        %v1762 = vshrl.u32 %v1760, 16
        %v1763 = vand.u32 %v1759, 65535
        %v1764 = vshrl.u32 %v1759, 16
        %v1765 = vmul.u32 %v1761, %v1763
        %v1766 = vmul.u32 %v1761, %v1764
        %v1767 = vmul.u32 %v1762, %v1763
        %v1768 = vmul.u32 %v1762, %v1764
        %v1769 = vshll.u32 %v1766, 16
        %v1770 = vshrl.u32 %v1766, 16
        %v1771 = vshll.u32 %v1767, 16
        %v1772 = vshrl.u32 %v1767, 16
        %vm1773 = vc.u32 %v1765, %v1769
        %v1774 = vsel %vm1773, 1, 0
        %v1775 = vadd.s32 %v1765, %v1769
        %v1776 = vadd.s32 %v1768, %v1774
        %vm1777 = vc.u32 %v1775, %v1771
        %v1778 = vsel %vm1777, 1, 0
        %v1779 = vadd.s32 %v1775, %v1771
        %v1780 = vadd.s32 %v1776, %v1778
        %v1781 = vadd.s32 %v1780, %v1770
        %v1782 = vadd.s32 %v1781, %v1772
        %v1783 = vand.u32 %v1760, 65535
        %v1784 = vshrl.u32 %v1760, 16
        %v1785 = vand.u32 %v1755, 65535
        %v1786 = vshrl.u32 %v1755, 16
        %v1787 = vmul.u32 %v1783, %v1785
        %v1788 = vmul.u32 %v1783, %v1786
        %v1789 = vmul.u32 %v1784, %v1785
        %v1790 = vmul.u32 %v1784, %v1786
        %v1791 = vshll.u32 %v1788, 16
        %v1792 = vshrl.u32 %v1788, 16
        %v1793 = vshll.u32 %v1789, 16
        %v1794 = vshrl.u32 %v1789, 16
        %vm1795 = vc.u32 %v1787, %v1791
        %v1796 = vsel %vm1795, 1, 0
        %v1797 = vadd.s32 %v1787, %v1791
        %v1798 = vadd.s32 %v1790, %v1796
        %vm1799 = vc.u32 %v1797, %v1793
        %v1800 = vsel %vm1799, 1, 0
        %v1801 = vadd.s32 %v1797, %v1793
        %v1802 = vadd.s32 %v1798, %v1800
        %v1803 = vadd.s32 %v1802, %v1792
        %v1804 = vadd.s32 %v1803, %v1794
        %v1805 = vmul.u32 %v1760, %v1751
        %v1806 = vadd.s32 %v1782, %v1801
        %vm1807 = vc.u32 %v1782, %v1801
        %v1808 = vadd.s32 %v1804, 1
        %v1809 = vsel %vm1807, %v1808, %v1804
        %v1810 = vadd.s32 %v1805, %v1809
        %v1811 = vadd.s32 %v1810, 536870912
        %v1812 = vshrl.u32 %v1811, 30
        %v1813 = vshll.u32 %v1812, 30
        %v1814 = vsub.s32 %v1810, %v1813
        %vm1815 = vcmp.lt.s32.totalorder %v1814, 0
        %v1816 = vsub.s32 0, %v1814
        %v1817 = vsel %vm1815, %v1816, %v1814
        %v1818 = vclz %v1817
        %v1819 = vsub.s32 %v1818, 2
        %vm1820 = vcmp.gt.s32.totalorder 0, %v1819
        %v1821 = vsel %vm1820, 0, %v1819
        %v1822 = vsub.s32 32, %v1821
        %v1823 = vshll.u32 %v1814, %v1821
        %v1824 = vshrl.u32 %v1806, %v1822
        %v1825 = vor.u32 %v1823, %v1824
        %v1826 = vsub.s32 4294967266, %v1821
        %v1827 = vadd.s32 %v1826, 127
        %v1828 = vshll.u32 %v1827, 23
        %v1829 = vor.u32 4788187, %v1828
        %v1830 = vand.u32 2147483647, %v1829
        %v1832 = vcvt.s32.f32 %v1825
        %v1833 = vmul.f32 %v1832, %v1830
        %v1834 = vxor.u32 %v1833, 2147483648
        %v1835 = vsel %vm1714, %v1834, %v1833
        %v1836 = vsub.s32 4, %v1812
        %v1837 = vsel %vm1714, %v1836, %v1812
        %v1838 = vsel %vm1713, %v602, %v1835
        %v1839 = vsel %vm1713, 0, %v1837
        %v1840 = vmul.f32 %v1838, %v1838
        %v1841 = vmul.f32 %v1840, -0.001358992
        %v1842 = vadd.f32 %v1841, 0.041655596
        %v1843 = vmul.f32 %v1840, %v1842
        %v1844 = vadd.f32 %v1843, -0.4999988
        %v1845 = vmul.f32 %v1840, %v1844
        %v1846 = vadd.f32 1.0, %v1845
        %v1847 = vmul.f32 %v1838, %v1838
        %v1848 = vmul.f32 %v1847, -0.00019511016
        %v1849 = vadd.f32 %v1848, 0.008332121
        %v1850 = vmul.f32 %v1847, %v1849
        %v1851 = vadd.f32 %v1850, -0.16666654
        %v1852 = vmul.f32 %v1847, %v1851
        %v1853 = vadd.f32 %v1852, 1.0
        %v1854 = vmul.f32 %v1853, %v1838
        %vm1855 = vweird.f32 %v602
        %v1856 = vadd.s32 %v1839, 3
        %v1857 = vand.u32 %v1856, 3
        %vm1858 = vcmp.lt.s32.totalorder %v1857, 2
        %vm1859 = vcmp.eq.s32.totalorder %v1857, 0
        %v1860 = vxor.u32 %v1854, 2147483648
        %v1861 = vsel %vm1859, %v1846, %v1860
        %vm1862 = vcmp.eq.s32.totalorder %v1857, 2
        %v1863 = vxor.u32 %v1846, 2147483648
        %v1864 = vsel %vm1862, %v1863, %v1854
        %v1865 = vsel %vm1858, %v1861, %v1864
        %v1866 = vsel %vm1855, nan, %v1865
        %v1867 = vand.u32 2147483647, %v603
        %vm1868 = vcmp.le.f32.partialorder %v1867, 0.7853982
        %vm1869 = vcmp.lt.s32.totalorder %v603, 0
        %v1870 = vand.u32 %v603, 2139095040
        %v1871 = vshrl.u32 %v1870, 23
        %v1872 = vsub.s32 %v1871, 127
        %v1873 = vand.u32 2147483647, %v603
        %v1874 = vand.u32 %v1873, 8388607
        %v1875 = vor.u32 %v1874, 8388608
        %v1876 = vsub.s32 0, %v1875
        %v1877 = vadd.s32 %v1872, 1
        %vm1878 = vcmp.gt.s32.totalorder %v1877, 0
        %v1879 = vsel %vm1878, %v1877, 0
        %v1880 = vshrl.u32 %v1879, 5
        %v1881 = vand.u32 %v1879, 31
        %v1882 = vsub.s32 32, %v1881
        %v1883 = vshrl.u32 683565275, %v1882
        %v1884 = vshll.u32 683565275, %v1881
        %v1885 = vshrl.u32 2475754826, %v1882
        %v1886 = vor.u32 %v1884, %v1885
        %v1887 = vshll.u32 2475754826, %v1881
        %v1888 = vshrl.u32 2131351028, %v1882
        %v1889 = vor.u32 %v1887, %v1888
        %v1890 = vshll.u32 2131351028, %v1881
        %v1891 = vshrl.u32 2102212464, %v1882
        %v1892 = vor.u32 %v1890, %v1891
        %v1893 = vshll.u32 2102212464, %v1881
        %v1894 = vshrl.u32 920167782, %v1882
        %v1895 = vor.u32 %v1893, %v1894
        %v1896 = vshll.u32 920167782, %v1881
        %v1897 = vshrl.u32 1326507024, %v1882
        %v1898 = vor.u32 %v1896, %v1897
        %vm1899 = vcmp.lt.s32.totalorder %v1880, 1
        %vm1900 = vcmp.lt.s32.totalorder %v1880, 2
        %vm1901 = vcmp.lt.s32.totalorder %v1880, 3
        %vm1902 = vcmp.lt.s32.totalorder %v1880, 4
        %v1903 = vsel %vm1899, %v1883, %v1886
        %v1904 = vsel %vm1902, %v1892, 2102212464
        %v1905 = vsel %vm1901, %v1889, %v1904
        %v1906 = vsel %vm1900, %v1903, %v1905
        %v1907 = vsel %vm1899, %v1886, %v1889
        %v1908 = vsel %vm1902, %v1895, 920167782
        %v1909 = vsel %vm1901, %v1892, %v1908
        %v1910 = vsel %vm1900, %v1907, %v1909
        %v1911 = vsel %vm1899, %v1889, %v1892
        %v1912 = vsel %vm1902, %v1898, 1326507024
        %v1913 = vsel %vm1901, %v1895, %v1912
        %v1914 = vsel %vm1900, %v1911, %v1913
        %v1915 = vshll.u32 %v1875, 8
        %v1916 = vand.u32 %v1915, 65535
        %v1917 = vshrl.u32 %v1915, 16
        %v1918 = vand.u32 %v1914, 65535
        %v1919 = vshrl.u32 %v1914, 16
        %v1920 = vmul.u32 %v1916, %v1918
        %v1921 = vmul.u32 %v1916, %v1919
        %v1922 = vmul.u32 %v1917, %v1918
        %v1923 = vmul.u32 %v1917, %v1919
        %v1924 = vshll.u32 %v1921, 16
        %v1925 = vshrl.u32 %v1921, 16
        %v1926 = vshll.u32 %v1922, 16
        %v1927 = vshrl.u32 %v1922, 16
        %vm1928 = vc.u32 %v1920, %v1924
        %v1929 = vsel %vm1928, 1, 0
        %v1930 = vadd.s32 %v1920, %v1924
        %v1931 = vadd.s32 %v1923, %v1929
        %vm1932 = vc.u32 %v1930, %v1926
        %v1933 = vsel %vm1932, 1, 0
        %v1934 = vadd.s32 %v1930, %v1926
        %v1935 = vadd.s32 %v1931, %v1933
        %v1936 = vadd.s32 %v1935, %v1925
        %v1937 = vadd.s32 %v1936, %v1927
        %v1938 = vand.u32 %v1915, 65535
        %v1939 = vshrl.u32 %v1915, 16
        %v1940 = vand.u32 %v1910, 65535
        %v1941 = vshrl.u32 %v1910, 16
        %v1942 = vmul.u32 %v1938, %v1940
        %v1943 = vmul.u32 %v1938, %v1941
        %v1944 = vmul.u32 %v1939, %v1940
        %v1945 = vmul.u32 %v1939, %v1941
        %v1946 = vshll.u32 %v1943, 16
        %v1947 = vshrl.u32 %v1943, 16
        %v1948 = vshll.u32 %v1944, 16
        %v1949 = vshrl.u32 %v1944, 16
        %vm1950 = vc.u32 %v1942, %v1946
        %v1951 = vsel %vm1950, 1, 0
        %v1952 = vadd.s32 %v1942, %v1946
        %v1953 = vadd.s32 %v1945, %v1951
        %vm1954 = vc.u32 %v1952, %v1948
        %v1955 = vsel %vm1954, 1, 0
        %v1956 = vadd.s32 %v1952, %v1948
        %v1957 = vadd.s32 %v1953, %v1955
        %v1958 = vadd.s32 %v1957, %v1947
        %v1959 = vadd.s32 %v1958, %v1949
        %v1960 = vmul.u32 %v1915, %v1906
        %v1961 = vadd.s32 %v1937, %v1956
        %vm1962 = vc.u32 %v1937, %v1956
        %v1963 = vadd.s32 %v1959, 1
        %v1964 = vsel %vm1962, %v1963, %v1959
        %v1965 = vadd.s32 %v1960, %v1964
        %v1966 = vadd.s32 %v1965, 536870912
        %v1967 = vshrl.u32 %v1966, 30
        %v1968 = vshll.u32 %v1967, 30
        %v1969 = vsub.s32 %v1965, %v1968
        %vm1970 = vcmp.lt.s32.totalorder %v1969, 0
        %v1971 = vsub.s32 0, %v1969
        %v1972 = vsel %vm1970, %v1971, %v1969
        %v1973 = vclz %v1972
        %v1974 = vsub.s32 %v1973, 2
        %vm1975 = vcmp.gt.s32.totalorder 0, %v1974
        %v1976 = vsel %vm1975, 0, %v1974
        %v1977 = vsub.s32 32, %v1976
        %v1978 = vshll.u32 %v1969, %v1976
        %v1979 = vshrl.u32 %v1961, %v1977
        %v1980 = vor.u32 %v1978, %v1979
        %v1981 = vsub.s32 4294967266, %v1976
        %v1982 = vadd.s32 %v1981, 127
        %v1983 = vshll.u32 %v1982, 23
        %v1984 = vor.u32 4788187, %v1983
        %v1985 = vand.u32 2147483647, %v1984
        %v1987 = vcvt.s32.f32 %v1980
        %v1988 = vmul.f32 %v1987, %v1985
        %v1989 = vxor.u32 %v1988, 2147483648
        %v1990 = vsel %vm1869, %v1989, %v1988
        %v1991 = vsub.s32 4, %v1967
        %v1992 = vsel %vm1869, %v1991, %v1967
        %v1993 = vsel %vm1868, %v603, %v1990
        %v1994 = vsel %vm1868, 0, %v1992
        %v1995 = vmul.f32 %v1993, %v1993
        %v1996 = vmul.f32 %v1995, -0.001358992
        %v1997 = vadd.f32 %v1996, 0.041655596
        %v1998 = vmul.f32 %v1995, %v1997
        %v1999 = vadd.f32 %v1998, -0.4999988
        %v2000 = vmul.f32 %v1995, %v1999
        %v2001 = vadd.f32 1.0, %v2000
        %v2002 = vmul.f32 %v1993, %v1993
        %v2003 = vmul.f32 %v2002, -0.00019511016
        %v2004 = vadd.f32 %v2003, 0.008332121
        %v2005 = vmul.f32 %v2002, %v2004
        %v2006 = vadd.f32 %v2005, -0.16666654
        %v2007 = vmul.f32 %v2002, %v2006
        %v2008 = vadd.f32 %v2007, 1.0
        %v2009 = vmul.f32 %v2008, %v1993
        %vm2010 = vweird.f32 %v603
        %v2011 = vadd.s32 %v1994, 3
        %v2012 = vand.u32 %v2011, 3
        %vm2013 = vcmp.lt.s32.totalorder %v2012, 2
        %vm2014 = vcmp.eq.s32.totalorder %v2012, 0
        %v2015 = vxor.u32 %v2009, 2147483648
        %v2016 = vsel %vm2014, %v2001, %v2015
        %vm2017 = vcmp.eq.s32.totalorder %v2012, 2
        %v2018 = vxor.u32 %v2001, 2147483648
        %v2019 = vsel %vm2017, %v2018, %v2009
        %v2020 = vsel %vm2013, %v2016, %v2019
        %v2021 = vsel %vm2010, nan, %v2020
        %v2022 = vand.u32 2147483647, %v604
        %vm2023 = vcmp.le.f32.partialorder %v2022, 0.7853982
        %vm2024 = vcmp.lt.s32.totalorder %v604, 0
        %v2025 = vand.u32 %v604, 2139095040
        %v2026 = vshrl.u32 %v2025, 23
        %v2027 = vsub.s32 %v2026, 127
        %v2028 = vand.u32 2147483647, %v604
        %v2029 = vand.u32 %v2028, 8388607
        %v2030 = vor.u32 %v2029, 8388608
        %v2031 = vsub.s32 0, %v2030
        %v2032 = vadd.s32 %v2027, 1
        %vm2033 = vcmp.gt.s32.totalorder %v2032, 0
        %v2034 = vsel %vm2033, %v2032, 0
        %v2035 = vshrl.u32 %v2034, 5
        %v2036 = vand.u32 %v2034, 31
        %v2037 = vsub.s32 32, %v2036
        %v2038 = vshrl.u32 683565275, %v2037
        %v2039 = vshll.u32 683565275, %v2036
        %v2040 = vshrl.u32 2475754826, %v2037
        %v2041 = vor.u32 %v2039, %v2040
        %v2042 = vshll.u32 2475754826, %v2036
        %v2043 = vshrl.u32 2131351028, %v2037
        %v2044 = vor.u32 %v2042, %v2043
        %v2045 = vshll.u32 2131351028, %v2036
        %v2046 = vshrl.u32 2102212464, %v2037
        %v2047 = vor.u32 %v2045, %v2046
        %v2048 = vshll.u32 2102212464, %v2036
        %v2049 = vshrl.u32 920167782, %v2037
        %v2050 = vor.u32 %v2048, %v2049
        %v2051 = vshll.u32 920167782, %v2036
        %v2052 = vshrl.u32 1326507024, %v2037
        %v2053 = vor.u32 %v2051, %v2052
        %vm2054 = vcmp.lt.s32.totalorder %v2035, 1
        %vm2055 = vcmp.lt.s32.totalorder %v2035, 2
        %vm2056 = vcmp.lt.s32.totalorder %v2035, 3
        %vm2057 = vcmp.lt.s32.totalorder %v2035, 4
        %v2058 = vsel %vm2054, %v2038, %v2041
        %v2059 = vsel %vm2057, %v2047, 2102212464
        %v2060 = vsel %vm2056, %v2044, %v2059
        %v2061 = vsel %vm2055, %v2058, %v2060
        %v2062 = vsel %vm2054, %v2041, %v2044
        %v2063 = vsel %vm2057, %v2050, 920167782
        %v2064 = vsel %vm2056, %v2047, %v2063
        %v2065 = vsel %vm2055, %v2062, %v2064
        %v2066 = vsel %vm2054, %v2044, %v2047
        %v2067 = vsel %vm2057, %v2053, 1326507024
        %v2068 = vsel %vm2056, %v2050, %v2067
        %v2069 = vsel %vm2055, %v2066, %v2068
        %v2070 = vshll.u32 %v2030, 8
        %v2071 = vand.u32 %v2070, 65535
        %v2072 = vshrl.u32 %v2070, 16
        %v2073 = vand.u32 %v2069, 65535
        %v2074 = vshrl.u32 %v2069, 16
        %v2075 = vmul.u32 %v2071, %v2073
        %v2076 = vmul.u32 %v2071, %v2074
        %v2077 = vmul.u32 %v2072, %v2073
        %v2078 = vmul.u32 %v2072, %v2074
        %v2079 = vshll.u32 %v2076, 16
        %v2080 = vshrl.u32 %v2076, 16
        %v2081 = vshll.u32 %v2077, 16
        %v2082 = vshrl.u32 %v2077, 16
        %vm2083 = vc.u32 %v2075, %v2079
        %v2084 = vsel %vm2083, 1, 0
        %v2085 = vadd.s32 %v2075, %v2079
        %v2086 = vadd.s32 %v2078, %v2084
        %vm2087 = vc.u32 %v2085, %v2081
        %v2088 = vsel %vm2087, 1, 0
        %v2089 = vadd.s32 %v2085, %v2081
        %v2090 = vadd.s32 %v2086, %v2088
        %v2091 = vadd.s32 %v2090, %v2080
        %v2092 = vadd.s32 %v2091, %v2082
        %v2093 = vand.u32 %v2070, 65535
        %v2094 = vshrl.u32 %v2070, 16
        %v2095 = vand.u32 %v2065, 65535
        %v2096 = vshrl.u32 %v2065, 16
        %v2097 = vmul.u32 %v2093, %v2095
        %v2098 = vmul.u32 %v2093, %v2096
        %v2099 = vmul.u32 %v2094, %v2095
        %v2100 = vmul.u32 %v2094, %v2096
        %v2101 = vshll.u32 %v2098, 16
        %v2102 = vshrl.u32 %v2098, 16
        %v2103 = vshll.u32 %v2099, 16
        %v2104 = vshrl.u32 %v2099, 16
        %vm2105 = vc.u32 %v2097, %v2101
        %v2106 = vsel %vm2105, 1, 0
        %v2107 = vadd.s32 %v2097, %v2101
        %v2108 = vadd.s32 %v2100, %v2106
        %vm2109 = vc.u32 %v2107, %v2103
        %v2110 = vsel %vm2109, 1, 0
        %v2111 = vadd.s32 %v2107, %v2103
        %v2112 = vadd.s32 %v2108, %v2110
        %v2113 = vadd.s32 %v2112, %v2102
        %v2114 = vadd.s32 %v2113, %v2104
        %v2115 = vmul.u32 %v2070, %v2061
        %v2116 = vadd.s32 %v2092, %v2111
        %vm2117 = vc.u32 %v2092, %v2111
        %v2118 = vadd.s32 %v2114, 1
        %v2119 = vsel %vm2117, %v2118, %v2114
        %v2120 = vadd.s32 %v2115, %v2119
        %v2121 = vadd.s32 %v2120, 536870912
        %v2122 = vshrl.u32 %v2121, 30
        %v2123 = vshll.u32 %v2122, 30
        %v2124 = vsub.s32 %v2120, %v2123
        %vm2125 = vcmp.lt.s32.totalorder %v2124, 0
        %v2126 = vsub.s32 0, %v2124
        %v2127 = vsel %vm2125, %v2126, %v2124
        %v2128 = vclz %v2127
        %v2129 = vsub.s32 %v2128, 2
        %vm2130 = vcmp.gt.s32.totalorder 0, %v2129
        %v2131 = vsel %vm2130, 0, %v2129
        %v2132 = vsub.s32 32, %v2131
        %v2133 = vshll.u32 %v2124, %v2131
        %v2134 = vshrl.u32 %v2116, %v2132
        %v2135 = vor.u32 %v2133, %v2134
        %v2136 = vsub.s32 4294967266, %v2131
        %v2137 = vadd.s32 %v2136, 127
        %v2138 = vshll.u32 %v2137, 23
        %v2139 = vor.u32 4788187, %v2138
        %v2140 = vand.u32 2147483647, %v2139
        %v2142 = vcvt.s32.f32 %v2135
        %v2143 = vmul.f32 %v2142, %v2140
        %v2144 = vxor.u32 %v2143, 2147483648
        %v2145 = vsel %vm2024, %v2144, %v2143
        %v2146 = vsub.s32 4, %v2122
        %v2147 = vsel %vm2024, %v2146, %v2122
        %v2148 = vsel %vm2023, %v604, %v2145
        %v2149 = vsel %vm2023, 0, %v2147
        %v2150 = vmul.f32 %v2148, %v2148
        %v2151 = vmul.f32 %v2150, -0.001358992
        %v2152 = vadd.f32 %v2151, 0.041655596
        %v2153 = vmul.f32 %v2150, %v2152
        %v2154 = vadd.f32 %v2153, -0.4999988
        %v2155 = vmul.f32 %v2150, %v2154
        %v2156 = vadd.f32 1.0, %v2155
        %v2157 = vmul.f32 %v2148, %v2148
        %v2158 = vmul.f32 %v2157, -0.00019511016
        %v2159 = vadd.f32 %v2158, 0.008332121
        %v2160 = vmul.f32 %v2157, %v2159
        %v2161 = vadd.f32 %v2160, -0.16666654
        %v2162 = vmul.f32 %v2157, %v2161
        %v2163 = vadd.f32 %v2162, 1.0
        %v2164 = vmul.f32 %v2163, %v2148
        %vm2165 = vweird.f32 %v604
        %v2166 = vadd.s32 %v2149, 3
        %v2167 = vand.u32 %v2166, 3
        %vm2168 = vcmp.lt.s32.totalorder %v2167, 2
        %vm2169 = vcmp.eq.s32.totalorder %v2167, 0
        %v2170 = vxor.u32 %v2164, 2147483648
        %v2171 = vsel %vm2169, %v2156, %v2170
        %vm2172 = vcmp.eq.s32.totalorder %v2167, 2
        %v2173 = vxor.u32 %v2156, 2147483648
        %v2174 = vsel %vm2172, %v2173, %v2164
        %v2175 = vsel %vm2168, %v2171, %v2174
        %v2176 = vsel %vm2165, nan, %v2175
        %v2177 = vand.u32 2147483647, %v605
        %vm2178 = vcmp.le.f32.partialorder %v2177, 0.7853982
        %vm2179 = vcmp.lt.s32.totalorder %v605, 0
        %v2180 = vand.u32 %v605, 2139095040
        %v2181 = vshrl.u32 %v2180, 23
        %v2182 = vsub.s32 %v2181, 127
        %v2183 = vand.u32 2147483647, %v605
        %v2184 = vand.u32 %v2183, 8388607
        %v2185 = vor.u32 %v2184, 8388608
        %v2186 = vsub.s32 0, %v2185
        %v2187 = vadd.s32 %v2182, 1
        %vm2188 = vcmp.gt.s32.totalorder %v2187, 0
        %v2189 = vsel %vm2188, %v2187, 0
        %v2190 = vshrl.u32 %v2189, 5
        %v2191 = vand.u32 %v2189, 31
        %v2192 = vsub.s32 32, %v2191
        %v2193 = vshrl.u32 683565275, %v2192
        %v2194 = vshll.u32 683565275, %v2191
        %v2195 = vshrl.u32 2475754826, %v2192
        %v2196 = vor.u32 %v2194, %v2195
        %v2197 = vshll.u32 2475754826, %v2191
        %v2198 = vshrl.u32 2131351028, %v2192
        %v2199 = vor.u32 %v2197, %v2198
        %v2200 = vshll.u32 2131351028, %v2191
        %v2201 = vshrl.u32 2102212464, %v2192
        %v2202 = vor.u32 %v2200, %v2201
        %v2203 = vshll.u32 2102212464, %v2191
        %v2204 = vshrl.u32 920167782, %v2192
        %v2205 = vor.u32 %v2203, %v2204
        %v2206 = vshll.u32 920167782, %v2191
        %v2207 = vshrl.u32 1326507024, %v2192
        %v2208 = vor.u32 %v2206, %v2207
        %vm2209 = vcmp.lt.s32.totalorder %v2190, 1
        %vm2210 = vcmp.lt.s32.totalorder %v2190, 2
        %vm2211 = vcmp.lt.s32.totalorder %v2190, 3
        %vm2212 = vcmp.lt.s32.totalorder %v2190, 4
        %v2213 = vsel %vm2209, %v2193, %v2196
        %v2214 = vsel %vm2212, %v2202, 2102212464
        %v2215 = vsel %vm2211, %v2199, %v2214
        %v2216 = vsel %vm2210, %v2213, %v2215
        %v2217 = vsel %vm2209, %v2196, %v2199
        %v2218 = vsel %vm2212, %v2205, 920167782
        %v2219 = vsel %vm2211, %v2202, %v2218
        %v2220 = vsel %vm2210, %v2217, %v2219
        %v2221 = vsel %vm2209, %v2199, %v2202
        %v2222 = vsel %vm2212, %v2208, 1326507024
        %v2223 = vsel %vm2211, %v2205, %v2222
        %v2224 = vsel %vm2210, %v2221, %v2223
        %v2225 = vshll.u32 %v2185, 8
        %v2226 = vand.u32 %v2225, 65535
        %v2227 = vshrl.u32 %v2225, 16
        %v2228 = vand.u32 %v2224, 65535
        %v2229 = vshrl.u32 %v2224, 16
        %v2230 = vmul.u32 %v2226, %v2228
        %v2231 = vmul.u32 %v2226, %v2229
        %v2232 = vmul.u32 %v2227, %v2228
        %v2233 = vmul.u32 %v2227, %v2229
        %v2234 = vshll.u32 %v2231, 16
        %v2235 = vshrl.u32 %v2231, 16
        %v2236 = vshll.u32 %v2232, 16
        %v2237 = vshrl.u32 %v2232, 16
        %vm2238 = vc.u32 %v2230, %v2234
        %v2239 = vsel %vm2238, 1, 0
        %v2240 = vadd.s32 %v2230, %v2234
        %v2241 = vadd.s32 %v2233, %v2239
        %vm2242 = vc.u32 %v2240, %v2236
        %v2243 = vsel %vm2242, 1, 0
        %v2244 = vadd.s32 %v2240, %v2236
        %v2245 = vadd.s32 %v2241, %v2243
        %v2246 = vadd.s32 %v2245, %v2235
        %v2247 = vadd.s32 %v2246, %v2237
        %v2248 = vand.u32 %v2225, 65535
        %v2249 = vshrl.u32 %v2225, 16
        %v2250 = vand.u32 %v2220, 65535
        %v2251 = vshrl.u32 %v2220, 16
        %v2252 = vmul.u32 %v2248, %v2250
        %v2253 = vmul.u32 %v2248, %v2251
        %v2254 = vmul.u32 %v2249, %v2250
        %v2255 = vmul.u32 %v2249, %v2251
        %v2256 = vshll.u32 %v2253, 16
        %v2257 = vshrl.u32 %v2253, 16
        %v2258 = vshll.u32 %v2254, 16
        %v2259 = vshrl.u32 %v2254, 16
        %vm2260 = vc.u32 %v2252, %v2256
        %v2261 = vsel %vm2260, 1, 0
        %v2262 = vadd.s32 %v2252, %v2256
        %v2263 = vadd.s32 %v2255, %v2261
        %vm2264 = vc.u32 %v2262, %v2258
        %v2265 = vsel %vm2264, 1, 0
        %v2266 = vadd.s32 %v2262, %v2258
        %v2267 = vadd.s32 %v2263, %v2265
        %v2268 = vadd.s32 %v2267, %v2257
        %v2269 = vadd.s32 %v2268, %v2259
        %v2270 = vmul.u32 %v2225, %v2216
        %v2271 = vadd.s32 %v2247, %v2266
        %vm2272 = vc.u32 %v2247, %v2266
        %v2273 = vadd.s32 %v2269, 1
        %v2274 = vsel %vm2272, %v2273, %v2269
        %v2275 = vadd.s32 %v2270, %v2274
        %v2276 = vadd.s32 %v2275, 536870912
        %v2277 = vshrl.u32 %v2276, 30
        %v2278 = vshll.u32 %v2277, 30
        %v2279 = vsub.s32 %v2275, %v2278
        %vm2280 = vcmp.lt.s32.totalorder %v2279, 0
        %v2281 = vsub.s32 0, %v2279
        %v2282 = vsel %vm2280, %v2281, %v2279
        %v2283 = vclz %v2282
        %v2284 = vsub.s32 %v2283, 2
        %vm2285 = vcmp.gt.s32.totalorder 0, %v2284
        %v2286 = vsel %vm2285, 0, %v2284
        %v2287 = vsub.s32 32, %v2286
        %v2288 = vshll.u32 %v2279, %v2286
        %v2289 = vshrl.u32 %v2271, %v2287
        %v2290 = vor.u32 %v2288, %v2289
        %v2291 = vsub.s32 4294967266, %v2286
        %v2292 = vadd.s32 %v2291, 127
        %v2293 = vshll.u32 %v2292, 23
        %v2294 = vor.u32 4788187, %v2293
        %v2295 = vand.u32 2147483647, %v2294
        %v2297 = vcvt.s32.f32 %v2290
        %v2298 = vmul.f32 %v2297, %v2295
        %v2299 = vxor.u32 %v2298, 2147483648
        %v2300 = vsel %vm2179, %v2299, %v2298
        %v2301 = vsub.s32 4, %v2277
        %v2302 = vsel %vm2179, %v2301, %v2277
        %v2303 = vsel %vm2178, %v605, %v2300
        %v2304 = vsel %vm2178, 0, %v2302
        %v2305 = vmul.f32 %v2303, %v2303
        %v2306 = vmul.f32 %v2305, -0.001358992
        %v2307 = vadd.f32 %v2306, 0.041655596
        %v2308 = vmul.f32 %v2305, %v2307
        %v2309 = vadd.f32 %v2308, -0.4999988
        %v2310 = vmul.f32 %v2305, %v2309
        %v2311 = vadd.f32 1.0, %v2310
        %v2312 = vmul.f32 %v2303, %v2303
        %v2313 = vmul.f32 %v2312, -0.00019511016
        %v2314 = vadd.f32 %v2313, 0.008332121
        %v2315 = vmul.f32 %v2312, %v2314
        %v2316 = vadd.f32 %v2315, -0.16666654
        %v2317 = vmul.f32 %v2312, %v2316
        %v2318 = vadd.f32 %v2317, 1.0
        %v2319 = vmul.f32 %v2318, %v2303
        %vm2320 = vweird.f32 %v605
        %v2321 = vadd.s32 %v2304, 3
        %v2322 = vand.u32 %v2321, 3
        %vm2323 = vcmp.lt.s32.totalorder %v2322, 2
        %vm2324 = vcmp.eq.s32.totalorder %v2322, 0
        %v2325 = vxor.u32 %v2319, 2147483648
        %v2326 = vsel %vm2324, %v2311, %v2325
        %vm2327 = vcmp.eq.s32.totalorder %v2322, 2
        %v2328 = vxor.u32 %v2311, 2147483648
        %v2329 = vsel %vm2327, %v2328, %v2319
        %v2330 = vsel %vm2323, %v2326, %v2329
        %v2331 = vsel %vm2320, nan, %v2330
        %v2332 = vand.u32 2147483647, %v606
        %vm2333 = vcmp.le.f32.partialorder %v2332, 0.7853982
        %vm2334 = vcmp.lt.s32.totalorder %v606, 0
        %v2335 = vand.u32 %v606, 2139095040
        %v2336 = vshrl.u32 %v2335, 23
        %v2337 = vsub.s32 %v2336, 127
        %v2338 = vand.u32 2147483647, %v606
        %v2339 = vand.u32 %v2338, 8388607
        %v2340 = vor.u32 %v2339, 8388608
        %v2341 = vsub.s32 0, %v2340
        %v2342 = vadd.s32 %v2337, 1
        %vm2343 = vcmp.gt.s32.totalorder %v2342, 0
        %v2344 = vsel %vm2343, %v2342, 0
        %v2345 = vshrl.u32 %v2344, 5
        %v2346 = vand.u32 %v2344, 31
        %v2347 = vsub.s32 32, %v2346
        %v2348 = vshrl.u32 683565275, %v2347
        %v2349 = vshll.u32 683565275, %v2346
        %v2350 = vshrl.u32 2475754826, %v2347
        %v2351 = vor.u32 %v2349, %v2350
        %v2352 = vshll.u32 2475754826, %v2346
        %v2353 = vshrl.u32 2131351028, %v2347
        %v2354 = vor.u32 %v2352, %v2353
        %v2355 = vshll.u32 2131351028, %v2346
        %v2356 = vshrl.u32 2102212464, %v2347
        %v2357 = vor.u32 %v2355, %v2356
        %v2358 = vshll.u32 2102212464, %v2346
        %v2359 = vshrl.u32 920167782, %v2347
        %v2360 = vor.u32 %v2358, %v2359
        %v2361 = vshll.u32 920167782, %v2346
        %v2362 = vshrl.u32 1326507024, %v2347
        %v2363 = vor.u32 %v2361, %v2362
        %vm2364 = vcmp.lt.s32.totalorder %v2345, 1
        %vm2365 = vcmp.lt.s32.totalorder %v2345, 2
        %vm2366 = vcmp.lt.s32.totalorder %v2345, 3
        %vm2367 = vcmp.lt.s32.totalorder %v2345, 4
        %v2368 = vsel %vm2364, %v2348, %v2351
        %v2369 = vsel %vm2367, %v2357, 2102212464
        %v2370 = vsel %vm2366, %v2354, %v2369
        %v2371 = vsel %vm2365, %v2368, %v2370
        %v2372 = vsel %vm2364, %v2351, %v2354
        %v2373 = vsel %vm2367, %v2360, 920167782
        %v2374 = vsel %vm2366, %v2357, %v2373
        %v2375 = vsel %vm2365, %v2372, %v2374
        %v2376 = vsel %vm2364, %v2354, %v2357
        %v2377 = vsel %vm2367, %v2363, 1326507024
        %v2378 = vsel %vm2366, %v2360, %v2377
        %v2379 = vsel %vm2365, %v2376, %v2378
        %v2380 = vshll.u32 %v2340, 8
        %v2381 = vand.u32 %v2380, 65535
        %v2382 = vshrl.u32 %v2380, 16
        %v2383 = vand.u32 %v2379, 65535
        %v2384 = vshrl.u32 %v2379, 16
        %v2385 = vmul.u32 %v2381, %v2383
        %v2386 = vmul.u32 %v2381, %v2384
        %v2387 = vmul.u32 %v2382, %v2383
        %v2388 = vmul.u32 %v2382, %v2384
        %v2389 = vshll.u32 %v2386, 16
        %v2390 = vshrl.u32 %v2386, 16
        %v2391 = vshll.u32 %v2387, 16
        %v2392 = vshrl.u32 %v2387, 16
        %vm2393 = vc.u32 %v2385, %v2389
        %v2394 = vsel %vm2393, 1, 0
        %v2395 = vadd.s32 %v2385, %v2389
        %v2396 = vadd.s32 %v2388, %v2394
        %vm2397 = vc.u32 %v2395, %v2391
        %v2398 = vsel %vm2397, 1, 0
        %v2399 = vadd.s32 %v2395, %v2391
        %v2400 = vadd.s32 %v2396, %v2398
        %v2401 = vadd.s32 %v2400, %v2390
        %v2402 = vadd.s32 %v2401, %v2392
        %v2403 = vand.u32 %v2380, 65535
        %v2404 = vshrl.u32 %v2380, 16
        %v2405 = vand.u32 %v2375, 65535
        %v2406 = vshrl.u32 %v2375, 16
        %v2407 = vmul.u32 %v2403, %v2405
        %v2408 = vmul.u32 %v2403, %v2406
        %v2409 = vmul.u32 %v2404, %v2405
        %v2410 = vmul.u32 %v2404, %v2406
        %v2411 = vshll.u32 %v2408, 16
        %v2412 = vshrl.u32 %v2408, 16
        %v2413 = vshll.u32 %v2409, 16
        %v2414 = vshrl.u32 %v2409, 16
        %vm2415 = vc.u32 %v2407, %v2411
        %v2416 = vsel %vm2415, 1, 0
        %v2417 = vadd.s32 %v2407, %v2411
        %v2418 = vadd.s32 %v2410, %v2416
        %vm2419 = vc.u32 %v2417, %v2413
        %v2420 = vsel %vm2419, 1, 0
        %v2421 = vadd.s32 %v2417, %v2413
        %v2422 = vadd.s32 %v2418, %v2420
        %v2423 = vadd.s32 %v2422, %v2412
        %v2424 = vadd.s32 %v2423, %v2414
        %v2425 = vmul.u32 %v2380, %v2371
        %v2426 = vadd.s32 %v2402, %v2421
        %vm2427 = vc.u32 %v2402, %v2421
        %v2428 = vadd.s32 %v2424, 1
        %v2429 = vsel %vm2427, %v2428, %v2424
        %v2430 = vadd.s32 %v2425, %v2429
        %v2431 = vadd.s32 %v2430, 536870912
        %v2432 = vshrl.u32 %v2431, 30
        %v2433 = vshll.u32 %v2432, 30
        %v2434 = vsub.s32 %v2430, %v2433
        %vm2435 = vcmp.lt.s32.totalorder %v2434, 0
        %v2436 = vsub.s32 0, %v2434
        %v2437 = vsel %vm2435, %v2436, %v2434
        %v2438 = vclz %v2437
        %v2439 = vsub.s32 %v2438, 2
        %vm2440 = vcmp.gt.s32.totalorder 0, %v2439
        %v2441 = vsel %vm2440, 0, %v2439
        %v2442 = vsub.s32 32, %v2441
        %v2443 = vshll.u32 %v2434, %v2441
        %v2444 = vshrl.u32 %v2426, %v2442
        %v2445 = vor.u32 %v2443, %v2444
        %v2446 = vsub.s32 4294967266, %v2441
        %v2447 = vadd.s32 %v2446, 127
        %v2448 = vshll.u32 %v2447, 23
        %v2449 = vor.u32 4788187, %v2448
        %v2450 = vand.u32 2147483647, %v2449
        %v2452 = vcvt.s32.f32 %v2445
        %v2453 = vmul.f32 %v2452, %v2450
        %v2454 = vxor.u32 %v2453, 2147483648
        %v2455 = vsel %vm2334, %v2454, %v2453
        %v2456 = vsub.s32 4, %v2432
        %v2457 = vsel %vm2334, %v2456, %v2432
        %v2458 = vsel %vm2333, %v606, %v2455
        %v2459 = vsel %vm2333, 0, %v2457
        %v2460 = vmul.f32 %v2458, %v2458
        %v2461 = vmul.f32 %v2460, -0.001358992
        %v2462 = vadd.f32 %v2461, 0.041655596
        %v2463 = vmul.f32 %v2460, %v2462
        %v2464 = vadd.f32 %v2463, -0.4999988
        %v2465 = vmul.f32 %v2460, %v2464
        %v2466 = vadd.f32 1.0, %v2465
        %v2467 = vmul.f32 %v2458, %v2458
        %v2468 = vmul.f32 %v2467, -0.00019511016
        %v2469 = vadd.f32 %v2468, 0.008332121
        %v2470 = vmul.f32 %v2467, %v2469
        %v2471 = vadd.f32 %v2470, -0.16666654
        %v2472 = vmul.f32 %v2467, %v2471
        %v2473 = vadd.f32 %v2472, 1.0
        %v2474 = vmul.f32 %v2473, %v2458
        %vm2475 = vweird.f32 %v606
        %v2476 = vadd.s32 %v2459, 3
        %v2477 = vand.u32 %v2476, 3
        %vm2478 = vcmp.lt.s32.totalorder %v2477, 2
        %vm2479 = vcmp.eq.s32.totalorder %v2477, 0
        %v2480 = vxor.u32 %v2474, 2147483648
        %v2481 = vsel %vm2479, %v2466, %v2480
        %vm2482 = vcmp.eq.s32.totalorder %v2477, 2
        %v2483 = vxor.u32 %v2466, 2147483648
        %v2484 = vsel %vm2482, %v2483, %v2474
        %v2485 = vsel %vm2478, %v2481, %v2484
        %v2486 = vsel %vm2475, nan, %v2485
        %v2487 = vand.u32 2147483647, %v607
        %vm2488 = vcmp.le.f32.partialorder %v2487, 0.7853982
        %vm2489 = vcmp.lt.s32.totalorder %v607, 0
        %v2490 = vand.u32 %v607, 2139095040
        %v2491 = vshrl.u32 %v2490, 23
        %v2492 = vsub.s32 %v2491, 127
        %v2493 = vand.u32 2147483647, %v607
        %v2494 = vand.u32 %v2493, 8388607
        %v2495 = vor.u32 %v2494, 8388608
        %v2496 = vsub.s32 0, %v2495
        %v2497 = vadd.s32 %v2492, 1
        %vm2498 = vcmp.gt.s32.totalorder %v2497, 0
        %v2499 = vsel %vm2498, %v2497, 0
        %v2500 = vshrl.u32 %v2499, 5
        %v2501 = vand.u32 %v2499, 31
        %v2502 = vsub.s32 32, %v2501
        %v2503 = vshrl.u32 683565275, %v2502
        %v2504 = vshll.u32 683565275, %v2501
        %v2505 = vshrl.u32 2475754826, %v2502
        %v2506 = vor.u32 %v2504, %v2505
        %v2507 = vshll.u32 2475754826, %v2501
        %v2508 = vshrl.u32 2131351028, %v2502
        %v2509 = vor.u32 %v2507, %v2508
        %v2510 = vshll.u32 2131351028, %v2501
        %v2511 = vshrl.u32 2102212464, %v2502
        %v2512 = vor.u32 %v2510, %v2511
        %v2513 = vshll.u32 2102212464, %v2501
        %v2514 = vshrl.u32 920167782, %v2502
        %v2515 = vor.u32 %v2513, %v2514
        %v2516 = vshll.u32 920167782, %v2501
        %v2517 = vshrl.u32 1326507024, %v2502
        %v2518 = vor.u32 %v2516, %v2517
        %vm2519 = vcmp.lt.s32.totalorder %v2500, 1
        %vm2520 = vcmp.lt.s32.totalorder %v2500, 2
        %vm2521 = vcmp.lt.s32.totalorder %v2500, 3
        %vm2522 = vcmp.lt.s32.totalorder %v2500, 4
        %v2523 = vsel %vm2519, %v2503, %v2506
        %v2524 = vsel %vm2522, %v2512, 2102212464
        %v2525 = vsel %vm2521, %v2509, %v2524
        %v2526 = vsel %vm2520, %v2523, %v2525
        %v2527 = vsel %vm2519, %v2506, %v2509
        %v2528 = vsel %vm2522, %v2515, 920167782
        %v2529 = vsel %vm2521, %v2512, %v2528
        %v2530 = vsel %vm2520, %v2527, %v2529
        %v2531 = vsel %vm2519, %v2509, %v2512
        %v2532 = vsel %vm2522, %v2518, 1326507024
        %v2533 = vsel %vm2521, %v2515, %v2532
        %v2534 = vsel %vm2520, %v2531, %v2533
        %v2535 = vshll.u32 %v2495, 8
        %v2536 = vand.u32 %v2535, 65535
        %v2537 = vshrl.u32 %v2535, 16
        %v2538 = vand.u32 %v2534, 65535
        %v2539 = vshrl.u32 %v2534, 16
        %v2540 = vmul.u32 %v2536, %v2538
        %v2541 = vmul.u32 %v2536, %v2539
        %v2542 = vmul.u32 %v2537, %v2538
        %v2543 = vmul.u32 %v2537, %v2539
        %v2544 = vshll.u32 %v2541, 16
        %v2545 = vshrl.u32 %v2541, 16
        %v2546 = vshll.u32 %v2542, 16
        %v2547 = vshrl.u32 %v2542, 16
        %vm2548 = vc.u32 %v2540, %v2544
        %v2549 = vsel %vm2548, 1, 0
        %v2550 = vadd.s32 %v2540, %v2544
        %v2551 = vadd.s32 %v2543, %v2549
        %vm2552 = vc.u32 %v2550, %v2546
        %v2553 = vsel %vm2552, 1, 0
        %v2554 = vadd.s32 %v2550, %v2546
        %v2555 = vadd.s32 %v2551, %v2553
        %v2556 = vadd.s32 %v2555, %v2545
        %v2557 = vadd.s32 %v2556, %v2547
        %v2558 = vand.u32 %v2535, 65535
        %v2559 = vshrl.u32 %v2535, 16
        %v2560 = vand.u32 %v2530, 65535
        %v2561 = vshrl.u32 %v2530, 16
        %v2562 = vmul.u32 %v2558, %v2560
        %v2563 = vmul.u32 %v2558, %v2561
        %v2564 = vmul.u32 %v2559, %v2560
        %v2565 = vmul.u32 %v2559, %v2561
        %v2566 = vshll.u32 %v2563, 16
        %v2567 = vshrl.u32 %v2563, 16
        %v2568 = vshll.u32 %v2564, 16
        %v2569 = vshrl.u32 %v2564, 16
        %vm2570 = vc.u32 %v2562, %v2566
        %v2571 = vsel %vm2570, 1, 0
        %v2572 = vadd.s32 %v2562, %v2566
        %v2573 = vadd.s32 %v2565, %v2571
        %vm2574 = vc.u32 %v2572, %v2568
        %v2575 = vsel %vm2574, 1, 0
        %v2576 = vadd.s32 %v2572, %v2568
        %v2577 = vadd.s32 %v2573, %v2575
        %v2578 = vadd.s32 %v2577, %v2567
        %v2579 = vadd.s32 %v2578, %v2569
        %v2580 = vmul.u32 %v2535, %v2526
        %v2581 = vadd.s32 %v2557, %v2576
        %vm2582 = vc.u32 %v2557, %v2576
        %v2583 = vadd.s32 %v2579, 1
        %v2584 = vsel %vm2582, %v2583, %v2579
        %v2585 = vadd.s32 %v2580, %v2584
        %v2586 = vadd.s32 %v2585, 536870912
        %v2587 = vshrl.u32 %v2586, 30
        %v2588 = vshll.u32 %v2587, 30
        %v2589 = vsub.s32 %v2585, %v2588
        %vm2590 = vcmp.lt.s32.totalorder %v2589, 0
        %v2591 = vsub.s32 0, %v2589
        %v2592 = vsel %vm2590, %v2591, %v2589
        %v2593 = vclz %v2592
        %v2594 = vsub.s32 %v2593, 2
        %vm2595 = vcmp.gt.s32.totalorder 0, %v2594
        %v2596 = vsel %vm2595, 0, %v2594
        %v2597 = vsub.s32 32, %v2596
        %v2598 = vshll.u32 %v2589, %v2596
        %v2599 = vshrl.u32 %v2581, %v2597
        %v2600 = vor.u32 %v2598, %v2599
        %v2601 = vsub.s32 4294967266, %v2596
        %v2602 = vadd.s32 %v2601, 127
        %v2603 = vshll.u32 %v2602, 23
        %v2604 = vor.u32 4788187, %v2603
        %v2605 = vand.u32 2147483647, %v2604
        %v2607 = vcvt.s32.f32 %v2600
        %v2608 = vmul.f32 %v2607, %v2605
        %v2609 = vxor.u32 %v2608, 2147483648
        %v2610 = vsel %vm2489, %v2609, %v2608
        %v2611 = vsub.s32 4, %v2587
        %v2612 = vsel %vm2489, %v2611, %v2587
        %v2613 = vsel %vm2488, %v607, %v2610
        %v2614 = vsel %vm2488, 0, %v2612
        %v2615 = vmul.f32 %v2613, %v2613
        %v2616 = vmul.f32 %v2615, -0.001358992
        %v2617 = vadd.f32 %v2616, 0.041655596
        %v2618 = vmul.f32 %v2615, %v2617
        %v2619 = vadd.f32 %v2618, -0.4999988
        %v2620 = vmul.f32 %v2615, %v2619
        %v2621 = vadd.f32 1.0, %v2620
        %v2622 = vmul.f32 %v2613, %v2613
        %v2623 = vmul.f32 %v2622, -0.00019511016
        %v2624 = vadd.f32 %v2623, 0.008332121
        %v2625 = vmul.f32 %v2622, %v2624
        %v2626 = vadd.f32 %v2625, -0.16666654
        %v2627 = vmul.f32 %v2622, %v2626
        %v2628 = vadd.f32 %v2627, 1.0
        %v2629 = vmul.f32 %v2628, %v2613
        %vm2630 = vweird.f32 %v607
        %v2631 = vadd.s32 %v2614, 3
        %v2632 = vand.u32 %v2631, 3
        %vm2633 = vcmp.lt.s32.totalorder %v2632, 2
        %vm2634 = vcmp.eq.s32.totalorder %v2632, 0
        %v2635 = vxor.u32 %v2629, 2147483648
        %v2636 = vsel %vm2634, %v2621, %v2635
        %vm2637 = vcmp.eq.s32.totalorder %v2632, 2
        %v2638 = vxor.u32 %v2621, 2147483648
        %v2639 = vsel %vm2637, %v2638, %v2629
        %v2640 = vsel %vm2633, %v2636, %v2639
        %v2641 = vsel %vm2630, nan, %v2640
        %v2642 = vand.u32 2147483647, %v608
        %vm2643 = vcmp.le.f32.partialorder %v2642, 0.7853982
        %vm2644 = vcmp.lt.s32.totalorder %v608, 0
        %v2645 = vand.u32 %v608, 2139095040
        %v2646 = vshrl.u32 %v2645, 23
        %v2647 = vsub.s32 %v2646, 127
        %v2648 = vand.u32 2147483647, %v608
        %v2649 = vand.u32 %v2648, 8388607
        %v2650 = vor.u32 %v2649, 8388608
        %v2651 = vsub.s32 0, %v2650
        %v2652 = vadd.s32 %v2647, 1
        %vm2653 = vcmp.gt.s32.totalorder %v2652, 0
        %v2654 = vsel %vm2653, %v2652, 0
        %v2655 = vshrl.u32 %v2654, 5
        %v2656 = vand.u32 %v2654, 31
        %v2657 = vsub.s32 32, %v2656
        %v2658 = vshrl.u32 683565275, %v2657
        %v2659 = vshll.u32 683565275, %v2656
        %v2660 = vshrl.u32 2475754826, %v2657
        %v2661 = vor.u32 %v2659, %v2660
        %v2662 = vshll.u32 2475754826, %v2656
        %v2663 = vshrl.u32 2131351028, %v2657
        %v2664 = vor.u32 %v2662, %v2663
        %v2665 = vshll.u32 2131351028, %v2656
        %v2666 = vshrl.u32 2102212464, %v2657
        %v2667 = vor.u32 %v2665, %v2666
        %v2668 = vshll.u32 2102212464, %v2656
        %v2669 = vshrl.u32 920167782, %v2657
        %v2670 = vor.u32 %v2668, %v2669
        %v2671 = vshll.u32 920167782, %v2656
        %v2672 = vshrl.u32 1326507024, %v2657
        %v2673 = vor.u32 %v2671, %v2672
        %vm2674 = vcmp.lt.s32.totalorder %v2655, 1
        %vm2675 = vcmp.lt.s32.totalorder %v2655, 2
        %vm2676 = vcmp.lt.s32.totalorder %v2655, 3
        %vm2677 = vcmp.lt.s32.totalorder %v2655, 4
        %v2678 = vsel %vm2674, %v2658, %v2661
        %v2679 = vsel %vm2677, %v2667, 2102212464
        %v2680 = vsel %vm2676, %v2664, %v2679
        %v2681 = vsel %vm2675, %v2678, %v2680
        %v2682 = vsel %vm2674, %v2661, %v2664
        %v2683 = vsel %vm2677, %v2670, 920167782
        %v2684 = vsel %vm2676, %v2667, %v2683
        %v2685 = vsel %vm2675, %v2682, %v2684
        %v2686 = vsel %vm2674, %v2664, %v2667
        %v2687 = vsel %vm2677, %v2673, 1326507024
        %v2688 = vsel %vm2676, %v2670, %v2687
        %v2689 = vsel %vm2675, %v2686, %v2688
        %v2690 = vshll.u32 %v2650, 8
        %v2691 = vand.u32 %v2690, 65535
        %v2692 = vshrl.u32 %v2690, 16
        %v2693 = vand.u32 %v2689, 65535
        %v2694 = vshrl.u32 %v2689, 16
        %v2695 = vmul.u32 %v2691, %v2693
        %v2696 = vmul.u32 %v2691, %v2694
        %v2697 = vmul.u32 %v2692, %v2693
        %v2698 = vmul.u32 %v2692, %v2694
        %v2699 = vshll.u32 %v2696, 16
        %v2700 = vshrl.u32 %v2696, 16
        %v2701 = vshll.u32 %v2697, 16
        %v2702 = vshrl.u32 %v2697, 16
        %vm2703 = vc.u32 %v2695, %v2699
        %v2704 = vsel %vm2703, 1, 0
        %v2705 = vadd.s32 %v2695, %v2699
        %v2706 = vadd.s32 %v2698, %v2704
        %vm2707 = vc.u32 %v2705, %v2701
        %v2708 = vsel %vm2707, 1, 0
        %v2709 = vadd.s32 %v2705, %v2701
        %v2710 = vadd.s32 %v2706, %v2708
        %v2711 = vadd.s32 %v2710, %v2700
        %v2712 = vadd.s32 %v2711, %v2702
        %v2713 = vand.u32 %v2690, 65535
        %v2714 = vshrl.u32 %v2690, 16
        %v2715 = vand.u32 %v2685, 65535
        %v2716 = vshrl.u32 %v2685, 16
        %v2717 = vmul.u32 %v2713, %v2715
        %v2718 = vmul.u32 %v2713, %v2716
        %v2719 = vmul.u32 %v2714, %v2715
        %v2720 = vmul.u32 %v2714, %v2716
        %v2721 = vshll.u32 %v2718, 16
        %v2722 = vshrl.u32 %v2718, 16
        %v2723 = vshll.u32 %v2719, 16
        %v2724 = vshrl.u32 %v2719, 16
        %vm2725 = vc.u32 %v2717, %v2721
        %v2726 = vsel %vm2725, 1, 0
        %v2727 = vadd.s32 %v2717, %v2721
        %v2728 = vadd.s32 %v2720, %v2726
        %vm2729 = vc.u32 %v2727, %v2723
        %v2730 = vsel %vm2729, 1, 0
        %v2731 = vadd.s32 %v2727, %v2723
        %v2732 = vadd.s32 %v2728, %v2730
        %v2733 = vadd.s32 %v2732, %v2722
        %v2734 = vadd.s32 %v2733, %v2724
        %v2735 = vmul.u32 %v2690, %v2681
        %v2736 = vadd.s32 %v2712, %v2731
        %vm2737 = vc.u32 %v2712, %v2731
        %v2738 = vadd.s32 %v2734, 1
        %v2739 = vsel %vm2737, %v2738, %v2734
        %v2740 = vadd.s32 %v2735, %v2739
        %v2741 = vadd.s32 %v2740, 536870912
        %v2742 = vshrl.u32 %v2741, 30
        %v2743 = vshll.u32 %v2742, 30
        %v2744 = vsub.s32 %v2740, %v2743
        %vm2745 = vcmp.lt.s32.totalorder %v2744, 0
        %v2746 = vsub.s32 0, %v2744
        %v2747 = vsel %vm2745, %v2746, %v2744
        %v2748 = vclz %v2747
        %v2749 = vsub.s32 %v2748, 2
        %vm2750 = vcmp.gt.s32.totalorder 0, %v2749
        %v2751 = vsel %vm2750, 0, %v2749
        %v2752 = vsub.s32 32, %v2751
        %v2753 = vshll.u32 %v2744, %v2751
        %v2754 = vshrl.u32 %v2736, %v2752
        %v2755 = vor.u32 %v2753, %v2754
        %v2756 = vsub.s32 4294967266, %v2751
        %v2757 = vadd.s32 %v2756, 127
        %v2758 = vshll.u32 %v2757, 23
        %v2759 = vor.u32 4788187, %v2758
        %v2760 = vand.u32 2147483647, %v2759
        %v2762 = vcvt.s32.f32 %v2755
        %v2763 = vmul.f32 %v2762, %v2760
        %v2764 = vxor.u32 %v2763, 2147483648
        %v2765 = vsel %vm2644, %v2764, %v2763
        %v2766 = vsub.s32 4, %v2742
        %v2767 = vsel %vm2644, %v2766, %v2742
        %v2768 = vsel %vm2643, %v608, %v2765
        %v2769 = vsel %vm2643, 0, %v2767
        %v2770 = vmul.f32 %v2768, %v2768
        %v2771 = vmul.f32 %v2770, -0.001358992
        %v2772 = vadd.f32 %v2771, 0.041655596
        %v2773 = vmul.f32 %v2770, %v2772
        %v2774 = vadd.f32 %v2773, -0.4999988
        %v2775 = vmul.f32 %v2770, %v2774
        %v2776 = vadd.f32 1.0, %v2775
        %v2777 = vmul.f32 %v2768, %v2768
        %v2778 = vmul.f32 %v2777, -0.00019511016
        %v2779 = vadd.f32 %v2778, 0.008332121
        %v2780 = vmul.f32 %v2777, %v2779
        %v2781 = vadd.f32 %v2780, -0.16666654
        %v2782 = vmul.f32 %v2777, %v2781
        %v2783 = vadd.f32 %v2782, 1.0
        %v2784 = vmul.f32 %v2783, %v2768
        %vm2785 = vweird.f32 %v608
        %v2786 = vadd.s32 %v2769, 3
        %v2787 = vand.u32 %v2786, 3
        %vm2788 = vcmp.lt.s32.totalorder %v2787, 2
        %vm2789 = vcmp.eq.s32.totalorder %v2787, 0
        %v2790 = vxor.u32 %v2784, 2147483648
        %v2791 = vsel %vm2789, %v2776, %v2790
        %vm2792 = vcmp.eq.s32.totalorder %v2787, 2
        %v2793 = vxor.u32 %v2776, 2147483648
        %v2794 = vsel %vm2792, %v2793, %v2784
        %v2795 = vsel %vm2788, %v2791, %v2794
        %v2796 = vsel %vm2785, nan, %v2795
        %v2797 = vand.u32 2147483647, %v609
        %vm2798 = vcmp.le.f32.partialorder %v2797, 0.7853982
        %vm2799 = vcmp.lt.s32.totalorder %v609, 0
        %v2800 = vand.u32 %v609, 2139095040
        %v2801 = vshrl.u32 %v2800, 23
        %v2802 = vsub.s32 %v2801, 127
        %v2803 = vand.u32 2147483647, %v609
        %v2804 = vand.u32 %v2803, 8388607
        %v2805 = vor.u32 %v2804, 8388608
        %v2806 = vsub.s32 0, %v2805
        %v2807 = vadd.s32 %v2802, 1
        %vm2808 = vcmp.gt.s32.totalorder %v2807, 0
        %v2809 = vsel %vm2808, %v2807, 0
        %v2810 = vshrl.u32 %v2809, 5
        %v2811 = vand.u32 %v2809, 31
        %v2812 = vsub.s32 32, %v2811
        %v2813 = vshrl.u32 683565275, %v2812
        %v2814 = vshll.u32 683565275, %v2811
        %v2815 = vshrl.u32 2475754826, %v2812
        %v2816 = vor.u32 %v2814, %v2815
        %v2817 = vshll.u32 2475754826, %v2811
        %v2818 = vshrl.u32 2131351028, %v2812
        %v2819 = vor.u32 %v2817, %v2818
        %v2820 = vshll.u32 2131351028, %v2811
        %v2821 = vshrl.u32 2102212464, %v2812
        %v2822 = vor.u32 %v2820, %v2821
        %v2823 = vshll.u32 2102212464, %v2811
        %v2824 = vshrl.u32 920167782, %v2812
        %v2825 = vor.u32 %v2823, %v2824
        %v2826 = vshll.u32 920167782, %v2811
        %v2827 = vshrl.u32 1326507024, %v2812
        %v2828 = vor.u32 %v2826, %v2827
        %vm2829 = vcmp.lt.s32.totalorder %v2810, 1
        %vm2830 = vcmp.lt.s32.totalorder %v2810, 2
        %vm2831 = vcmp.lt.s32.totalorder %v2810, 3
        %vm2832 = vcmp.lt.s32.totalorder %v2810, 4
        %v2833 = vsel %vm2829, %v2813, %v2816
        %v2834 = vsel %vm2832, %v2822, 2102212464
        %v2835 = vsel %vm2831, %v2819, %v2834
        %v2836 = vsel %vm2830, %v2833, %v2835
        %v2837 = vsel %vm2829, %v2816, %v2819
        %v2838 = vsel %vm2832, %v2825, 920167782
        %v2839 = vsel %vm2831, %v2822, %v2838
        %v2840 = vsel %vm2830, %v2837, %v2839
        %v2841 = vsel %vm2829, %v2819, %v2822
        %v2842 = vsel %vm2832, %v2828, 1326507024
        %v2843 = vsel %vm2831, %v2825, %v2842
        %v2844 = vsel %vm2830, %v2841, %v2843
        %v2845 = vshll.u32 %v2805, 8
        %v2846 = vand.u32 %v2845, 65535
        %v2847 = vshrl.u32 %v2845, 16
        %v2848 = vand.u32 %v2844, 65535
        %v2849 = vshrl.u32 %v2844, 16
        %v2850 = vmul.u32 %v2846, %v2848
        %v2851 = vmul.u32 %v2846, %v2849
        %v2852 = vmul.u32 %v2847, %v2848
        %v2853 = vmul.u32 %v2847, %v2849
        %v2854 = vshll.u32 %v2851, 16
        %v2855 = vshrl.u32 %v2851, 16
        %v2856 = vshll.u32 %v2852, 16
        %v2857 = vshrl.u32 %v2852, 16
        %vm2858 = vc.u32 %v2850, %v2854
        %v2859 = vsel %vm2858, 1, 0
        %v2860 = vadd.s32 %v2850, %v2854
        %v2861 = vadd.s32 %v2853, %v2859
        %vm2862 = vc.u32 %v2860, %v2856
        %v2863 = vsel %vm2862, 1, 0
        %v2864 = vadd.s32 %v2860, %v2856
        %v2865 = vadd.s32 %v2861, %v2863
        %v2866 = vadd.s32 %v2865, %v2855
        %v2867 = vadd.s32 %v2866, %v2857
        %v2868 = vand.u32 %v2845, 65535
        %v2869 = vshrl.u32 %v2845, 16
        %v2870 = vand.u32 %v2840, 65535
        %v2871 = vshrl.u32 %v2840, 16
        %v2872 = vmul.u32 %v2868, %v2870
        %v2873 = vmul.u32 %v2868, %v2871
        %v2874 = vmul.u32 %v2869, %v2870
        %v2875 = vmul.u32 %v2869, %v2871
        %v2876 = vshll.u32 %v2873, 16
        %v2877 = vshrl.u32 %v2873, 16
        %v2878 = vshll.u32 %v2874, 16
        %v2879 = vshrl.u32 %v2874, 16
        %vm2880 = vc.u32 %v2872, %v2876
        %v2881 = vsel %vm2880, 1, 0
        %v2882 = vadd.s32 %v2872, %v2876
        %v2883 = vadd.s32 %v2875, %v2881
        %vm2884 = vc.u32 %v2882, %v2878
        %v2885 = vsel %vm2884, 1, 0
        %v2886 = vadd.s32 %v2882, %v2878
        %v2887 = vadd.s32 %v2883, %v2885
        %v2888 = vadd.s32 %v2887, %v2877
        %v2889 = vadd.s32 %v2888, %v2879
        %v2890 = vmul.u32 %v2845, %v2836
        %v2891 = vadd.s32 %v2867, %v2886
        %vm2892 = vc.u32 %v2867, %v2886
        %v2893 = vadd.s32 %v2889, 1
        %v2894 = vsel %vm2892, %v2893, %v2889
        %v2895 = vadd.s32 %v2890, %v2894
        %v2896 = vadd.s32 %v2895, 536870912
        %v2897 = vshrl.u32 %v2896, 30
        %v2898 = vshll.u32 %v2897, 30
        %v2899 = vsub.s32 %v2895, %v2898
        %vm2900 = vcmp.lt.s32.totalorder %v2899, 0
        %v2901 = vsub.s32 0, %v2899
        %v2902 = vsel %vm2900, %v2901, %v2899
        %v2903 = vclz %v2902
        %v2904 = vsub.s32 %v2903, 2
        %vm2905 = vcmp.gt.s32.totalorder 0, %v2904
        %v2906 = vsel %vm2905, 0, %v2904
        %v2907 = vsub.s32 32, %v2906
        %v2908 = vshll.u32 %v2899, %v2906
        %v2909 = vshrl.u32 %v2891, %v2907
        %v2910 = vor.u32 %v2908, %v2909
        %v2911 = vsub.s32 4294967266, %v2906
        %v2912 = vadd.s32 %v2911, 127
        %v2913 = vshll.u32 %v2912, 23
        %v2914 = vor.u32 4788187, %v2913
        %v2915 = vand.u32 2147483647, %v2914
        %v2917 = vcvt.s32.f32 %v2910
        %v2918 = vmul.f32 %v2917, %v2915
        %v2919 = vxor.u32 %v2918, 2147483648
        %v2920 = vsel %vm2799, %v2919, %v2918
        %v2921 = vsub.s32 4, %v2897
        %v2922 = vsel %vm2799, %v2921, %v2897
        %v2923 = vsel %vm2798, %v609, %v2920
        %v2924 = vsel %vm2798, 0, %v2922
        %v2925 = vmul.f32 %v2923, %v2923
        %v2926 = vmul.f32 %v2925, -0.001358992
        %v2927 = vadd.f32 %v2926, 0.041655596
        %v2928 = vmul.f32 %v2925, %v2927
        %v2929 = vadd.f32 %v2928, -0.4999988
        %v2930 = vmul.f32 %v2925, %v2929
        %v2931 = vadd.f32 1.0, %v2930
        %v2932 = vmul.f32 %v2923, %v2923
        %v2933 = vmul.f32 %v2932, -0.00019511016
        %v2934 = vadd.f32 %v2933, 0.008332121
        %v2935 = vmul.f32 %v2932, %v2934
        %v2936 = vadd.f32 %v2935, -0.16666654
        %v2937 = vmul.f32 %v2932, %v2936
        %v2938 = vadd.f32 %v2937, 1.0
        %v2939 = vmul.f32 %v2938, %v2923
        %vm2940 = vweird.f32 %v609
        %v2941 = vadd.s32 %v2924, 3
        %v2942 = vand.u32 %v2941, 3
        %vm2943 = vcmp.lt.s32.totalorder %v2942, 2
        %vm2944 = vcmp.eq.s32.totalorder %v2942, 0
        %v2945 = vxor.u32 %v2939, 2147483648
        %v2946 = vsel %vm2944, %v2931, %v2945
        %vm2947 = vcmp.eq.s32.totalorder %v2942, 2
        %v2948 = vxor.u32 %v2931, 2147483648
        %v2949 = vsel %vm2947, %v2948, %v2939
        %v2950 = vsel %vm2943, %v2946, %v2949
        %v2951 = vsel %vm2940, nan, %v2950
        %v2952 = vand.u32 2147483647, %v610
        %vm2953 = vcmp.le.f32.partialorder %v2952, 0.7853982
        %vm2954 = vcmp.lt.s32.totalorder %v610, 0
        %v2955 = vand.u32 %v610, 2139095040
        %v2956 = vshrl.u32 %v2955, 23
        %v2957 = vsub.s32 %v2956, 127
        %v2958 = vand.u32 2147483647, %v610
        %v2959 = vand.u32 %v2958, 8388607
        %v2960 = vor.u32 %v2959, 8388608
        %v2961 = vsub.s32 0, %v2960
        %v2962 = vadd.s32 %v2957, 1
        %vm2963 = vcmp.gt.s32.totalorder %v2962, 0
        %v2964 = vsel %vm2963, %v2962, 0
        %v2965 = vshrl.u32 %v2964, 5
        %v2966 = vand.u32 %v2964, 31
        %v2967 = vsub.s32 32, %v2966
        %v2968 = vshrl.u32 683565275, %v2967
        %v2969 = vshll.u32 683565275, %v2966
        %v2970 = vshrl.u32 2475754826, %v2967
        %v2971 = vor.u32 %v2969, %v2970
        %v2972 = vshll.u32 2475754826, %v2966
        %v2973 = vshrl.u32 2131351028, %v2967
        %v2974 = vor.u32 %v2972, %v2973
        %v2975 = vshll.u32 2131351028, %v2966
        %v2976 = vshrl.u32 2102212464, %v2967
        %v2977 = vor.u32 %v2975, %v2976
        %v2978 = vshll.u32 2102212464, %v2966
        %v2979 = vshrl.u32 920167782, %v2967
        %v2980 = vor.u32 %v2978, %v2979
        %v2981 = vshll.u32 920167782, %v2966
        %v2982 = vshrl.u32 1326507024, %v2967
        %v2983 = vor.u32 %v2981, %v2982
        %vm2984 = vcmp.lt.s32.totalorder %v2965, 1
        %vm2985 = vcmp.lt.s32.totalorder %v2965, 2
        %vm2986 = vcmp.lt.s32.totalorder %v2965, 3
        %vm2987 = vcmp.lt.s32.totalorder %v2965, 4
        %v2988 = vsel %vm2984, %v2968, %v2971
        %v2989 = vsel %vm2987, %v2977, 2102212464
        %v2990 = vsel %vm2986, %v2974, %v2989
        %v2991 = vsel %vm2985, %v2988, %v2990
        %v2992 = vsel %vm2984, %v2971, %v2974
        %v2993 = vsel %vm2987, %v2980, 920167782
        %v2994 = vsel %vm2986, %v2977, %v2993
        %v2995 = vsel %vm2985, %v2992, %v2994
        %v2996 = vsel %vm2984, %v2974, %v2977
        %v2997 = vsel %vm2987, %v2983, 1326507024
        %v2998 = vsel %vm2986, %v2980, %v2997
        %v2999 = vsel %vm2985, %v2996, %v2998
        %v3000 = vshll.u32 %v2960, 8
        %v3001 = vand.u32 %v3000, 65535
        %v3002 = vshrl.u32 %v3000, 16
        %v3003 = vand.u32 %v2999, 65535
        %v3004 = vshrl.u32 %v2999, 16
        %v3005 = vmul.u32 %v3001, %v3003
        %v3006 = vmul.u32 %v3001, %v3004
        %v3007 = vmul.u32 %v3002, %v3003
        %v3008 = vmul.u32 %v3002, %v3004
        %v3009 = vshll.u32 %v3006, 16
        %v3010 = vshrl.u32 %v3006, 16
        %v3011 = vshll.u32 %v3007, 16
        %v3012 = vshrl.u32 %v3007, 16
        %vm3013 = vc.u32 %v3005, %v3009
        %v3014 = vsel %vm3013, 1, 0
        %v3015 = vadd.s32 %v3005, %v3009
        %v3016 = vadd.s32 %v3008, %v3014
        %vm3017 = vc.u32 %v3015, %v3011
        %v3018 = vsel %vm3017, 1, 0
        %v3019 = vadd.s32 %v3015, %v3011
        %v3020 = vadd.s32 %v3016, %v3018
        %v3021 = vadd.s32 %v3020, %v3010
        %v3022 = vadd.s32 %v3021, %v3012
        %v3023 = vand.u32 %v3000, 65535
        %v3024 = vshrl.u32 %v3000, 16
        %v3025 = vand.u32 %v2995, 65535
        %v3026 = vshrl.u32 %v2995, 16
        %v3027 = vmul.u32 %v3023, %v3025
        %v3028 = vmul.u32 %v3023, %v3026
        %v3029 = vmul.u32 %v3024, %v3025
        %v3030 = vmul.u32 %v3024, %v3026
        %v3031 = vshll.u32 %v3028, 16
        %v3032 = vshrl.u32 %v3028, 16
        %v3033 = vshll.u32 %v3029, 16
        %v3034 = vshrl.u32 %v3029, 16
        %vm3035 = vc.u32 %v3027, %v3031
        %v3036 = vsel %vm3035, 1, 0
        %v3037 = vadd.s32 %v3027, %v3031
        %v3038 = vadd.s32 %v3030, %v3036
        %vm3039 = vc.u32 %v3037, %v3033
        %v3040 = vsel %vm3039, 1, 0
        %v3041 = vadd.s32 %v3037, %v3033
        %v3042 = vadd.s32 %v3038, %v3040
        %v3043 = vadd.s32 %v3042, %v3032
        %v3044 = vadd.s32 %v3043, %v3034
        %v3045 = vmul.u32 %v3000, %v2991
        %v3046 = vadd.s32 %v3022, %v3041
        %vm3047 = vc.u32 %v3022, %v3041
        %v3048 = vadd.s32 %v3044, 1
        %v3049 = vsel %vm3047, %v3048, %v3044
        %v3050 = vadd.s32 %v3045, %v3049
        %v3051 = vadd.s32 %v3050, 536870912
        %v3052 = vshrl.u32 %v3051, 30
        %v3053 = vshll.u32 %v3052, 30
        %v3054 = vsub.s32 %v3050, %v3053
        %vm3055 = vcmp.lt.s32.totalorder %v3054, 0
        %v3056 = vsub.s32 0, %v3054
        %v3057 = vsel %vm3055, %v3056, %v3054
        %v3058 = vclz %v3057
        %v3059 = vsub.s32 %v3058, 2
        %vm3060 = vcmp.gt.s32.totalorder 0, %v3059
        %v3061 = vsel %vm3060, 0, %v3059
        %v3062 = vsub.s32 32, %v3061
        %v3063 = vshll.u32 %v3054, %v3061
        %v3064 = vshrl.u32 %v3046, %v3062
        %v3065 = vor.u32 %v3063, %v3064
        %v3066 = vsub.s32 4294967266, %v3061
        %v3067 = vadd.s32 %v3066, 127
        %v3068 = vshll.u32 %v3067, 23
        %v3069 = vor.u32 4788187, %v3068
        %v3070 = vand.u32 2147483647, %v3069
        %v3072 = vcvt.s32.f32 %v3065
        %v3073 = vmul.f32 %v3072, %v3070
        %v3074 = vxor.u32 %v3073, 2147483648
        %v3075 = vsel %vm2954, %v3074, %v3073
        %v3076 = vsub.s32 4, %v3052
        %v3077 = vsel %vm2954, %v3076, %v3052
        %v3078 = vsel %vm2953, %v610, %v3075
        %v3079 = vsel %vm2953, 0, %v3077
        %v3080 = vmul.f32 %v3078, %v3078
        %v3081 = vmul.f32 %v3080, -0.001358992
        %v3082 = vadd.f32 %v3081, 0.041655596
        %v3083 = vmul.f32 %v3080, %v3082
        %v3084 = vadd.f32 %v3083, -0.4999988
        %v3085 = vmul.f32 %v3080, %v3084
        %v3086 = vadd.f32 1.0, %v3085
        %v3087 = vmul.f32 %v3078, %v3078
        %v3088 = vmul.f32 %v3087, -0.00019511016
        %v3089 = vadd.f32 %v3088, 0.008332121
        %v3090 = vmul.f32 %v3087, %v3089
        %v3091 = vadd.f32 %v3090, -0.16666654
        %v3092 = vmul.f32 %v3087, %v3091
        %v3093 = vadd.f32 %v3092, 1.0
        %v3094 = vmul.f32 %v3093, %v3078
        %vm3095 = vweird.f32 %v610
        %v3096 = vadd.s32 %v3079, 3
        %v3097 = vand.u32 %v3096, 3
        %vm3098 = vcmp.lt.s32.totalorder %v3097, 2
        %vm3099 = vcmp.eq.s32.totalorder %v3097, 0
        %v3100 = vxor.u32 %v3094, 2147483648
        %v3101 = vsel %vm3099, %v3086, %v3100
        %vm3102 = vcmp.eq.s32.totalorder %v3097, 2
        %v3103 = vxor.u32 %v3086, 2147483648
        %v3104 = vsel %vm3102, %v3103, %v3094
        %v3105 = vsel %vm3098, %v3101, %v3104
        %v3106 = vsel %vm3095, nan, %v3105
        %v3107 = vand.u32 2147483647, %v611
        %vm3108 = vcmp.le.f32.partialorder %v3107, 0.7853982
        %vm3109 = vcmp.lt.s32.totalorder %v611, 0
        %v3110 = vand.u32 %v611, 2139095040
        %v3111 = vshrl.u32 %v3110, 23
        %v3112 = vsub.s32 %v3111, 127
        %v3113 = vand.u32 2147483647, %v611
        %v3114 = vand.u32 %v3113, 8388607
        %v3115 = vor.u32 %v3114, 8388608
        %v3116 = vsub.s32 0, %v3115
        %v3117 = vadd.s32 %v3112, 1
        %vm3118 = vcmp.gt.s32.totalorder %v3117, 0
        %v3119 = vsel %vm3118, %v3117, 0
        %v3120 = vshrl.u32 %v3119, 5
        %v3121 = vand.u32 %v3119, 31
        %v3122 = vsub.s32 32, %v3121
        %v3123 = vshrl.u32 683565275, %v3122
        %v3124 = vshll.u32 683565275, %v3121
        %v3125 = vshrl.u32 2475754826, %v3122
        %v3126 = vor.u32 %v3124, %v3125
        %v3127 = vshll.u32 2475754826, %v3121
        %v3128 = vshrl.u32 2131351028, %v3122
        %v3129 = vor.u32 %v3127, %v3128
        %v3130 = vshll.u32 2131351028, %v3121
        %v3131 = vshrl.u32 2102212464, %v3122
        %v3132 = vor.u32 %v3130, %v3131
        %v3133 = vshll.u32 2102212464, %v3121
        %v3134 = vshrl.u32 920167782, %v3122
        %v3135 = vor.u32 %v3133, %v3134
        %v3136 = vshll.u32 920167782, %v3121
        %v3137 = vshrl.u32 1326507024, %v3122
        %v3138 = vor.u32 %v3136, %v3137
        %vm3139 = vcmp.lt.s32.totalorder %v3120, 1
        %vm3140 = vcmp.lt.s32.totalorder %v3120, 2
        %vm3141 = vcmp.lt.s32.totalorder %v3120, 3
        %vm3142 = vcmp.lt.s32.totalorder %v3120, 4
        %v3143 = vsel %vm3139, %v3123, %v3126
        %v3144 = vsel %vm3142, %v3132, 2102212464
        %v3145 = vsel %vm3141, %v3129, %v3144
        %v3146 = vsel %vm3140, %v3143, %v3145
        %v3147 = vsel %vm3139, %v3126, %v3129
        %v3148 = vsel %vm3142, %v3135, 920167782
        %v3149 = vsel %vm3141, %v3132, %v3148
        %v3150 = vsel %vm3140, %v3147, %v3149
        %v3151 = vsel %vm3139, %v3129, %v3132
        %v3152 = vsel %vm3142, %v3138, 1326507024
        %v3153 = vsel %vm3141, %v3135, %v3152
        %v3154 = vsel %vm3140, %v3151, %v3153
        %v3155 = vshll.u32 %v3115, 8
        %v3156 = vand.u32 %v3155, 65535
        %v3157 = vshrl.u32 %v3155, 16
        %v3158 = vand.u32 %v3154, 65535
        %v3159 = vshrl.u32 %v3154, 16
        %v3160 = vmul.u32 %v3156, %v3158
        %v3161 = vmul.u32 %v3156, %v3159
        %v3162 = vmul.u32 %v3157, %v3158
        %v3163 = vmul.u32 %v3157, %v3159
        %v3164 = vshll.u32 %v3161, 16
        %v3165 = vshrl.u32 %v3161, 16
        %v3166 = vshll.u32 %v3162, 16
        %v3167 = vshrl.u32 %v3162, 16
        %vm3168 = vc.u32 %v3160, %v3164
        %v3169 = vsel %vm3168, 1, 0
        %v3170 = vadd.s32 %v3160, %v3164
        %v3171 = vadd.s32 %v3163, %v3169
        %vm3172 = vc.u32 %v3170, %v3166
        %v3173 = vsel %vm3172, 1, 0
        %v3174 = vadd.s32 %v3170, %v3166
        %v3175 = vadd.s32 %v3171, %v3173
        %v3176 = vadd.s32 %v3175, %v3165
        %v3177 = vadd.s32 %v3176, %v3167
        %v3178 = vand.u32 %v3155, 65535
        %v3179 = vshrl.u32 %v3155, 16
        %v3180 = vand.u32 %v3150, 65535
        %v3181 = vshrl.u32 %v3150, 16
        %v3182 = vmul.u32 %v3178, %v3180
        %v3183 = vmul.u32 %v3178, %v3181
        %v3184 = vmul.u32 %v3179, %v3180
        %v3185 = vmul.u32 %v3179, %v3181
        %v3186 = vshll.u32 %v3183, 16
        %v3187 = vshrl.u32 %v3183, 16
        %v3188 = vshll.u32 %v3184, 16
        %v3189 = vshrl.u32 %v3184, 16
        %vm3190 = vc.u32 %v3182, %v3186
        %v3191 = vsel %vm3190, 1, 0
        %v3192 = vadd.s32 %v3182, %v3186
        %v3193 = vadd.s32 %v3185, %v3191
        %vm3194 = vc.u32 %v3192, %v3188
        %v3195 = vsel %vm3194, 1, 0
        %v3196 = vadd.s32 %v3192, %v3188
        %v3197 = vadd.s32 %v3193, %v3195
        %v3198 = vadd.s32 %v3197, %v3187
        %v3199 = vadd.s32 %v3198, %v3189
        %v3200 = vmul.u32 %v3155, %v3146
        %v3201 = vadd.s32 %v3177, %v3196
        %vm3202 = vc.u32 %v3177, %v3196
        %v3203 = vadd.s32 %v3199, 1
        %v3204 = vsel %vm3202, %v3203, %v3199
        %v3205 = vadd.s32 %v3200, %v3204
        %v3206 = vadd.s32 %v3205, 536870912
        %v3207 = vshrl.u32 %v3206, 30
        %v3208 = vshll.u32 %v3207, 30
        %v3209 = vsub.s32 %v3205, %v3208
        %vm3210 = vcmp.lt.s32.totalorder %v3209, 0
        %v3211 = vsub.s32 0, %v3209
        %v3212 = vsel %vm3210, %v3211, %v3209
        %v3213 = vclz %v3212
        %v3214 = vsub.s32 %v3213, 2
        %vm3215 = vcmp.gt.s32.totalorder 0, %v3214
        %v3216 = vsel %vm3215, 0, %v3214
        %v3217 = vsub.s32 32, %v3216
        %v3218 = vshll.u32 %v3209, %v3216
        %v3219 = vshrl.u32 %v3201, %v3217
        %v3220 = vor.u32 %v3218, %v3219
        %v3221 = vsub.s32 4294967266, %v3216
        %v3222 = vadd.s32 %v3221, 127
        %v3223 = vshll.u32 %v3222, 23
        %v3224 = vor.u32 4788187, %v3223
        %v3225 = vand.u32 2147483647, %v3224
        %v3227 = vcvt.s32.f32 %v3220
        %v3228 = vmul.f32 %v3227, %v3225
        %v3229 = vxor.u32 %v3228, 2147483648
        %v3230 = vsel %vm3109, %v3229, %v3228
        %v3231 = vsub.s32 4, %v3207
        %v3232 = vsel %vm3109, %v3231, %v3207
        %v3233 = vsel %vm3108, %v611, %v3230
        %v3234 = vsel %vm3108, 0, %v3232
        %v3235 = vmul.f32 %v3233, %v3233
        %v3236 = vmul.f32 %v3235, -0.001358992
        %v3237 = vadd.f32 %v3236, 0.041655596
        %v3238 = vmul.f32 %v3235, %v3237
        %v3239 = vadd.f32 %v3238, -0.4999988
        %v3240 = vmul.f32 %v3235, %v3239
        %v3241 = vadd.f32 1.0, %v3240
        %v3242 = vmul.f32 %v3233, %v3233
        %v3243 = vmul.f32 %v3242, -0.00019511016
        %v3244 = vadd.f32 %v3243, 0.008332121
        %v3245 = vmul.f32 %v3242, %v3244
        %v3246 = vadd.f32 %v3245, -0.16666654
        %v3247 = vmul.f32 %v3242, %v3246
        %v3248 = vadd.f32 %v3247, 1.0
        %v3249 = vmul.f32 %v3248, %v3233
        %vm3250 = vweird.f32 %v611
        %v3251 = vadd.s32 %v3234, 3
        %v3252 = vand.u32 %v3251, 3
        %vm3253 = vcmp.lt.s32.totalorder %v3252, 2
        %vm3254 = vcmp.eq.s32.totalorder %v3252, 0
        %v3255 = vxor.u32 %v3249, 2147483648
        %v3256 = vsel %vm3254, %v3241, %v3255
        %vm3257 = vcmp.eq.s32.totalorder %v3252, 2
        %v3258 = vxor.u32 %v3241, 2147483648
        %v3259 = vsel %vm3257, %v3258, %v3249
        %v3260 = vsel %vm3253, %v3256, %v3259
        %v3261 = vsel %vm3250, nan, %v3260
        %v3262 = vand.u32 2147483647, %v612
        %vm3263 = vcmp.le.f32.partialorder %v3262, 0.7853982
        %vm3264 = vcmp.lt.s32.totalorder %v612, 0
        %v3265 = vand.u32 %v612, 2139095040
        %v3266 = vshrl.u32 %v3265, 23
        %v3267 = vsub.s32 %v3266, 127
        %v3268 = vand.u32 2147483647, %v612
        %v3269 = vand.u32 %v3268, 8388607
        %v3270 = vor.u32 %v3269, 8388608
        %v3271 = vsub.s32 0, %v3270
        %v3272 = vadd.s32 %v3267, 1
        %vm3273 = vcmp.gt.s32.totalorder %v3272, 0
        %v3274 = vsel %vm3273, %v3272, 0
        %v3275 = vshrl.u32 %v3274, 5
        %v3276 = vand.u32 %v3274, 31
        %v3277 = vsub.s32 32, %v3276
        %v3278 = vshrl.u32 683565275, %v3277
        %v3279 = vshll.u32 683565275, %v3276
        %v3280 = vshrl.u32 2475754826, %v3277
        %v3281 = vor.u32 %v3279, %v3280
        %v3282 = vshll.u32 2475754826, %v3276
        %v3283 = vshrl.u32 2131351028, %v3277
        %v3284 = vor.u32 %v3282, %v3283
        %v3285 = vshll.u32 2131351028, %v3276
        %v3286 = vshrl.u32 2102212464, %v3277
        %v3287 = vor.u32 %v3285, %v3286
        %v3288 = vshll.u32 2102212464, %v3276
        %v3289 = vshrl.u32 920167782, %v3277
        %v3290 = vor.u32 %v3288, %v3289
        %v3291 = vshll.u32 920167782, %v3276
        %v3292 = vshrl.u32 1326507024, %v3277
        %v3293 = vor.u32 %v3291, %v3292
        %vm3294 = vcmp.lt.s32.totalorder %v3275, 1
        %vm3295 = vcmp.lt.s32.totalorder %v3275, 2
        %vm3296 = vcmp.lt.s32.totalorder %v3275, 3
        %vm3297 = vcmp.lt.s32.totalorder %v3275, 4
        %v3298 = vsel %vm3294, %v3278, %v3281
        %v3299 = vsel %vm3297, %v3287, 2102212464
        %v3300 = vsel %vm3296, %v3284, %v3299
        %v3301 = vsel %vm3295, %v3298, %v3300
        %v3302 = vsel %vm3294, %v3281, %v3284
        %v3303 = vsel %vm3297, %v3290, 920167782
        %v3304 = vsel %vm3296, %v3287, %v3303
        %v3305 = vsel %vm3295, %v3302, %v3304
        %v3306 = vsel %vm3294, %v3284, %v3287
        %v3307 = vsel %vm3297, %v3293, 1326507024
        %v3308 = vsel %vm3296, %v3290, %v3307
        %v3309 = vsel %vm3295, %v3306, %v3308
        %v3310 = vshll.u32 %v3270, 8
        %v3311 = vand.u32 %v3310, 65535
        %v3312 = vshrl.u32 %v3310, 16
        %v3313 = vand.u32 %v3309, 65535
        %v3314 = vshrl.u32 %v3309, 16
        %v3315 = vmul.u32 %v3311, %v3313
        %v3316 = vmul.u32 %v3311, %v3314
        %v3317 = vmul.u32 %v3312, %v3313
        %v3318 = vmul.u32 %v3312, %v3314
        %v3319 = vshll.u32 %v3316, 16
        %v3320 = vshrl.u32 %v3316, 16
        %v3321 = vshll.u32 %v3317, 16
        %v3322 = vshrl.u32 %v3317, 16
        %vm3323 = vc.u32 %v3315, %v3319
        %v3324 = vsel %vm3323, 1, 0
        %v3325 = vadd.s32 %v3315, %v3319
        %v3326 = vadd.s32 %v3318, %v3324
        %vm3327 = vc.u32 %v3325, %v3321
        %v3328 = vsel %vm3327, 1, 0
        %v3329 = vadd.s32 %v3325, %v3321
        %v3330 = vadd.s32 %v3326, %v3328
        %v3331 = vadd.s32 %v3330, %v3320
        %v3332 = vadd.s32 %v3331, %v3322
        %v3333 = vand.u32 %v3310, 65535
        %v3334 = vshrl.u32 %v3310, 16
        %v3335 = vand.u32 %v3305, 65535
        %v3336 = vshrl.u32 %v3305, 16
        %v3337 = vmul.u32 %v3333, %v3335
        %v3338 = vmul.u32 %v3333, %v3336
        %v3339 = vmul.u32 %v3334, %v3335
        %v3340 = vmul.u32 %v3334, %v3336
        %v3341 = vshll.u32 %v3338, 16
        %v3342 = vshrl.u32 %v3338, 16
        %v3343 = vshll.u32 %v3339, 16
        %v3344 = vshrl.u32 %v3339, 16
        %vm3345 = vc.u32 %v3337, %v3341
        %v3346 = vsel %vm3345, 1, 0
        %v3347 = vadd.s32 %v3337, %v3341
        %v3348 = vadd.s32 %v3340, %v3346
        %vm3349 = vc.u32 %v3347, %v3343
        %v3350 = vsel %vm3349, 1, 0
        %v3351 = vadd.s32 %v3347, %v3343
        %v3352 = vadd.s32 %v3348, %v3350
        %v3353 = vadd.s32 %v3352, %v3342
        %v3354 = vadd.s32 %v3353, %v3344
        %v3355 = vmul.u32 %v3310, %v3301
        %v3356 = vadd.s32 %v3332, %v3351
        %vm3357 = vc.u32 %v3332, %v3351
        %v3358 = vadd.s32 %v3354, 1
        %v3359 = vsel %vm3357, %v3358, %v3354
        %v3360 = vadd.s32 %v3355, %v3359
        %v3361 = vadd.s32 %v3360, 536870912
        %v3362 = vshrl.u32 %v3361, 30
        %v3363 = vshll.u32 %v3362, 30
        %v3364 = vsub.s32 %v3360, %v3363
        %vm3365 = vcmp.lt.s32.totalorder %v3364, 0
        %v3366 = vsub.s32 0, %v3364
        %v3367 = vsel %vm3365, %v3366, %v3364
        %v3368 = vclz %v3367
        %v3369 = vsub.s32 %v3368, 2
        %vm3370 = vcmp.gt.s32.totalorder 0, %v3369
        %v3371 = vsel %vm3370, 0, %v3369
        %v3372 = vsub.s32 32, %v3371
        %v3373 = vshll.u32 %v3364, %v3371
        %v3374 = vshrl.u32 %v3356, %v3372
        %v3375 = vor.u32 %v3373, %v3374
        %v3376 = vsub.s32 4294967266, %v3371
        %v3377 = vadd.s32 %v3376, 127
        %v3378 = vshll.u32 %v3377, 23
        %v3379 = vor.u32 4788187, %v3378
        %v3380 = vand.u32 2147483647, %v3379
        %v3382 = vcvt.s32.f32 %v3375
        %v3383 = vmul.f32 %v3382, %v3380
        %v3384 = vxor.u32 %v3383, 2147483648
        %v3385 = vsel %vm3264, %v3384, %v3383
        %v3386 = vsub.s32 4, %v3362
        %v3387 = vsel %vm3264, %v3386, %v3362
        %v3388 = vsel %vm3263, %v612, %v3385
        %v3389 = vsel %vm3263, 0, %v3387
        %v3390 = vmul.f32 %v3388, %v3388
        %v3391 = vmul.f32 %v3390, -0.001358992
        %v3392 = vadd.f32 %v3391, 0.041655596
        %v3393 = vmul.f32 %v3390, %v3392
        %v3394 = vadd.f32 %v3393, -0.4999988
        %v3395 = vmul.f32 %v3390, %v3394
        %v3396 = vadd.f32 1.0, %v3395
        %v3397 = vmul.f32 %v3388, %v3388
        %v3398 = vmul.f32 %v3397, -0.00019511016
        %v3399 = vadd.f32 %v3398, 0.008332121
        %v3400 = vmul.f32 %v3397, %v3399
        %v3401 = vadd.f32 %v3400, -0.16666654
        %v3402 = vmul.f32 %v3397, %v3401
        %v3403 = vadd.f32 %v3402, 1.0
        %v3404 = vmul.f32 %v3403, %v3388
        %vm3405 = vweird.f32 %v612
        %v3406 = vadd.s32 %v3389, 3
        %v3407 = vand.u32 %v3406, 3
        %vm3408 = vcmp.lt.s32.totalorder %v3407, 2
        %vm3409 = vcmp.eq.s32.totalorder %v3407, 0
        %v3410 = vxor.u32 %v3404, 2147483648
        %v3411 = vsel %vm3409, %v3396, %v3410
        %vm3412 = vcmp.eq.s32.totalorder %v3407, 2
        %v3413 = vxor.u32 %v3396, 2147483648
        %v3414 = vsel %vm3412, %v3413, %v3404
        %v3415 = vsel %vm3408, %v3411, %v3414
        %v3416 = vsel %vm3405, nan, %v3415
        %v3417 = vand.u32 2147483647, %v613
        %vm3418 = vcmp.le.f32.partialorder %v3417, 0.7853982
        %vm3419 = vcmp.lt.s32.totalorder %v613, 0
        %v3420 = vand.u32 %v613, 2139095040
        %v3421 = vshrl.u32 %v3420, 23
        %v3422 = vsub.s32 %v3421, 127
        %v3423 = vand.u32 2147483647, %v613
        %v3424 = vand.u32 %v3423, 8388607
        %v3425 = vor.u32 %v3424, 8388608
        %v3426 = vsub.s32 0, %v3425
        %v3427 = vadd.s32 %v3422, 1
        %vm3428 = vcmp.gt.s32.totalorder %v3427, 0
        %v3429 = vsel %vm3428, %v3427, 0
        %v3430 = vshrl.u32 %v3429, 5
        %v3431 = vand.u32 %v3429, 31
        %v3432 = vsub.s32 32, %v3431
        %v3433 = vshrl.u32 683565275, %v3432
        %v3434 = vshll.u32 683565275, %v3431
        %v3435 = vshrl.u32 2475754826, %v3432
        %v3436 = vor.u32 %v3434, %v3435
        %v3437 = vshll.u32 2475754826, %v3431
        %v3438 = vshrl.u32 2131351028, %v3432
        %v3439 = vor.u32 %v3437, %v3438
        %v3440 = vshll.u32 2131351028, %v3431
        %v3441 = vshrl.u32 2102212464, %v3432
        %v3442 = vor.u32 %v3440, %v3441
        %v3443 = vshll.u32 2102212464, %v3431
        %v3444 = vshrl.u32 920167782, %v3432
        %v3445 = vor.u32 %v3443, %v3444
        %v3446 = vshll.u32 920167782, %v3431
        %v3447 = vshrl.u32 1326507024, %v3432
        %v3448 = vor.u32 %v3446, %v3447
        %vm3449 = vcmp.lt.s32.totalorder %v3430, 1
        %vm3450 = vcmp.lt.s32.totalorder %v3430, 2
        %vm3451 = vcmp.lt.s32.totalorder %v3430, 3
        %vm3452 = vcmp.lt.s32.totalorder %v3430, 4
        %v3453 = vsel %vm3449, %v3433, %v3436
        %v3454 = vsel %vm3452, %v3442, 2102212464
        %v3455 = vsel %vm3451, %v3439, %v3454
        %v3456 = vsel %vm3450, %v3453, %v3455
        %v3457 = vsel %vm3449, %v3436, %v3439
        %v3458 = vsel %vm3452, %v3445, 920167782
        %v3459 = vsel %vm3451, %v3442, %v3458
        %v3460 = vsel %vm3450, %v3457, %v3459
        %v3461 = vsel %vm3449, %v3439, %v3442
        %v3462 = vsel %vm3452, %v3448, 1326507024
        %v3463 = vsel %vm3451, %v3445, %v3462
        %v3464 = vsel %vm3450, %v3461, %v3463
        %v3465 = vshll.u32 %v3425, 8
        %v3466 = vand.u32 %v3465, 65535
        %v3467 = vshrl.u32 %v3465, 16
        %v3468 = vand.u32 %v3464, 65535
        %v3469 = vshrl.u32 %v3464, 16
        %v3470 = vmul.u32 %v3466, %v3468
        %v3471 = vmul.u32 %v3466, %v3469
        %v3472 = vmul.u32 %v3467, %v3468
        %v3473 = vmul.u32 %v3467, %v3469
        %v3474 = vshll.u32 %v3471, 16
        %v3475 = vshrl.u32 %v3471, 16
        %v3476 = vshll.u32 %v3472, 16
        %v3477 = vshrl.u32 %v3472, 16
        %vm3478 = vc.u32 %v3470, %v3474
        %v3479 = vsel %vm3478, 1, 0
        %v3480 = vadd.s32 %v3470, %v3474
        %v3481 = vadd.s32 %v3473, %v3479
        %vm3482 = vc.u32 %v3480, %v3476
        %v3483 = vsel %vm3482, 1, 0
        %v3484 = vadd.s32 %v3480, %v3476
        %v3485 = vadd.s32 %v3481, %v3483
        %v3486 = vadd.s32 %v3485, %v3475
        %v3487 = vadd.s32 %v3486, %v3477
        %v3488 = vand.u32 %v3465, 65535
        %v3489 = vshrl.u32 %v3465, 16
        %v3490 = vand.u32 %v3460, 65535
        %v3491 = vshrl.u32 %v3460, 16
        %v3492 = vmul.u32 %v3488, %v3490
        %v3493 = vmul.u32 %v3488, %v3491
        %v3494 = vmul.u32 %v3489, %v3490
        %v3495 = vmul.u32 %v3489, %v3491
        %v3496 = vshll.u32 %v3493, 16
        %v3497 = vshrl.u32 %v3493, 16
        %v3498 = vshll.u32 %v3494, 16
        %v3499 = vshrl.u32 %v3494, 16
        %vm3500 = vc.u32 %v3492, %v3496
        %v3501 = vsel %vm3500, 1, 0
        %v3502 = vadd.s32 %v3492, %v3496
        %v3503 = vadd.s32 %v3495, %v3501
        %vm3504 = vc.u32 %v3502, %v3498
        %v3505 = vsel %vm3504, 1, 0
        %v3506 = vadd.s32 %v3502, %v3498
        %v3507 = vadd.s32 %v3503, %v3505
        %v3508 = vadd.s32 %v3507, %v3497
        %v3509 = vadd.s32 %v3508, %v3499
        %v3510 = vmul.u32 %v3465, %v3456
        %v3511 = vadd.s32 %v3487, %v3506
        %vm3512 = vc.u32 %v3487, %v3506
        %v3513 = vadd.s32 %v3509, 1
        %v3514 = vsel %vm3512, %v3513, %v3509
        %v3515 = vadd.s32 %v3510, %v3514
        %v3516 = vadd.s32 %v3515, 536870912
        %v3517 = vshrl.u32 %v3516, 30
        %v3518 = vshll.u32 %v3517, 30
        %v3519 = vsub.s32 %v3515, %v3518
        %vm3520 = vcmp.lt.s32.totalorder %v3519, 0
        %v3521 = vsub.s32 0, %v3519
        %v3522 = vsel %vm3520, %v3521, %v3519
        %v3523 = vclz %v3522
        %v3524 = vsub.s32 %v3523, 2
        %vm3525 = vcmp.gt.s32.totalorder 0, %v3524
        %v3526 = vsel %vm3525, 0, %v3524
        %v3527 = vsub.s32 32, %v3526
        %v3528 = vshll.u32 %v3519, %v3526
        %v3529 = vshrl.u32 %v3511, %v3527
        %v3530 = vor.u32 %v3528, %v3529
        %v3531 = vsub.s32 4294967266, %v3526
        %v3532 = vadd.s32 %v3531, 127
        %v3533 = vshll.u32 %v3532, 23
        %v3534 = vor.u32 4788187, %v3533
        %v3535 = vand.u32 2147483647, %v3534
        %v3537 = vcvt.s32.f32 %v3530
        %v3538 = vmul.f32 %v3537, %v3535
        %v3539 = vxor.u32 %v3538, 2147483648
        %v3540 = vsel %vm3419, %v3539, %v3538
        %v3541 = vsub.s32 4, %v3517
        %v3542 = vsel %vm3419, %v3541, %v3517
        %v3543 = vsel %vm3418, %v613, %v3540
        %v3544 = vsel %vm3418, 0, %v3542
        %v3545 = vmul.f32 %v3543, %v3543
        %v3546 = vmul.f32 %v3545, -0.001358992
        %v3547 = vadd.f32 %v3546, 0.041655596
        %v3548 = vmul.f32 %v3545, %v3547
        %v3549 = vadd.f32 %v3548, -0.4999988
        %v3550 = vmul.f32 %v3545, %v3549
        %v3551 = vadd.f32 1.0, %v3550
        %v3552 = vmul.f32 %v3543, %v3543
        %v3553 = vmul.f32 %v3552, -0.00019511016
        %v3554 = vadd.f32 %v3553, 0.008332121
        %v3555 = vmul.f32 %v3552, %v3554
        %v3556 = vadd.f32 %v3555, -0.16666654
        %v3557 = vmul.f32 %v3552, %v3556
        %v3558 = vadd.f32 %v3557, 1.0
        %v3559 = vmul.f32 %v3558, %v3543
        %vm3560 = vweird.f32 %v613
        %v3561 = vadd.s32 %v3544, 3
        %v3562 = vand.u32 %v3561, 3
        %vm3563 = vcmp.lt.s32.totalorder %v3562, 2
        %vm3564 = vcmp.eq.s32.totalorder %v3562, 0
        %v3565 = vxor.u32 %v3559, 2147483648
        %v3566 = vsel %vm3564, %v3551, %v3565
        %vm3567 = vcmp.eq.s32.totalorder %v3562, 2
        %v3568 = vxor.u32 %v3551, 2147483648
        %v3569 = vsel %vm3567, %v3568, %v3559
        %v3570 = vsel %vm3563, %v3566, %v3569
        %v3571 = vsel %vm3560, nan, %v3570
        %v3572 = vand.u32 2147483647, %v614
        %vm3573 = vcmp.le.f32.partialorder %v3572, 0.7853982
        %vm3574 = vcmp.lt.s32.totalorder %v614, 0
        %v3575 = vand.u32 %v614, 2139095040
        %v3576 = vshrl.u32 %v3575, 23
        %v3577 = vsub.s32 %v3576, 127
        %v3578 = vand.u32 2147483647, %v614
        %v3579 = vand.u32 %v3578, 8388607
        %v3580 = vor.u32 %v3579, 8388608
        %v3581 = vsub.s32 0, %v3580
        %v3582 = vadd.s32 %v3577, 1
        %vm3583 = vcmp.gt.s32.totalorder %v3582, 0
        %v3584 = vsel %vm3583, %v3582, 0
        %v3585 = vshrl.u32 %v3584, 5
        %v3586 = vand.u32 %v3584, 31
        %v3587 = vsub.s32 32, %v3586
        %v3588 = vshrl.u32 683565275, %v3587
        %v3589 = vshll.u32 683565275, %v3586
        %v3590 = vshrl.u32 2475754826, %v3587
        %v3591 = vor.u32 %v3589, %v3590
        %v3592 = vshll.u32 2475754826, %v3586
        %v3593 = vshrl.u32 2131351028, %v3587
        %v3594 = vor.u32 %v3592, %v3593
        %v3595 = vshll.u32 2131351028, %v3586
        %v3596 = vshrl.u32 2102212464, %v3587
        %v3597 = vor.u32 %v3595, %v3596
        %v3598 = vshll.u32 2102212464, %v3586
        %v3599 = vshrl.u32 920167782, %v3587
        %v3600 = vor.u32 %v3598, %v3599
        %v3601 = vshll.u32 920167782, %v3586
        %v3602 = vshrl.u32 1326507024, %v3587
        %v3603 = vor.u32 %v3601, %v3602
        %vm3604 = vcmp.lt.s32.totalorder %v3585, 1
        %vm3605 = vcmp.lt.s32.totalorder %v3585, 2
        %vm3606 = vcmp.lt.s32.totalorder %v3585, 3
        %vm3607 = vcmp.lt.s32.totalorder %v3585, 4
        %v3608 = vsel %vm3604, %v3588, %v3591
        %v3609 = vsel %vm3607, %v3597, 2102212464
        %v3610 = vsel %vm3606, %v3594, %v3609
        %v3611 = vsel %vm3605, %v3608, %v3610
        %v3612 = vsel %vm3604, %v3591, %v3594
        %v3613 = vsel %vm3607, %v3600, 920167782
        %v3614 = vsel %vm3606, %v3597, %v3613
        %v3615 = vsel %vm3605, %v3612, %v3614
        %v3616 = vsel %vm3604, %v3594, %v3597
        %v3617 = vsel %vm3607, %v3603, 1326507024
        %v3618 = vsel %vm3606, %v3600, %v3617
        %v3619 = vsel %vm3605, %v3616, %v3618
        %v3620 = vshll.u32 %v3580, 8
        %v3621 = vand.u32 %v3620, 65535
        %v3622 = vshrl.u32 %v3620, 16
        %v3623 = vand.u32 %v3619, 65535
        %v3624 = vshrl.u32 %v3619, 16
        %v3625 = vmul.u32 %v3621, %v3623
        %v3626 = vmul.u32 %v3621, %v3624
        %v3627 = vmul.u32 %v3622, %v3623
        %v3628 = vmul.u32 %v3622, %v3624
        %v3629 = vshll.u32 %v3626, 16
        %v3630 = vshrl.u32 %v3626, 16
        %v3631 = vshll.u32 %v3627, 16
        %v3632 = vshrl.u32 %v3627, 16
        %vm3633 = vc.u32 %v3625, %v3629
        %v3634 = vsel %vm3633, 1, 0
        %v3635 = vadd.s32 %v3625, %v3629
        %v3636 = vadd.s32 %v3628, %v3634
        %vm3637 = vc.u32 %v3635, %v3631
        %v3638 = vsel %vm3637, 1, 0
        %v3639 = vadd.s32 %v3635, %v3631
        %v3640 = vadd.s32 %v3636, %v3638
        %v3641 = vadd.s32 %v3640, %v3630
        %v3642 = vadd.s32 %v3641, %v3632
        %v3643 = vand.u32 %v3620, 65535
        %v3644 = vshrl.u32 %v3620, 16
        %v3645 = vand.u32 %v3615, 65535
        %v3646 = vshrl.u32 %v3615, 16
        %v3647 = vmul.u32 %v3643, %v3645
        %v3648 = vmul.u32 %v3643, %v3646
        %v3649 = vmul.u32 %v3644, %v3645
        %v3650 = vmul.u32 %v3644, %v3646
        %v3651 = vshll.u32 %v3648, 16
        %v3652 = vshrl.u32 %v3648, 16
        %v3653 = vshll.u32 %v3649, 16
        %v3654 = vshrl.u32 %v3649, 16
        %vm3655 = vc.u32 %v3647, %v3651
        %v3656 = vsel %vm3655, 1, 0
        %v3657 = vadd.s32 %v3647, %v3651
        %v3658 = vadd.s32 %v3650, %v3656
        %vm3659 = vc.u32 %v3657, %v3653
        %v3660 = vsel %vm3659, 1, 0
        %v3661 = vadd.s32 %v3657, %v3653
        %v3662 = vadd.s32 %v3658, %v3660
        %v3663 = vadd.s32 %v3662, %v3652
        %v3664 = vadd.s32 %v3663, %v3654
        %v3665 = vmul.u32 %v3620, %v3611
        %v3666 = vadd.s32 %v3642, %v3661
        %vm3667 = vc.u32 %v3642, %v3661
        %v3668 = vadd.s32 %v3664, 1
        %v3669 = vsel %vm3667, %v3668, %v3664
        %v3670 = vadd.s32 %v3665, %v3669
        %v3671 = vadd.s32 %v3670, 536870912
        %v3672 = vshrl.u32 %v3671, 30
        %v3673 = vshll.u32 %v3672, 30
        %v3674 = vsub.s32 %v3670, %v3673
        %vm3675 = vcmp.lt.s32.totalorder %v3674, 0
        %v3676 = vsub.s32 0, %v3674
        %v3677 = vsel %vm3675, %v3676, %v3674
        %v3678 = vclz %v3677
        %v3679 = vsub.s32 %v3678, 2
        %vm3680 = vcmp.gt.s32.totalorder 0, %v3679
        %v3681 = vsel %vm3680, 0, %v3679
        %v3682 = vsub.s32 32, %v3681
        %v3683 = vshll.u32 %v3674, %v3681
        %v3684 = vshrl.u32 %v3666, %v3682
        %v3685 = vor.u32 %v3683, %v3684
        %v3686 = vsub.s32 4294967266, %v3681
        %v3687 = vadd.s32 %v3686, 127
        %v3688 = vshll.u32 %v3687, 23
        %v3689 = vor.u32 4788187, %v3688
        %v3690 = vand.u32 2147483647, %v3689
        %v3692 = vcvt.s32.f32 %v3685
        %v3693 = vmul.f32 %v3692, %v3690
        %v3694 = vxor.u32 %v3693, 2147483648
        %v3695 = vsel %vm3574, %v3694, %v3693
        %v3696 = vsub.s32 4, %v3672
        %v3697 = vsel %vm3574, %v3696, %v3672
        %v3698 = vsel %vm3573, %v614, %v3695
        %v3699 = vsel %vm3573, 0, %v3697
        %v3700 = vmul.f32 %v3698, %v3698
        %v3701 = vmul.f32 %v3700, -0.001358992
        %v3702 = vadd.f32 %v3701, 0.041655596
        %v3703 = vmul.f32 %v3700, %v3702
        %v3704 = vadd.f32 %v3703, -0.4999988
        %v3705 = vmul.f32 %v3700, %v3704
        %v3706 = vadd.f32 1.0, %v3705
        %v3707 = vmul.f32 %v3698, %v3698
        %v3708 = vmul.f32 %v3707, -0.00019511016
        %v3709 = vadd.f32 %v3708, 0.008332121
        %v3710 = vmul.f32 %v3707, %v3709
        %v3711 = vadd.f32 %v3710, -0.16666654
        %v3712 = vmul.f32 %v3707, %v3711
        %v3713 = vadd.f32 %v3712, 1.0
        %v3714 = vmul.f32 %v3713, %v3698
        %vm3715 = vweird.f32 %v614
        %v3716 = vadd.s32 %v3699, 3
        %v3717 = vand.u32 %v3716, 3
        %vm3718 = vcmp.lt.s32.totalorder %v3717, 2
        %vm3719 = vcmp.eq.s32.totalorder %v3717, 0
        %v3720 = vxor.u32 %v3714, 2147483648
        %v3721 = vsel %vm3719, %v3706, %v3720
        %vm3722 = vcmp.eq.s32.totalorder %v3717, 2
        %v3723 = vxor.u32 %v3706, 2147483648
        %v3724 = vsel %vm3722, %v3723, %v3714
        %v3725 = vsel %vm3718, %v3721, %v3724
        %v3726 = vsel %vm3715, nan, %v3725
        %v3727 = vand.u32 2147483647, %v615
        %vm3728 = vcmp.le.f32.partialorder %v3727, 0.7853982
        %vm3729 = vcmp.lt.s32.totalorder %v615, 0
        %v3730 = vand.u32 %v615, 2139095040
        %v3731 = vshrl.u32 %v3730, 23
        %v3732 = vsub.s32 %v3731, 127
        %v3733 = vand.u32 2147483647, %v615
        %v3734 = vand.u32 %v3733, 8388607
        %v3735 = vor.u32 %v3734, 8388608
        %v3736 = vsub.s32 0, %v3735
        %v3737 = vadd.s32 %v3732, 1
        %vm3738 = vcmp.gt.s32.totalorder %v3737, 0
        %v3739 = vsel %vm3738, %v3737, 0
        %v3740 = vshrl.u32 %v3739, 5
        %v3741 = vand.u32 %v3739, 31
        %v3742 = vsub.s32 32, %v3741
        %v3743 = vshrl.u32 683565275, %v3742
        %v3744 = vshll.u32 683565275, %v3741
        %v3745 = vshrl.u32 2475754826, %v3742
        %v3746 = vor.u32 %v3744, %v3745
        %v3747 = vshll.u32 2475754826, %v3741
        %v3748 = vshrl.u32 2131351028, %v3742
        %v3749 = vor.u32 %v3747, %v3748
        %v3750 = vshll.u32 2131351028, %v3741
        %v3751 = vshrl.u32 2102212464, %v3742
        %v3752 = vor.u32 %v3750, %v3751
        %v3753 = vshll.u32 2102212464, %v3741
        %v3754 = vshrl.u32 920167782, %v3742
        %v3755 = vor.u32 %v3753, %v3754
        %v3756 = vshll.u32 920167782, %v3741
        %v3757 = vshrl.u32 1326507024, %v3742
        %v3758 = vor.u32 %v3756, %v3757
        %vm3759 = vcmp.lt.s32.totalorder %v3740, 1
        %vm3760 = vcmp.lt.s32.totalorder %v3740, 2
        %vm3761 = vcmp.lt.s32.totalorder %v3740, 3
        %vm3762 = vcmp.lt.s32.totalorder %v3740, 4
        %v3763 = vsel %vm3759, %v3743, %v3746
        %v3764 = vsel %vm3762, %v3752, 2102212464
        %v3765 = vsel %vm3761, %v3749, %v3764
        %v3766 = vsel %vm3760, %v3763, %v3765
        %v3767 = vsel %vm3759, %v3746, %v3749
        %v3768 = vsel %vm3762, %v3755, 920167782
        %v3769 = vsel %vm3761, %v3752, %v3768
        %v3770 = vsel %vm3760, %v3767, %v3769
        %v3771 = vsel %vm3759, %v3749, %v3752
        %v3772 = vsel %vm3762, %v3758, 1326507024
        %v3773 = vsel %vm3761, %v3755, %v3772
        %v3774 = vsel %vm3760, %v3771, %v3773
        %v3775 = vshll.u32 %v3735, 8
        %v3776 = vand.u32 %v3775, 65535
        %v3777 = vshrl.u32 %v3775, 16
        %v3778 = vand.u32 %v3774, 65535
        %v3779 = vshrl.u32 %v3774, 16
        %v3780 = vmul.u32 %v3776, %v3778
        %v3781 = vmul.u32 %v3776, %v3779
        %v3782 = vmul.u32 %v3777, %v3778
        %v3783 = vmul.u32 %v3777, %v3779
        %v3784 = vshll.u32 %v3781, 16
        %v3785 = vshrl.u32 %v3781, 16
        %v3786 = vshll.u32 %v3782, 16
        %v3787 = vshrl.u32 %v3782, 16
        %vm3788 = vc.u32 %v3780, %v3784
        %v3789 = vsel %vm3788, 1, 0
        %v3790 = vadd.s32 %v3780, %v3784
        %v3791 = vadd.s32 %v3783, %v3789
        %vm3792 = vc.u32 %v3790, %v3786
        %v3793 = vsel %vm3792, 1, 0
        %v3794 = vadd.s32 %v3790, %v3786
        %v3795 = vadd.s32 %v3791, %v3793
        %v3796 = vadd.s32 %v3795, %v3785
        %v3797 = vadd.s32 %v3796, %v3787
        %v3798 = vand.u32 %v3775, 65535
        %v3799 = vshrl.u32 %v3775, 16
        %v3800 = vand.u32 %v3770, 65535
        %v3801 = vshrl.u32 %v3770, 16
        %v3802 = vmul.u32 %v3798, %v3800
        %v3803 = vmul.u32 %v3798, %v3801
        %v3804 = vmul.u32 %v3799, %v3800
        %v3805 = vmul.u32 %v3799, %v3801
        %v3806 = vshll.u32 %v3803, 16
        %v3807 = vshrl.u32 %v3803, 16
        %v3808 = vshll.u32 %v3804, 16
        %v3809 = vshrl.u32 %v3804, 16
        %vm3810 = vc.u32 %v3802, %v3806
        %v3811 = vsel %vm3810, 1, 0
        %v3812 = vadd.s32 %v3802, %v3806
        %v3813 = vadd.s32 %v3805, %v3811
        %vm3814 = vc.u32 %v3812, %v3808
        %v3815 = vsel %vm3814, 1, 0
        %v3816 = vadd.s32 %v3812, %v3808
        %v3817 = vadd.s32 %v3813, %v3815
        %v3818 = vadd.s32 %v3817, %v3807
        %v3819 = vadd.s32 %v3818, %v3809
        %v3820 = vmul.u32 %v3775, %v3766
        %v3821 = vadd.s32 %v3797, %v3816
        %vm3822 = vc.u32 %v3797, %v3816
        %v3823 = vadd.s32 %v3819, 1
        %v3824 = vsel %vm3822, %v3823, %v3819
        %v3825 = vadd.s32 %v3820, %v3824
        %v3826 = vadd.s32 %v3825, 536870912
        %v3827 = vshrl.u32 %v3826, 30
        %v3828 = vshll.u32 %v3827, 30
        %v3829 = vsub.s32 %v3825, %v3828
        %vm3830 = vcmp.lt.s32.totalorder %v3829, 0
        %v3831 = vsub.s32 0, %v3829
        %v3832 = vsel %vm3830, %v3831, %v3829
        %v3833 = vclz %v3832
        %v3834 = vsub.s32 %v3833, 2
        %vm3835 = vcmp.gt.s32.totalorder 0, %v3834
        %v3836 = vsel %vm3835, 0, %v3834
        %v3837 = vsub.s32 32, %v3836
        %v3838 = vshll.u32 %v3829, %v3836
        %v3839 = vshrl.u32 %v3821, %v3837
        %v3840 = vor.u32 %v3838, %v3839
        %v3841 = vsub.s32 4294967266, %v3836
        %v3842 = vadd.s32 %v3841, 127
        %v3843 = vshll.u32 %v3842, 23
        %v3844 = vor.u32 4788187, %v3843
        %v3845 = vand.u32 2147483647, %v3844
        %v3847 = vcvt.s32.f32 %v3840
        %v3848 = vmul.f32 %v3847, %v3845
        %v3849 = vxor.u32 %v3848, 2147483648
        %v3850 = vsel %vm3729, %v3849, %v3848
        %v3851 = vsub.s32 4, %v3827
        %v3852 = vsel %vm3729, %v3851, %v3827
        %v3853 = vsel %vm3728, %v615, %v3850
        %v3854 = vsel %vm3728, 0, %v3852
        %v3855 = vmul.f32 %v3853, %v3853
        %v3856 = vmul.f32 %v3855, -0.001358992
        %v3857 = vadd.f32 %v3856, 0.041655596
        %v3858 = vmul.f32 %v3855, %v3857
        %v3859 = vadd.f32 %v3858, -0.4999988
        %v3860 = vmul.f32 %v3855, %v3859
        %v3861 = vadd.f32 1.0, %v3860
        %v3862 = vmul.f32 %v3853, %v3853
        %v3863 = vmul.f32 %v3862, -0.00019511016
        %v3864 = vadd.f32 %v3863, 0.008332121
        %v3865 = vmul.f32 %v3862, %v3864
        %v3866 = vadd.f32 %v3865, -0.16666654
        %v3867 = vmul.f32 %v3862, %v3866
        %v3868 = vadd.f32 %v3867, 1.0
        %v3869 = vmul.f32 %v3868, %v3853
        %vm3870 = vweird.f32 %v615
        %v3871 = vadd.s32 %v3854, 3
        %v3872 = vand.u32 %v3871, 3
        %vm3873 = vcmp.lt.s32.totalorder %v3872, 2
        %vm3874 = vcmp.eq.s32.totalorder %v3872, 0
        %v3875 = vxor.u32 %v3869, 2147483648
        %v3876 = vsel %vm3874, %v3861, %v3875
        %vm3877 = vcmp.eq.s32.totalorder %v3872, 2
        %v3878 = vxor.u32 %v3861, 2147483648
        %v3879 = vsel %vm3877, %v3878, %v3869
        %v3880 = vsel %vm3873, %v3876, %v3879
        %v3881 = vsel %vm3870, nan, %v3880
        %v3882 = vand.u32 2147483647, %v616
        %vm3883 = vcmp.le.f32.partialorder %v3882, 0.7853982
        %vm3884 = vcmp.lt.s32.totalorder %v616, 0
        %v3885 = vand.u32 %v616, 2139095040
        %v3886 = vshrl.u32 %v3885, 23
        %v3887 = vsub.s32 %v3886, 127
        %v3888 = vand.u32 2147483647, %v616
        %v3889 = vand.u32 %v3888, 8388607
        %v3890 = vor.u32 %v3889, 8388608
        %v3891 = vsub.s32 0, %v3890
        %v3892 = vadd.s32 %v3887, 1
        %vm3893 = vcmp.gt.s32.totalorder %v3892, 0
        %v3894 = vsel %vm3893, %v3892, 0
        %v3895 = vshrl.u32 %v3894, 5
        %v3896 = vand.u32 %v3894, 31
        %v3897 = vsub.s32 32, %v3896
        %v3898 = vshrl.u32 683565275, %v3897
        %v3899 = vshll.u32 683565275, %v3896
        %v3900 = vshrl.u32 2475754826, %v3897
        %v3901 = vor.u32 %v3899, %v3900
        %v3902 = vshll.u32 2475754826, %v3896
        %v3903 = vshrl.u32 2131351028, %v3897
        %v3904 = vor.u32 %v3902, %v3903
        %v3905 = vshll.u32 2131351028, %v3896
        %v3906 = vshrl.u32 2102212464, %v3897
        %v3907 = vor.u32 %v3905, %v3906
        %v3908 = vshll.u32 2102212464, %v3896
        %v3909 = vshrl.u32 920167782, %v3897
        %v3910 = vor.u32 %v3908, %v3909
        %v3911 = vshll.u32 920167782, %v3896
        %v3912 = vshrl.u32 1326507024, %v3897
        %v3913 = vor.u32 %v3911, %v3912
        %vm3914 = vcmp.lt.s32.totalorder %v3895, 1
        %vm3915 = vcmp.lt.s32.totalorder %v3895, 2
        %vm3916 = vcmp.lt.s32.totalorder %v3895, 3
        %vm3917 = vcmp.lt.s32.totalorder %v3895, 4
        %v3918 = vsel %vm3914, %v3898, %v3901
        %v3919 = vsel %vm3917, %v3907, 2102212464
        %v3920 = vsel %vm3916, %v3904, %v3919
        %v3921 = vsel %vm3915, %v3918, %v3920
        %v3922 = vsel %vm3914, %v3901, %v3904
        %v3923 = vsel %vm3917, %v3910, 920167782
        %v3924 = vsel %vm3916, %v3907, %v3923
        %v3925 = vsel %vm3915, %v3922, %v3924
        %v3926 = vsel %vm3914, %v3904, %v3907
        %v3927 = vsel %vm3917, %v3913, 1326507024
        %v3928 = vsel %vm3916, %v3910, %v3927
        %v3929 = vsel %vm3915, %v3926, %v3928
        %v3930 = vshll.u32 %v3890, 8
        %v3931 = vand.u32 %v3930, 65535
        %v3932 = vshrl.u32 %v3930, 16
        %v3933 = vand.u32 %v3929, 65535
        %v3934 = vshrl.u32 %v3929, 16
        %v3935 = vmul.u32 %v3931, %v3933
        %v3936 = vmul.u32 %v3931, %v3934
        %v3937 = vmul.u32 %v3932, %v3933
        %v3938 = vmul.u32 %v3932, %v3934
        %v3939 = vshll.u32 %v3936, 16
        %v3940 = vshrl.u32 %v3936, 16
        %v3941 = vshll.u32 %v3937, 16
        %v3942 = vshrl.u32 %v3937, 16
        %vm3943 = vc.u32 %v3935, %v3939
        %v3944 = vsel %vm3943, 1, 0
        %v3945 = vadd.s32 %v3935, %v3939
        %v3946 = vadd.s32 %v3938, %v3944
        %vm3947 = vc.u32 %v3945, %v3941
        %v3948 = vsel %vm3947, 1, 0
        %v3949 = vadd.s32 %v3945, %v3941
        %v3950 = vadd.s32 %v3946, %v3948
        %v3951 = vadd.s32 %v3950, %v3940
        %v3952 = vadd.s32 %v3951, %v3942
        %v3953 = vand.u32 %v3930, 65535
        %v3954 = vshrl.u32 %v3930, 16
        %v3955 = vand.u32 %v3925, 65535
        %v3956 = vshrl.u32 %v3925, 16
        %v3957 = vmul.u32 %v3953, %v3955
        %v3958 = vmul.u32 %v3953, %v3956
        %v3959 = vmul.u32 %v3954, %v3955
        %v3960 = vmul.u32 %v3954, %v3956
        %v3961 = vshll.u32 %v3958, 16
        %v3962 = vshrl.u32 %v3958, 16
        %v3963 = vshll.u32 %v3959, 16
        %v3964 = vshrl.u32 %v3959, 16
        %vm3965 = vc.u32 %v3957, %v3961
        %v3966 = vsel %vm3965, 1, 0
        %v3967 = vadd.s32 %v3957, %v3961
        %v3968 = vadd.s32 %v3960, %v3966
        %vm3969 = vc.u32 %v3967, %v3963
        %v3970 = vsel %vm3969, 1, 0
        %v3971 = vadd.s32 %v3967, %v3963
        %v3972 = vadd.s32 %v3968, %v3970
        %v3973 = vadd.s32 %v3972, %v3962
        %v3974 = vadd.s32 %v3973, %v3964
        %v3975 = vmul.u32 %v3930, %v3921
        %v3976 = vadd.s32 %v3952, %v3971
        %vm3977 = vc.u32 %v3952, %v3971
        %v3978 = vadd.s32 %v3974, 1
        %v3979 = vsel %vm3977, %v3978, %v3974
        %v3980 = vadd.s32 %v3975, %v3979
        %v3981 = vadd.s32 %v3980, 536870912
        %v3982 = vshrl.u32 %v3981, 30
        %v3983 = vshll.u32 %v3982, 30
        %v3984 = vsub.s32 %v3980, %v3983
        %vm3985 = vcmp.lt.s32.totalorder %v3984, 0
        %v3986 = vsub.s32 0, %v3984
        %v3987 = vsel %vm3985, %v3986, %v3984
        %v3988 = vclz %v3987
        %v3989 = vsub.s32 %v3988, 2
        %vm3990 = vcmp.gt.s32.totalorder 0, %v3989
        %v3991 = vsel %vm3990, 0, %v3989
        %v3992 = vsub.s32 32, %v3991
        %v3993 = vshll.u32 %v3984, %v3991
        %v3994 = vshrl.u32 %v3976, %v3992
        %v3995 = vor.u32 %v3993, %v3994
        %v3996 = vsub.s32 4294967266, %v3991
        %v3997 = vadd.s32 %v3996, 127
        %v3998 = vshll.u32 %v3997, 23
        %v3999 = vor.u32 4788187, %v3998
        %v4000 = vand.u32 2147483647, %v3999
        %v4002 = vcvt.s32.f32 %v3995
        %v4003 = vmul.f32 %v4002, %v4000
        %v4004 = vxor.u32 %v4003, 2147483648
        %v4005 = vsel %vm3884, %v4004, %v4003
        %v4006 = vsub.s32 4, %v3982
        %v4007 = vsel %vm3884, %v4006, %v3982
        %v4008 = vsel %vm3883, %v616, %v4005
        %v4009 = vsel %vm3883, 0, %v4007
        %v4010 = vmul.f32 %v4008, %v4008
        %v4011 = vmul.f32 %v4010, -0.001358992
        %v4012 = vadd.f32 %v4011, 0.041655596
        %v4013 = vmul.f32 %v4010, %v4012
        %v4014 = vadd.f32 %v4013, -0.4999988
        %v4015 = vmul.f32 %v4010, %v4014
        %v4016 = vadd.f32 1.0, %v4015
        %v4017 = vmul.f32 %v4008, %v4008
        %v4018 = vmul.f32 %v4017, -0.00019511016
        %v4019 = vadd.f32 %v4018, 0.008332121
        %v4020 = vmul.f32 %v4017, %v4019
        %v4021 = vadd.f32 %v4020, -0.16666654
        %v4022 = vmul.f32 %v4017, %v4021
        %v4023 = vadd.f32 %v4022, 1.0
        %v4024 = vmul.f32 %v4023, %v4008
        %vm4025 = vweird.f32 %v616
        %v4026 = vadd.s32 %v4009, 3
        %v4027 = vand.u32 %v4026, 3
        %vm4028 = vcmp.lt.s32.totalorder %v4027, 2
        %vm4029 = vcmp.eq.s32.totalorder %v4027, 0
        %v4030 = vxor.u32 %v4024, 2147483648
        %v4031 = vsel %vm4029, %v4016, %v4030
        %vm4032 = vcmp.eq.s32.totalorder %v4027, 2
        %v4033 = vxor.u32 %v4016, 2147483648
        %v4034 = vsel %vm4032, %v4033, %v4024
        %v4035 = vsel %vm4028, %v4031, %v4034
        %v4036 = vsel %vm4025, nan, %v4035
        %v4037 = vand.u32 2147483647, %v617
        %vm4038 = vcmp.le.f32.partialorder %v4037, 0.7853982
        %vm4039 = vcmp.lt.s32.totalorder %v617, 0
        %v4040 = vand.u32 %v617, 2139095040
        %v4041 = vshrl.u32 %v4040, 23
        %v4042 = vsub.s32 %v4041, 127
        %v4043 = vand.u32 2147483647, %v617
        %v4044 = vand.u32 %v4043, 8388607
        %v4045 = vor.u32 %v4044, 8388608
        %v4046 = vsub.s32 0, %v4045
        %v4047 = vadd.s32 %v4042, 1
        %vm4048 = vcmp.gt.s32.totalorder %v4047, 0
        %v4049 = vsel %vm4048, %v4047, 0
        %v4050 = vshrl.u32 %v4049, 5
        %v4051 = vand.u32 %v4049, 31
        %v4052 = vsub.s32 32, %v4051
        %v4053 = vshrl.u32 683565275, %v4052
        %v4054 = vshll.u32 683565275, %v4051
        %v4055 = vshrl.u32 2475754826, %v4052
        %v4056 = vor.u32 %v4054, %v4055
        %v4057 = vshll.u32 2475754826, %v4051
        %v4058 = vshrl.u32 2131351028, %v4052
        %v4059 = vor.u32 %v4057, %v4058
        %v4060 = vshll.u32 2131351028, %v4051
        %v4061 = vshrl.u32 2102212464, %v4052
        %v4062 = vor.u32 %v4060, %v4061
        %v4063 = vshll.u32 2102212464, %v4051
        %v4064 = vshrl.u32 920167782, %v4052
        %v4065 = vor.u32 %v4063, %v4064
        %v4066 = vshll.u32 920167782, %v4051
        %v4067 = vshrl.u32 1326507024, %v4052
        %v4068 = vor.u32 %v4066, %v4067
        %vm4069 = vcmp.lt.s32.totalorder %v4050, 1
        %vm4070 = vcmp.lt.s32.totalorder %v4050, 2
        %vm4071 = vcmp.lt.s32.totalorder %v4050, 3
        %vm4072 = vcmp.lt.s32.totalorder %v4050, 4
        %v4073 = vsel %vm4069, %v4053, %v4056
        %v4074 = vsel %vm4072, %v4062, 2102212464
        %v4075 = vsel %vm4071, %v4059, %v4074
        %v4076 = vsel %vm4070, %v4073, %v4075
        %v4077 = vsel %vm4069, %v4056, %v4059
        %v4078 = vsel %vm4072, %v4065, 920167782
        %v4079 = vsel %vm4071, %v4062, %v4078
        %v4080 = vsel %vm4070, %v4077, %v4079
        %v4081 = vsel %vm4069, %v4059, %v4062
        %v4082 = vsel %vm4072, %v4068, 1326507024
        %v4083 = vsel %vm4071, %v4065, %v4082
        %v4084 = vsel %vm4070, %v4081, %v4083
        %v4085 = vshll.u32 %v4045, 8
        %v4086 = vand.u32 %v4085, 65535
        %v4087 = vshrl.u32 %v4085, 16
        %v4088 = vand.u32 %v4084, 65535
        %v4089 = vshrl.u32 %v4084, 16
        %v4090 = vmul.u32 %v4086, %v4088
        %v4091 = vmul.u32 %v4086, %v4089
        %v4092 = vmul.u32 %v4087, %v4088
        %v4093 = vmul.u32 %v4087, %v4089
        %v4094 = vshll.u32 %v4091, 16
        %v4095 = vshrl.u32 %v4091, 16
        %v4096 = vshll.u32 %v4092, 16
        %v4097 = vshrl.u32 %v4092, 16
        %vm4098 = vc.u32 %v4090, %v4094
        %v4099 = vsel %vm4098, 1, 0
        %v4100 = vadd.s32 %v4090, %v4094
        %v4101 = vadd.s32 %v4093, %v4099
        %vm4102 = vc.u32 %v4100, %v4096
        %v4103 = vsel %vm4102, 1, 0
        %v4104 = vadd.s32 %v4100, %v4096
        %v4105 = vadd.s32 %v4101, %v4103
        %v4106 = vadd.s32 %v4105, %v4095
        %v4107 = vadd.s32 %v4106, %v4097
        %v4108 = vand.u32 %v4085, 65535
        %v4109 = vshrl.u32 %v4085, 16
        %v4110 = vand.u32 %v4080, 65535
        %v4111 = vshrl.u32 %v4080, 16
        %v4112 = vmul.u32 %v4108, %v4110
        %v4113 = vmul.u32 %v4108, %v4111
        %v4114 = vmul.u32 %v4109, %v4110
        %v4115 = vmul.u32 %v4109, %v4111
        %v4116 = vshll.u32 %v4113, 16
        %v4117 = vshrl.u32 %v4113, 16
        %v4118 = vshll.u32 %v4114, 16
        %v4119 = vshrl.u32 %v4114, 16
        %vm4120 = vc.u32 %v4112, %v4116
        %v4121 = vsel %vm4120, 1, 0
        %v4122 = vadd.s32 %v4112, %v4116
        %v4123 = vadd.s32 %v4115, %v4121
        %vm4124 = vc.u32 %v4122, %v4118
        %v4125 = vsel %vm4124, 1, 0
        %v4126 = vadd.s32 %v4122, %v4118
        %v4127 = vadd.s32 %v4123, %v4125
        %v4128 = vadd.s32 %v4127, %v4117
        %v4129 = vadd.s32 %v4128, %v4119
        %v4130 = vmul.u32 %v4085, %v4076
        %v4131 = vadd.s32 %v4107, %v4126
        %vm4132 = vc.u32 %v4107, %v4126
        %v4133 = vadd.s32 %v4129, 1
        %v4134 = vsel %vm4132, %v4133, %v4129
        %v4135 = vadd.s32 %v4130, %v4134
        %v4136 = vadd.s32 %v4135, 536870912
        %v4137 = vshrl.u32 %v4136, 30
        %v4138 = vshll.u32 %v4137, 30
        %v4139 = vsub.s32 %v4135, %v4138
        %vm4140 = vcmp.lt.s32.totalorder %v4139, 0
        %v4141 = vsub.s32 0, %v4139
        %v4142 = vsel %vm4140, %v4141, %v4139
        %v4143 = vclz %v4142
        %v4144 = vsub.s32 %v4143, 2
        %vm4145 = vcmp.gt.s32.totalorder 0, %v4144
        %v4146 = vsel %vm4145, 0, %v4144
        %v4147 = vsub.s32 32, %v4146
        %v4148 = vshll.u32 %v4139, %v4146
        %v4149 = vshrl.u32 %v4131, %v4147
        %v4150 = vor.u32 %v4148, %v4149
        %v4151 = vsub.s32 4294967266, %v4146
        %v4152 = vadd.s32 %v4151, 127
        %v4153 = vshll.u32 %v4152, 23
        %v4154 = vor.u32 4788187, %v4153
        %v4155 = vand.u32 2147483647, %v4154
        %v4157 = vcvt.s32.f32 %v4150
        %v4158 = vmul.f32 %v4157, %v4155
        %v4159 = vxor.u32 %v4158, 2147483648
        %v4160 = vsel %vm4039, %v4159, %v4158
        %v4161 = vsub.s32 4, %v4137
        %v4162 = vsel %vm4039, %v4161, %v4137
        %v4163 = vsel %vm4038, %v617, %v4160
        %v4164 = vsel %vm4038, 0, %v4162
        %v4165 = vmul.f32 %v4163, %v4163
        %v4166 = vmul.f32 %v4165, -0.001358992
        %v4167 = vadd.f32 %v4166, 0.041655596
        %v4168 = vmul.f32 %v4165, %v4167
        %v4169 = vadd.f32 %v4168, -0.4999988
        %v4170 = vmul.f32 %v4165, %v4169
        %v4171 = vadd.f32 1.0, %v4170
        %v4172 = vmul.f32 %v4163, %v4163
        %v4173 = vmul.f32 %v4172, -0.00019511016
        %v4174 = vadd.f32 %v4173, 0.008332121
        %v4175 = vmul.f32 %v4172, %v4174
        %v4176 = vadd.f32 %v4175, -0.16666654
        %v4177 = vmul.f32 %v4172, %v4176
        %v4178 = vadd.f32 %v4177, 1.0
        %v4179 = vmul.f32 %v4178, %v4163
        %vm4180 = vweird.f32 %v617
        %v4181 = vadd.s32 %v4164, 3
        %v4182 = vand.u32 %v4181, 3
        %vm4183 = vcmp.lt.s32.totalorder %v4182, 2
        %vm4184 = vcmp.eq.s32.totalorder %v4182, 0
        %v4185 = vxor.u32 %v4179, 2147483648
        %v4186 = vsel %vm4184, %v4171, %v4185
        %vm4187 = vcmp.eq.s32.totalorder %v4182, 2
        %v4188 = vxor.u32 %v4171, 2147483648
        %v4189 = vsel %vm4187, %v4188, %v4179
        %v4190 = vsel %vm4183, %v4186, %v4189
        %v4191 = vsel %vm4180, nan, %v4190
        %v4192 = vand.u32 2147483647, %v618
        %vm4193 = vcmp.le.f32.partialorder %v4192, 0.7853982
        %vm4194 = vcmp.lt.s32.totalorder %v618, 0
        %v4195 = vand.u32 %v618, 2139095040
        %v4196 = vshrl.u32 %v4195, 23
        %v4197 = vsub.s32 %v4196, 127
        %v4198 = vand.u32 2147483647, %v618
        %v4199 = vand.u32 %v4198, 8388607
        %v4200 = vor.u32 %v4199, 8388608
        %v4201 = vsub.s32 0, %v4200
        %v4202 = vadd.s32 %v4197, 1
        %vm4203 = vcmp.gt.s32.totalorder %v4202, 0
        %v4204 = vsel %vm4203, %v4202, 0
        %v4205 = vshrl.u32 %v4204, 5
        %v4206 = vand.u32 %v4204, 31
        %v4207 = vsub.s32 32, %v4206
        %v4208 = vshrl.u32 683565275, %v4207
        %v4209 = vshll.u32 683565275, %v4206
        %v4210 = vshrl.u32 2475754826, %v4207
        %v4211 = vor.u32 %v4209, %v4210
        %v4212 = vshll.u32 2475754826, %v4206
        %v4213 = vshrl.u32 2131351028, %v4207
        %v4214 = vor.u32 %v4212, %v4213
        %v4215 = vshll.u32 2131351028, %v4206
        %v4216 = vshrl.u32 2102212464, %v4207
        %v4217 = vor.u32 %v4215, %v4216
        %v4218 = vshll.u32 2102212464, %v4206
        %v4219 = vshrl.u32 920167782, %v4207
        %v4220 = vor.u32 %v4218, %v4219
        %v4221 = vshll.u32 920167782, %v4206
        %v4222 = vshrl.u32 1326507024, %v4207
        %v4223 = vor.u32 %v4221, %v4222
        %vm4224 = vcmp.lt.s32.totalorder %v4205, 1
        %vm4225 = vcmp.lt.s32.totalorder %v4205, 2
        %vm4226 = vcmp.lt.s32.totalorder %v4205, 3
        %vm4227 = vcmp.lt.s32.totalorder %v4205, 4
        %v4228 = vsel %vm4224, %v4208, %v4211
        %v4229 = vsel %vm4227, %v4217, 2102212464
        %v4230 = vsel %vm4226, %v4214, %v4229
        %v4231 = vsel %vm4225, %v4228, %v4230
        %v4232 = vsel %vm4224, %v4211, %v4214
        %v4233 = vsel %vm4227, %v4220, 920167782
        %v4234 = vsel %vm4226, %v4217, %v4233
        %v4235 = vsel %vm4225, %v4232, %v4234
        %v4236 = vsel %vm4224, %v4214, %v4217
        %v4237 = vsel %vm4227, %v4223, 1326507024
        %v4238 = vsel %vm4226, %v4220, %v4237
        %v4239 = vsel %vm4225, %v4236, %v4238
        %v4240 = vshll.u32 %v4200, 8
        %v4241 = vand.u32 %v4240, 65535
        %v4242 = vshrl.u32 %v4240, 16
        %v4243 = vand.u32 %v4239, 65535
        %v4244 = vshrl.u32 %v4239, 16
        %v4245 = vmul.u32 %v4241, %v4243
        %v4246 = vmul.u32 %v4241, %v4244
        %v4247 = vmul.u32 %v4242, %v4243
        %v4248 = vmul.u32 %v4242, %v4244
        %v4249 = vshll.u32 %v4246, 16
        %v4250 = vshrl.u32 %v4246, 16
        %v4251 = vshll.u32 %v4247, 16
        %v4252 = vshrl.u32 %v4247, 16
        %vm4253 = vc.u32 %v4245, %v4249
        %v4254 = vsel %vm4253, 1, 0
        %v4255 = vadd.s32 %v4245, %v4249
        %v4256 = vadd.s32 %v4248, %v4254
        %vm4257 = vc.u32 %v4255, %v4251
        %v4258 = vsel %vm4257, 1, 0
        %v4259 = vadd.s32 %v4255, %v4251
        %v4260 = vadd.s32 %v4256, %v4258
        %v4261 = vadd.s32 %v4260, %v4250
        %v4262 = vadd.s32 %v4261, %v4252
        %v4263 = vand.u32 %v4240, 65535
        %v4264 = vshrl.u32 %v4240, 16
        %v4265 = vand.u32 %v4235, 65535
        %v4266 = vshrl.u32 %v4235, 16
        %v4267 = vmul.u32 %v4263, %v4265
        %v4268 = vmul.u32 %v4263, %v4266
        %v4269 = vmul.u32 %v4264, %v4265
        %v4270 = vmul.u32 %v4264, %v4266
        %v4271 = vshll.u32 %v4268, 16
        %v4272 = vshrl.u32 %v4268, 16
        %v4273 = vshll.u32 %v4269, 16
        %v4274 = vshrl.u32 %v4269, 16
        %vm4275 = vc.u32 %v4267, %v4271
        %v4276 = vsel %vm4275, 1, 0
        %v4277 = vadd.s32 %v4267, %v4271
        %v4278 = vadd.s32 %v4270, %v4276
        %vm4279 = vc.u32 %v4277, %v4273
        %v4280 = vsel %vm4279, 1, 0
        %v4281 = vadd.s32 %v4277, %v4273
        %v4282 = vadd.s32 %v4278, %v4280
        %v4283 = vadd.s32 %v4282, %v4272
        %v4284 = vadd.s32 %v4283, %v4274
        %v4285 = vmul.u32 %v4240, %v4231
        %v4286 = vadd.s32 %v4262, %v4281
        %vm4287 = vc.u32 %v4262, %v4281
        %v4288 = vadd.s32 %v4284, 1
        %v4289 = vsel %vm4287, %v4288, %v4284
        %v4290 = vadd.s32 %v4285, %v4289
        %v4291 = vadd.s32 %v4290, 536870912
        %v4292 = vshrl.u32 %v4291, 30
        %v4293 = vshll.u32 %v4292, 30
        %v4294 = vsub.s32 %v4290, %v4293
        %vm4295 = vcmp.lt.s32.totalorder %v4294, 0
        %v4296 = vsub.s32 0, %v4294
        %v4297 = vsel %vm4295, %v4296, %v4294
        %v4298 = vclz %v4297
        %v4299 = vsub.s32 %v4298, 2
        %vm4300 = vcmp.gt.s32.totalorder 0, %v4299
        %v4301 = vsel %vm4300, 0, %v4299
        %v4302 = vsub.s32 32, %v4301
        %v4303 = vshll.u32 %v4294, %v4301
        %v4304 = vshrl.u32 %v4286, %v4302
        %v4305 = vor.u32 %v4303, %v4304
        %v4306 = vsub.s32 4294967266, %v4301
        %v4307 = vadd.s32 %v4306, 127
        %v4308 = vshll.u32 %v4307, 23
        %v4309 = vor.u32 4788187, %v4308
        %v4310 = vand.u32 2147483647, %v4309
        %v4312 = vcvt.s32.f32 %v4305
        %v4313 = vmul.f32 %v4312, %v4310
        %v4314 = vxor.u32 %v4313, 2147483648
        %v4315 = vsel %vm4194, %v4314, %v4313
        %v4316 = vsub.s32 4, %v4292
        %v4317 = vsel %vm4194, %v4316, %v4292
        %v4318 = vsel %vm4193, %v618, %v4315
        %v4319 = vsel %vm4193, 0, %v4317
        %v4320 = vmul.f32 %v4318, %v4318
        %v4321 = vmul.f32 %v4320, -0.001358992
        %v4322 = vadd.f32 %v4321, 0.041655596
        %v4323 = vmul.f32 %v4320, %v4322
        %v4324 = vadd.f32 %v4323, -0.4999988
        %v4325 = vmul.f32 %v4320, %v4324
        %v4326 = vadd.f32 1.0, %v4325
        %v4327 = vmul.f32 %v4318, %v4318
        %v4328 = vmul.f32 %v4327, -0.00019511016
        %v4329 = vadd.f32 %v4328, 0.008332121
        %v4330 = vmul.f32 %v4327, %v4329
        %v4331 = vadd.f32 %v4330, -0.16666654
        %v4332 = vmul.f32 %v4327, %v4331
        %v4333 = vadd.f32 %v4332, 1.0
        %v4334 = vmul.f32 %v4333, %v4318
        %vm4335 = vweird.f32 %v618
        %v4336 = vadd.s32 %v4319, 3
        %v4337 = vand.u32 %v4336, 3
        %vm4338 = vcmp.lt.s32.totalorder %v4337, 2
        %vm4339 = vcmp.eq.s32.totalorder %v4337, 0
        %v4340 = vxor.u32 %v4334, 2147483648
        %v4341 = vsel %vm4339, %v4326, %v4340
        %vm4342 = vcmp.eq.s32.totalorder %v4337, 2
        %v4343 = vxor.u32 %v4326, 2147483648
        %v4344 = vsel %vm4342, %v4343, %v4334
        %v4345 = vsel %vm4338, %v4341, %v4344
        %v4346 = vsel %vm4335, nan, %v4345
        %v4347 = vand.u32 2147483647, %v619
        %vm4348 = vcmp.le.f32.partialorder %v4347, 0.7853982
        %vm4349 = vcmp.lt.s32.totalorder %v619, 0
        %v4350 = vand.u32 %v619, 2139095040
        %v4351 = vshrl.u32 %v4350, 23
        %v4352 = vsub.s32 %v4351, 127
        %v4353 = vand.u32 2147483647, %v619
        %v4354 = vand.u32 %v4353, 8388607
        %v4355 = vor.u32 %v4354, 8388608
        %v4356 = vsub.s32 0, %v4355
        %v4357 = vadd.s32 %v4352, 1
        %vm4358 = vcmp.gt.s32.totalorder %v4357, 0
        %v4359 = vsel %vm4358, %v4357, 0
        %v4360 = vshrl.u32 %v4359, 5
        %v4361 = vand.u32 %v4359, 31
        %v4362 = vsub.s32 32, %v4361
        %v4363 = vshrl.u32 683565275, %v4362
        %v4364 = vshll.u32 683565275, %v4361
        %v4365 = vshrl.u32 2475754826, %v4362
        %v4366 = vor.u32 %v4364, %v4365
        %v4367 = vshll.u32 2475754826, %v4361
        %v4368 = vshrl.u32 2131351028, %v4362
        %v4369 = vor.u32 %v4367, %v4368
        %v4370 = vshll.u32 2131351028, %v4361
        %v4371 = vshrl.u32 2102212464, %v4362
        %v4372 = vor.u32 %v4370, %v4371
        %v4373 = vshll.u32 2102212464, %v4361
        %v4374 = vshrl.u32 920167782, %v4362
        %v4375 = vor.u32 %v4373, %v4374
        %v4376 = vshll.u32 920167782, %v4361
        %v4377 = vshrl.u32 1326507024, %v4362
        %v4378 = vor.u32 %v4376, %v4377
        %vm4379 = vcmp.lt.s32.totalorder %v4360, 1
        %vm4380 = vcmp.lt.s32.totalorder %v4360, 2
        %vm4381 = vcmp.lt.s32.totalorder %v4360, 3
        %vm4382 = vcmp.lt.s32.totalorder %v4360, 4
        %v4383 = vsel %vm4379, %v4363, %v4366
        %v4384 = vsel %vm4382, %v4372, 2102212464
        %v4385 = vsel %vm4381, %v4369, %v4384
        %v4386 = vsel %vm4380, %v4383, %v4385
        %v4387 = vsel %vm4379, %v4366, %v4369
        %v4388 = vsel %vm4382, %v4375, 920167782
        %v4389 = vsel %vm4381, %v4372, %v4388
        %v4390 = vsel %vm4380, %v4387, %v4389
        %v4391 = vsel %vm4379, %v4369, %v4372
        %v4392 = vsel %vm4382, %v4378, 1326507024
        %v4393 = vsel %vm4381, %v4375, %v4392
        %v4394 = vsel %vm4380, %v4391, %v4393
        %v4395 = vshll.u32 %v4355, 8
        %v4396 = vand.u32 %v4395, 65535
        %v4397 = vshrl.u32 %v4395, 16
        %v4398 = vand.u32 %v4394, 65535
        %v4399 = vshrl.u32 %v4394, 16
        %v4400 = vmul.u32 %v4396, %v4398
        %v4401 = vmul.u32 %v4396, %v4399
        %v4402 = vmul.u32 %v4397, %v4398
        %v4403 = vmul.u32 %v4397, %v4399
        %v4404 = vshll.u32 %v4401, 16
        %v4405 = vshrl.u32 %v4401, 16
        %v4406 = vshll.u32 %v4402, 16
        %v4407 = vshrl.u32 %v4402, 16
        %vm4408 = vc.u32 %v4400, %v4404
        %v4409 = vsel %vm4408, 1, 0
        %v4410 = vadd.s32 %v4400, %v4404
        %v4411 = vadd.s32 %v4403, %v4409
        %vm4412 = vc.u32 %v4410, %v4406
        %v4413 = vsel %vm4412, 1, 0
        %v4414 = vadd.s32 %v4410, %v4406
        %v4415 = vadd.s32 %v4411, %v4413
        %v4416 = vadd.s32 %v4415, %v4405
        %v4417 = vadd.s32 %v4416, %v4407
        %v4418 = vand.u32 %v4395, 65535
        %v4419 = vshrl.u32 %v4395, 16
        %v4420 = vand.u32 %v4390, 65535
        %v4421 = vshrl.u32 %v4390, 16
        %v4422 = vmul.u32 %v4418, %v4420
        %v4423 = vmul.u32 %v4418, %v4421
        %v4424 = vmul.u32 %v4419, %v4420
        %v4425 = vmul.u32 %v4419, %v4421
        %v4426 = vshll.u32 %v4423, 16
        %v4427 = vshrl.u32 %v4423, 16
        %v4428 = vshll.u32 %v4424, 16
        %v4429 = vshrl.u32 %v4424, 16
        %vm4430 = vc.u32 %v4422, %v4426
        %v4431 = vsel %vm4430, 1, 0
        %v4432 = vadd.s32 %v4422, %v4426
        %v4433 = vadd.s32 %v4425, %v4431
        %vm4434 = vc.u32 %v4432, %v4428
        %v4435 = vsel %vm4434, 1, 0
        %v4436 = vadd.s32 %v4432, %v4428
        %v4437 = vadd.s32 %v4433, %v4435
        %v4438 = vadd.s32 %v4437, %v4427
        %v4439 = vadd.s32 %v4438, %v4429
        %v4440 = vmul.u32 %v4395, %v4386
        %v4441 = vadd.s32 %v4417, %v4436
        %vm4442 = vc.u32 %v4417, %v4436
        %v4443 = vadd.s32 %v4439, 1
        %v4444 = vsel %vm4442, %v4443, %v4439
        %v4445 = vadd.s32 %v4440, %v4444
        %v4446 = vadd.s32 %v4445, 536870912
        %v4447 = vshrl.u32 %v4446, 30
        %v4448 = vshll.u32 %v4447, 30
        %v4449 = vsub.s32 %v4445, %v4448
        %vm4450 = vcmp.lt.s32.totalorder %v4449, 0
        %v4451 = vsub.s32 0, %v4449
        %v4452 = vsel %vm4450, %v4451, %v4449
        %v4453 = vclz %v4452
        %v4454 = vsub.s32 %v4453, 2
        %vm4455 = vcmp.gt.s32.totalorder 0, %v4454
        %v4456 = vsel %vm4455, 0, %v4454
        %v4457 = vsub.s32 32, %v4456
        %v4458 = vshll.u32 %v4449, %v4456
        %v4459 = vshrl.u32 %v4441, %v4457
        %v4460 = vor.u32 %v4458, %v4459
        %v4461 = vsub.s32 4294967266, %v4456
        %v4462 = vadd.s32 %v4461, 127
        %v4463 = vshll.u32 %v4462, 23
        %v4464 = vor.u32 4788187, %v4463
        %v4465 = vand.u32 2147483647, %v4464
        %v4467 = vcvt.s32.f32 %v4460
        %v4468 = vmul.f32 %v4467, %v4465
        %v4469 = vxor.u32 %v4468, 2147483648
        %v4470 = vsel %vm4349, %v4469, %v4468
        %v4471 = vsub.s32 4, %v4447
        %v4472 = vsel %vm4349, %v4471, %v4447
        %v4473 = vsel %vm4348, %v619, %v4470
        %v4474 = vsel %vm4348, 0, %v4472
        %v4475 = vmul.f32 %v4473, %v4473
        %v4476 = vmul.f32 %v4475, -0.001358992
        %v4477 = vadd.f32 %v4476, 0.041655596
        %v4478 = vmul.f32 %v4475, %v4477
        %v4479 = vadd.f32 %v4478, -0.4999988
        %v4480 = vmul.f32 %v4475, %v4479
        %v4481 = vadd.f32 1.0, %v4480
        %v4482 = vmul.f32 %v4473, %v4473
        %v4483 = vmul.f32 %v4482, -0.00019511016
        %v4484 = vadd.f32 %v4483, 0.008332121
        %v4485 = vmul.f32 %v4482, %v4484
        %v4486 = vadd.f32 %v4485, -0.16666654
        %v4487 = vmul.f32 %v4482, %v4486
        %v4488 = vadd.f32 %v4487, 1.0
        %v4489 = vmul.f32 %v4488, %v4473
        %vm4490 = vweird.f32 %v619
        %v4491 = vadd.s32 %v4474, 3
        %v4492 = vand.u32 %v4491, 3
        %vm4493 = vcmp.lt.s32.totalorder %v4492, 2
        %vm4494 = vcmp.eq.s32.totalorder %v4492, 0
        %v4495 = vxor.u32 %v4489, 2147483648
        %v4496 = vsel %vm4494, %v4481, %v4495
        %vm4497 = vcmp.eq.s32.totalorder %v4492, 2
        %v4498 = vxor.u32 %v4481, 2147483648
        %v4499 = vsel %vm4497, %v4498, %v4489
        %v4500 = vsel %vm4493, %v4496, %v4499
        %v4501 = vsel %vm4490, nan, %v4500
        %v4502 = vand.u32 2147483647, %v620
        %vm4503 = vcmp.le.f32.partialorder %v4502, 0.7853982
        %vm4504 = vcmp.lt.s32.totalorder %v620, 0
        %v4505 = vand.u32 %v620, 2139095040
        %v4506 = vshrl.u32 %v4505, 23
        %v4507 = vsub.s32 %v4506, 127
        %v4508 = vand.u32 2147483647, %v620
        %v4509 = vand.u32 %v4508, 8388607
        %v4510 = vor.u32 %v4509, 8388608
        %v4511 = vsub.s32 0, %v4510
        %v4512 = vadd.s32 %v4507, 1
        %vm4513 = vcmp.gt.s32.totalorder %v4512, 0
        %v4514 = vsel %vm4513, %v4512, 0
        %v4515 = vshrl.u32 %v4514, 5
        %v4516 = vand.u32 %v4514, 31
        %v4517 = vsub.s32 32, %v4516
        %v4518 = vshrl.u32 683565275, %v4517
        %v4519 = vshll.u32 683565275, %v4516
        %v4520 = vshrl.u32 2475754826, %v4517
        %v4521 = vor.u32 %v4519, %v4520
        %v4522 = vshll.u32 2475754826, %v4516
        %v4523 = vshrl.u32 2131351028, %v4517
        %v4524 = vor.u32 %v4522, %v4523
        %v4525 = vshll.u32 2131351028, %v4516
        %v4526 = vshrl.u32 2102212464, %v4517
        %v4527 = vor.u32 %v4525, %v4526
        %v4528 = vshll.u32 2102212464, %v4516
        %v4529 = vshrl.u32 920167782, %v4517
        %v4530 = vor.u32 %v4528, %v4529
        %v4531 = vshll.u32 920167782, %v4516
        %v4532 = vshrl.u32 1326507024, %v4517
        %v4533 = vor.u32 %v4531, %v4532
        %vm4534 = vcmp.lt.s32.totalorder %v4515, 1
        %vm4535 = vcmp.lt.s32.totalorder %v4515, 2
        %vm4536 = vcmp.lt.s32.totalorder %v4515, 3
        %vm4537 = vcmp.lt.s32.totalorder %v4515, 4
        %v4538 = vsel %vm4534, %v4518, %v4521
        %v4539 = vsel %vm4537, %v4527, 2102212464
        %v4540 = vsel %vm4536, %v4524, %v4539
        %v4541 = vsel %vm4535, %v4538, %v4540
        %v4542 = vsel %vm4534, %v4521, %v4524
        %v4543 = vsel %vm4537, %v4530, 920167782
        %v4544 = vsel %vm4536, %v4527, %v4543
        %v4545 = vsel %vm4535, %v4542, %v4544
        %v4546 = vsel %vm4534, %v4524, %v4527
        %v4547 = vsel %vm4537, %v4533, 1326507024
        %v4548 = vsel %vm4536, %v4530, %v4547
        %v4549 = vsel %vm4535, %v4546, %v4548
        %v4550 = vshll.u32 %v4510, 8
        %v4551 = vand.u32 %v4550, 65535
        %v4552 = vshrl.u32 %v4550, 16
        %v4553 = vand.u32 %v4549, 65535
        %v4554 = vshrl.u32 %v4549, 16
        %v4555 = vmul.u32 %v4551, %v4553
        %v4556 = vmul.u32 %v4551, %v4554
        %v4557 = vmul.u32 %v4552, %v4553
        %v4558 = vmul.u32 %v4552, %v4554
        %v4559 = vshll.u32 %v4556, 16
        %v4560 = vshrl.u32 %v4556, 16
        %v4561 = vshll.u32 %v4557, 16
        %v4562 = vshrl.u32 %v4557, 16
        %vm4563 = vc.u32 %v4555, %v4559
        %v4564 = vsel %vm4563, 1, 0
        %v4565 = vadd.s32 %v4555, %v4559
        %v4566 = vadd.s32 %v4558, %v4564
        %vm4567 = vc.u32 %v4565, %v4561
        %v4568 = vsel %vm4567, 1, 0
        %v4569 = vadd.s32 %v4565, %v4561
        %v4570 = vadd.s32 %v4566, %v4568
        %v4571 = vadd.s32 %v4570, %v4560
        %v4572 = vadd.s32 %v4571, %v4562
        %v4573 = vand.u32 %v4550, 65535
        %v4574 = vshrl.u32 %v4550, 16
        %v4575 = vand.u32 %v4545, 65535
        %v4576 = vshrl.u32 %v4545, 16
        %v4577 = vmul.u32 %v4573, %v4575
        %v4578 = vmul.u32 %v4573, %v4576
        %v4579 = vmul.u32 %v4574, %v4575
        %v4580 = vmul.u32 %v4574, %v4576
        %v4581 = vshll.u32 %v4578, 16
        %v4582 = vshrl.u32 %v4578, 16
        %v4583 = vshll.u32 %v4579, 16
        %v4584 = vshrl.u32 %v4579, 16
        %vm4585 = vc.u32 %v4577, %v4581
        %v4586 = vsel %vm4585, 1, 0
        %v4587 = vadd.s32 %v4577, %v4581
        %v4588 = vadd.s32 %v4580, %v4586
        %vm4589 = vc.u32 %v4587, %v4583
        %v4590 = vsel %vm4589, 1, 0
        %v4591 = vadd.s32 %v4587, %v4583
        %v4592 = vadd.s32 %v4588, %v4590
        %v4593 = vadd.s32 %v4592, %v4582
        %v4594 = vadd.s32 %v4593, %v4584
        %v4595 = vmul.u32 %v4550, %v4541
        %v4596 = vadd.s32 %v4572, %v4591
        %vm4597 = vc.u32 %v4572, %v4591
        %v4598 = vadd.s32 %v4594, 1
        %v4599 = vsel %vm4597, %v4598, %v4594
        %v4600 = vadd.s32 %v4595, %v4599
        %v4601 = vadd.s32 %v4600, 536870912
        %v4602 = vshrl.u32 %v4601, 30
        %v4603 = vshll.u32 %v4602, 30
        %v4604 = vsub.s32 %v4600, %v4603
        %vm4605 = vcmp.lt.s32.totalorder %v4604, 0
        %v4606 = vsub.s32 0, %v4604
        %v4607 = vsel %vm4605, %v4606, %v4604
        %v4608 = vclz %v4607
        %v4609 = vsub.s32 %v4608, 2
        %vm4610 = vcmp.gt.s32.totalorder 0, %v4609
        %v4611 = vsel %vm4610, 0, %v4609
        %v4612 = vsub.s32 32, %v4611
        %v4613 = vshll.u32 %v4604, %v4611
        %v4614 = vshrl.u32 %v4596, %v4612
        %v4615 = vor.u32 %v4613, %v4614
        %v4616 = vsub.s32 4294967266, %v4611
        %v4617 = vadd.s32 %v4616, 127
        %v4618 = vshll.u32 %v4617, 23
        %v4619 = vor.u32 4788187, %v4618
        %v4620 = vand.u32 2147483647, %v4619
        %v4622 = vcvt.s32.f32 %v4615
        %v4623 = vmul.f32 %v4622, %v4620
        %v4624 = vxor.u32 %v4623, 2147483648
        %v4625 = vsel %vm4504, %v4624, %v4623
        %v4626 = vsub.s32 4, %v4602
        %v4627 = vsel %vm4504, %v4626, %v4602
        %v4628 = vsel %vm4503, %v620, %v4625
        %v4629 = vsel %vm4503, 0, %v4627
        %v4630 = vmul.f32 %v4628, %v4628
        %v4631 = vmul.f32 %v4630, -0.001358992
        %v4632 = vadd.f32 %v4631, 0.041655596
        %v4633 = vmul.f32 %v4630, %v4632
        %v4634 = vadd.f32 %v4633, -0.4999988
        %v4635 = vmul.f32 %v4630, %v4634
        %v4636 = vadd.f32 1.0, %v4635
        %v4637 = vmul.f32 %v4628, %v4628
        %v4638 = vmul.f32 %v4637, -0.00019511016
        %v4639 = vadd.f32 %v4638, 0.008332121
        %v4640 = vmul.f32 %v4637, %v4639
        %v4641 = vadd.f32 %v4640, -0.16666654
        %v4642 = vmul.f32 %v4637, %v4641
        %v4643 = vadd.f32 %v4642, 1.0
        %v4644 = vmul.f32 %v4643, %v4628
        %vm4645 = vweird.f32 %v620
        %v4646 = vadd.s32 %v4629, 3
        %v4647 = vand.u32 %v4646, 3
        %vm4648 = vcmp.lt.s32.totalorder %v4647, 2
        %vm4649 = vcmp.eq.s32.totalorder %v4647, 0
        %v4650 = vxor.u32 %v4644, 2147483648
        %v4651 = vsel %vm4649, %v4636, %v4650
        %vm4652 = vcmp.eq.s32.totalorder %v4647, 2
        %v4653 = vxor.u32 %v4636, 2147483648
        %v4654 = vsel %vm4652, %v4653, %v4644
        %v4655 = vsel %vm4648, %v4651, %v4654
        %v4656 = vsel %vm4645, nan, %v4655
        %v4657 = vand.u32 2147483647, %v621
        %vm4658 = vcmp.le.f32.partialorder %v4657, 0.7853982
        %vm4659 = vcmp.lt.s32.totalorder %v621, 0
        %v4660 = vand.u32 %v621, 2139095040
        %v4661 = vshrl.u32 %v4660, 23
        %v4662 = vsub.s32 %v4661, 127
        %v4663 = vand.u32 2147483647, %v621
        %v4664 = vand.u32 %v4663, 8388607
        %v4665 = vor.u32 %v4664, 8388608
        %v4666 = vsub.s32 0, %v4665
        %v4667 = vadd.s32 %v4662, 1
        %vm4668 = vcmp.gt.s32.totalorder %v4667, 0
        %v4669 = vsel %vm4668, %v4667, 0
        %v4670 = vshrl.u32 %v4669, 5
        %v4671 = vand.u32 %v4669, 31
        %v4672 = vsub.s32 32, %v4671
        %v4673 = vshrl.u32 683565275, %v4672
        %v4674 = vshll.u32 683565275, %v4671
        %v4675 = vshrl.u32 2475754826, %v4672
        %v4676 = vor.u32 %v4674, %v4675
        %v4677 = vshll.u32 2475754826, %v4671
        %v4678 = vshrl.u32 2131351028, %v4672
        %v4679 = vor.u32 %v4677, %v4678
        %v4680 = vshll.u32 2131351028, %v4671
        %v4681 = vshrl.u32 2102212464, %v4672
        %v4682 = vor.u32 %v4680, %v4681
        %v4683 = vshll.u32 2102212464, %v4671
        %v4684 = vshrl.u32 920167782, %v4672
        %v4685 = vor.u32 %v4683, %v4684
        %v4686 = vshll.u32 920167782, %v4671
        %v4687 = vshrl.u32 1326507024, %v4672
        %v4688 = vor.u32 %v4686, %v4687
        %vm4689 = vcmp.lt.s32.totalorder %v4670, 1
        %vm4690 = vcmp.lt.s32.totalorder %v4670, 2
        %vm4691 = vcmp.lt.s32.totalorder %v4670, 3
        %vm4692 = vcmp.lt.s32.totalorder %v4670, 4
        %v4693 = vsel %vm4689, %v4673, %v4676
        %v4694 = vsel %vm4692, %v4682, 2102212464
        %v4695 = vsel %vm4691, %v4679, %v4694
        %v4696 = vsel %vm4690, %v4693, %v4695
        %v4697 = vsel %vm4689, %v4676, %v4679
        %v4698 = vsel %vm4692, %v4685, 920167782
        %v4699 = vsel %vm4691, %v4682, %v4698
        %v4700 = vsel %vm4690, %v4697, %v4699
        %v4701 = vsel %vm4689, %v4679, %v4682
        %v4702 = vsel %vm4692, %v4688, 1326507024
        %v4703 = vsel %vm4691, %v4685, %v4702
        %v4704 = vsel %vm4690, %v4701, %v4703
        %v4705 = vshll.u32 %v4665, 8
        %v4706 = vand.u32 %v4705, 65535
        %v4707 = vshrl.u32 %v4705, 16
        %v4708 = vand.u32 %v4704, 65535
        %v4709 = vshrl.u32 %v4704, 16
        %v4710 = vmul.u32 %v4706, %v4708
        %v4711 = vmul.u32 %v4706, %v4709
        %v4712 = vmul.u32 %v4707, %v4708
        %v4713 = vmul.u32 %v4707, %v4709
        %v4714 = vshll.u32 %v4711, 16
        %v4715 = vshrl.u32 %v4711, 16
        %v4716 = vshll.u32 %v4712, 16
        %v4717 = vshrl.u32 %v4712, 16
        %vm4718 = vc.u32 %v4710, %v4714
        %v4719 = vsel %vm4718, 1, 0
        %v4720 = vadd.s32 %v4710, %v4714
        %v4721 = vadd.s32 %v4713, %v4719
        %vm4722 = vc.u32 %v4720, %v4716
        %v4723 = vsel %vm4722, 1, 0
        %v4724 = vadd.s32 %v4720, %v4716
        %v4725 = vadd.s32 %v4721, %v4723
        %v4726 = vadd.s32 %v4725, %v4715
        %v4727 = vadd.s32 %v4726, %v4717
        %v4728 = vand.u32 %v4705, 65535
        %v4729 = vshrl.u32 %v4705, 16
        %v4730 = vand.u32 %v4700, 65535
        %v4731 = vshrl.u32 %v4700, 16
        %v4732 = vmul.u32 %v4728, %v4730
        %v4733 = vmul.u32 %v4728, %v4731
        %v4734 = vmul.u32 %v4729, %v4730
        %v4735 = vmul.u32 %v4729, %v4731
        %v4736 = vshll.u32 %v4733, 16
        %v4737 = vshrl.u32 %v4733, 16
        %v4738 = vshll.u32 %v4734, 16
        %v4739 = vshrl.u32 %v4734, 16
        %vm4740 = vc.u32 %v4732, %v4736
        %v4741 = vsel %vm4740, 1, 0
        %v4742 = vadd.s32 %v4732, %v4736
        %v4743 = vadd.s32 %v4735, %v4741
        %vm4744 = vc.u32 %v4742, %v4738
        %v4745 = vsel %vm4744, 1, 0
        %v4746 = vadd.s32 %v4742, %v4738
        %v4747 = vadd.s32 %v4743, %v4745
        %v4748 = vadd.s32 %v4747, %v4737
        %v4749 = vadd.s32 %v4748, %v4739
        %v4750 = vmul.u32 %v4705, %v4696
        %v4751 = vadd.s32 %v4727, %v4746
        %vm4752 = vc.u32 %v4727, %v4746
        %v4753 = vadd.s32 %v4749, 1
        %v4754 = vsel %vm4752, %v4753, %v4749
        %v4755 = vadd.s32 %v4750, %v4754
        %v4756 = vadd.s32 %v4755, 536870912
        %v4757 = vshrl.u32 %v4756, 30
        %v4758 = vshll.u32 %v4757, 30
        %v4759 = vsub.s32 %v4755, %v4758
        %vm4760 = vcmp.lt.s32.totalorder %v4759, 0
        %v4761 = vsub.s32 0, %v4759
        %v4762 = vsel %vm4760, %v4761, %v4759
        %v4763 = vclz %v4762
        %v4764 = vsub.s32 %v4763, 2
        %vm4765 = vcmp.gt.s32.totalorder 0, %v4764
        %v4766 = vsel %vm4765, 0, %v4764
        %v4767 = vsub.s32 32, %v4766
        %v4768 = vshll.u32 %v4759, %v4766
        %v4769 = vshrl.u32 %v4751, %v4767
        %v4770 = vor.u32 %v4768, %v4769
        %v4771 = vsub.s32 4294967266, %v4766
        %v4772 = vadd.s32 %v4771, 127
        %v4773 = vshll.u32 %v4772, 23
        %v4774 = vor.u32 4788187, %v4773
        %v4775 = vand.u32 2147483647, %v4774
        %v4777 = vcvt.s32.f32 %v4770
        %v4778 = vmul.f32 %v4777, %v4775
        %v4779 = vxor.u32 %v4778, 2147483648
        %v4780 = vsel %vm4659, %v4779, %v4778
        %v4781 = vsub.s32 4, %v4757
        %v4782 = vsel %vm4659, %v4781, %v4757
        %v4783 = vsel %vm4658, %v621, %v4780
        %v4784 = vsel %vm4658, 0, %v4782
        %v4785 = vmul.f32 %v4783, %v4783
        %v4786 = vmul.f32 %v4785, -0.001358992
        %v4787 = vadd.f32 %v4786, 0.041655596
        %v4788 = vmul.f32 %v4785, %v4787
        %v4789 = vadd.f32 %v4788, -0.4999988
        %v4790 = vmul.f32 %v4785, %v4789
        %v4791 = vadd.f32 1.0, %v4790
        %v4792 = vmul.f32 %v4783, %v4783
        %v4793 = vmul.f32 %v4792, -0.00019511016
        %v4794 = vadd.f32 %v4793, 0.008332121
        %v4795 = vmul.f32 %v4792, %v4794
        %v4796 = vadd.f32 %v4795, -0.16666654
        %v4797 = vmul.f32 %v4792, %v4796
        %v4798 = vadd.f32 %v4797, 1.0
        %v4799 = vmul.f32 %v4798, %v4783
        %vm4800 = vweird.f32 %v621
        %v4801 = vadd.s32 %v4784, 3
        %v4802 = vand.u32 %v4801, 3
        %vm4803 = vcmp.lt.s32.totalorder %v4802, 2
        %vm4804 = vcmp.eq.s32.totalorder %v4802, 0
        %v4805 = vxor.u32 %v4799, 2147483648
        %v4806 = vsel %vm4804, %v4791, %v4805
        %vm4807 = vcmp.eq.s32.totalorder %v4802, 2
        %v4808 = vxor.u32 %v4791, 2147483648
        %v4809 = vsel %vm4807, %v4808, %v4799
        %v4810 = vsel %vm4803, %v4806, %v4809
        %v4811 = vsel %vm4800, nan, %v4810
        %v4812 = vand.u32 2147483647, %v622
        %vm4813 = vcmp.le.f32.partialorder %v4812, 0.7853982
        %vm4814 = vcmp.lt.s32.totalorder %v622, 0
        %v4815 = vand.u32 %v622, 2139095040
        %v4816 = vshrl.u32 %v4815, 23
        %v4817 = vsub.s32 %v4816, 127
        %v4818 = vand.u32 2147483647, %v622
        %v4819 = vand.u32 %v4818, 8388607
        %v4820 = vor.u32 %v4819, 8388608
        %v4821 = vsub.s32 0, %v4820
        %v4822 = vadd.s32 %v4817, 1
        %vm4823 = vcmp.gt.s32.totalorder %v4822, 0
        %v4824 = vsel %vm4823, %v4822, 0
        %v4825 = vshrl.u32 %v4824, 5
        %v4826 = vand.u32 %v4824, 31
        %v4827 = vsub.s32 32, %v4826
        %v4828 = vshrl.u32 683565275, %v4827
        %v4829 = vshll.u32 683565275, %v4826
        %v4830 = vshrl.u32 2475754826, %v4827
        %v4831 = vor.u32 %v4829, %v4830
        %v4832 = vshll.u32 2475754826, %v4826
        %v4833 = vshrl.u32 2131351028, %v4827
        %v4834 = vor.u32 %v4832, %v4833
        %v4835 = vshll.u32 2131351028, %v4826
        %v4836 = vshrl.u32 2102212464, %v4827
        %v4837 = vor.u32 %v4835, %v4836
        %v4838 = vshll.u32 2102212464, %v4826
        %v4839 = vshrl.u32 920167782, %v4827
        %v4840 = vor.u32 %v4838, %v4839
        %v4841 = vshll.u32 920167782, %v4826
        %v4842 = vshrl.u32 1326507024, %v4827
        %v4843 = vor.u32 %v4841, %v4842
        %vm4844 = vcmp.lt.s32.totalorder %v4825, 1
        %vm4845 = vcmp.lt.s32.totalorder %v4825, 2
        %vm4846 = vcmp.lt.s32.totalorder %v4825, 3
        %vm4847 = vcmp.lt.s32.totalorder %v4825, 4
        %v4848 = vsel %vm4844, %v4828, %v4831
        %v4849 = vsel %vm4847, %v4837, 2102212464
        %v4850 = vsel %vm4846, %v4834, %v4849
        %v4851 = vsel %vm4845, %v4848, %v4850
        %v4852 = vsel %vm4844, %v4831, %v4834
        %v4853 = vsel %vm4847, %v4840, 920167782
        %v4854 = vsel %vm4846, %v4837, %v4853
        %v4855 = vsel %vm4845, %v4852, %v4854
        %v4856 = vsel %vm4844, %v4834, %v4837
        %v4857 = vsel %vm4847, %v4843, 1326507024
        %v4858 = vsel %vm4846, %v4840, %v4857
        %v4859 = vsel %vm4845, %v4856, %v4858
        %v4860 = vshll.u32 %v4820, 8
        %v4861 = vand.u32 %v4860, 65535
        %v4862 = vshrl.u32 %v4860, 16
        %v4863 = vand.u32 %v4859, 65535
        %v4864 = vshrl.u32 %v4859, 16
        %v4865 = vmul.u32 %v4861, %v4863
        %v4866 = vmul.u32 %v4861, %v4864
        %v4867 = vmul.u32 %v4862, %v4863
        %v4868 = vmul.u32 %v4862, %v4864
        %v4869 = vshll.u32 %v4866, 16
        %v4870 = vshrl.u32 %v4866, 16
        %v4871 = vshll.u32 %v4867, 16
        %v4872 = vshrl.u32 %v4867, 16
        %vm4873 = vc.u32 %v4865, %v4869
        %v4874 = vsel %vm4873, 1, 0
        %v4875 = vadd.s32 %v4865, %v4869
        %v4876 = vadd.s32 %v4868, %v4874
        %vm4877 = vc.u32 %v4875, %v4871
        %v4878 = vsel %vm4877, 1, 0
        %v4879 = vadd.s32 %v4875, %v4871
        %v4880 = vadd.s32 %v4876, %v4878
        %v4881 = vadd.s32 %v4880, %v4870
        %v4882 = vadd.s32 %v4881, %v4872
        %v4883 = vand.u32 %v4860, 65535
        %v4884 = vshrl.u32 %v4860, 16
        %v4885 = vand.u32 %v4855, 65535
        %v4886 = vshrl.u32 %v4855, 16
        %v4887 = vmul.u32 %v4883, %v4885
        %v4888 = vmul.u32 %v4883, %v4886
        %v4889 = vmul.u32 %v4884, %v4885
        %v4890 = vmul.u32 %v4884, %v4886
        %v4891 = vshll.u32 %v4888, 16
        %v4892 = vshrl.u32 %v4888, 16
        %v4893 = vshll.u32 %v4889, 16
        %v4894 = vshrl.u32 %v4889, 16
        %vm4895 = vc.u32 %v4887, %v4891
        %v4896 = vsel %vm4895, 1, 0
        %v4897 = vadd.s32 %v4887, %v4891
        %v4898 = vadd.s32 %v4890, %v4896
        %vm4899 = vc.u32 %v4897, %v4893
        %v4900 = vsel %vm4899, 1, 0
        %v4901 = vadd.s32 %v4897, %v4893
        %v4902 = vadd.s32 %v4898, %v4900
        %v4903 = vadd.s32 %v4902, %v4892
        %v4904 = vadd.s32 %v4903, %v4894
        %v4905 = vmul.u32 %v4860, %v4851
        %v4906 = vadd.s32 %v4882, %v4901
        %vm4907 = vc.u32 %v4882, %v4901
        %v4908 = vadd.s32 %v4904, 1
        %v4909 = vsel %vm4907, %v4908, %v4904
        %v4910 = vadd.s32 %v4905, %v4909
        %v4911 = vadd.s32 %v4910, 536870912
        %v4912 = vshrl.u32 %v4911, 30
        %v4913 = vshll.u32 %v4912, 30
        %v4914 = vsub.s32 %v4910, %v4913
        %vm4915 = vcmp.lt.s32.totalorder %v4914, 0
        %v4916 = vsub.s32 0, %v4914
        %v4917 = vsel %vm4915, %v4916, %v4914
        %v4918 = vclz %v4917
        %v4919 = vsub.s32 %v4918, 2
        %vm4920 = vcmp.gt.s32.totalorder 0, %v4919
        %v4921 = vsel %vm4920, 0, %v4919
        %v4922 = vsub.s32 32, %v4921
        %v4923 = vshll.u32 %v4914, %v4921
        %v4924 = vshrl.u32 %v4906, %v4922
        %v4925 = vor.u32 %v4923, %v4924
        %v4926 = vsub.s32 4294967266, %v4921
        %v4927 = vadd.s32 %v4926, 127
        %v4928 = vshll.u32 %v4927, 23
        %v4929 = vor.u32 4788187, %v4928
        %v4930 = vand.u32 2147483647, %v4929
        %v4932 = vcvt.s32.f32 %v4925
        %v4933 = vmul.f32 %v4932, %v4930
        %v4934 = vxor.u32 %v4933, 2147483648
        %v4935 = vsel %vm4814, %v4934, %v4933
        %v4936 = vsub.s32 4, %v4912
        %v4937 = vsel %vm4814, %v4936, %v4912
        %v4938 = vsel %vm4813, %v622, %v4935
        %v4939 = vsel %vm4813, 0, %v4937
        %v4940 = vmul.f32 %v4938, %v4938
        %v4941 = vmul.f32 %v4940, -0.001358992
        %v4942 = vadd.f32 %v4941, 0.041655596
        %v4943 = vmul.f32 %v4940, %v4942
        %v4944 = vadd.f32 %v4943, -0.4999988
        %v4945 = vmul.f32 %v4940, %v4944
        %v4946 = vadd.f32 1.0, %v4945
        %v4947 = vmul.f32 %v4938, %v4938
        %v4948 = vmul.f32 %v4947, -0.00019511016
        %v4949 = vadd.f32 %v4948, 0.008332121
        %v4950 = vmul.f32 %v4947, %v4949
        %v4951 = vadd.f32 %v4950, -0.16666654
        %v4952 = vmul.f32 %v4947, %v4951
        %v4953 = vadd.f32 %v4952, 1.0
        %v4954 = vmul.f32 %v4953, %v4938
        %vm4955 = vweird.f32 %v622
        %v4956 = vadd.s32 %v4939, 3
        %v4957 = vand.u32 %v4956, 3
        %vm4958 = vcmp.lt.s32.totalorder %v4957, 2
        %vm4959 = vcmp.eq.s32.totalorder %v4957, 0
        %v4960 = vxor.u32 %v4954, 2147483648
        %v4961 = vsel %vm4959, %v4946, %v4960
        %vm4962 = vcmp.eq.s32.totalorder %v4957, 2
        %v4963 = vxor.u32 %v4946, 2147483648
        %v4964 = vsel %vm4962, %v4963, %v4954
        %v4965 = vsel %vm4958, %v4961, %v4964
        %v4966 = vsel %vm4955, nan, %v4965
        %v4967 = vand.u32 2147483647, %v623
        %vm4968 = vcmp.le.f32.partialorder %v4967, 0.7853982
        %vm4969 = vcmp.lt.s32.totalorder %v623, 0
        %v4970 = vand.u32 %v623, 2139095040
        %v4971 = vshrl.u32 %v4970, 23
        %v4972 = vsub.s32 %v4971, 127
        %v4973 = vand.u32 2147483647, %v623
        %v4974 = vand.u32 %v4973, 8388607
        %v4975 = vor.u32 %v4974, 8388608
        %v4976 = vsub.s32 0, %v4975
        %v4977 = vadd.s32 %v4972, 1
        %vm4978 = vcmp.gt.s32.totalorder %v4977, 0
        %v4979 = vsel %vm4978, %v4977, 0
        %v4980 = vshrl.u32 %v4979, 5
        %v4981 = vand.u32 %v4979, 31
        %v4982 = vsub.s32 32, %v4981
        %v4983 = vshrl.u32 683565275, %v4982
        %v4984 = vshll.u32 683565275, %v4981
        %v4985 = vshrl.u32 2475754826, %v4982
        %v4986 = vor.u32 %v4984, %v4985
        %v4987 = vshll.u32 2475754826, %v4981
        %v4988 = vshrl.u32 2131351028, %v4982
        %v4989 = vor.u32 %v4987, %v4988
        %v4990 = vshll.u32 2131351028, %v4981
        %v4991 = vshrl.u32 2102212464, %v4982
        %v4992 = vor.u32 %v4990, %v4991
        %v4993 = vshll.u32 2102212464, %v4981
        %v4994 = vshrl.u32 920167782, %v4982
        %v4995 = vor.u32 %v4993, %v4994
        %v4996 = vshll.u32 920167782, %v4981
        %v4997 = vshrl.u32 1326507024, %v4982
        %v4998 = vor.u32 %v4996, %v4997
        %vm4999 = vcmp.lt.s32.totalorder %v4980, 1
        %vm5000 = vcmp.lt.s32.totalorder %v4980, 2
        %vm5001 = vcmp.lt.s32.totalorder %v4980, 3
        %vm5002 = vcmp.lt.s32.totalorder %v4980, 4
        %v5003 = vsel %vm4999, %v4983, %v4986
        %v5004 = vsel %vm5002, %v4992, 2102212464
        %v5005 = vsel %vm5001, %v4989, %v5004
        %v5006 = vsel %vm5000, %v5003, %v5005
        %v5007 = vsel %vm4999, %v4986, %v4989
        %v5008 = vsel %vm5002, %v4995, 920167782
        %v5009 = vsel %vm5001, %v4992, %v5008
        %v5010 = vsel %vm5000, %v5007, %v5009
        %v5011 = vsel %vm4999, %v4989, %v4992
        %v5012 = vsel %vm5002, %v4998, 1326507024
        %v5013 = vsel %vm5001, %v4995, %v5012
        %v5014 = vsel %vm5000, %v5011, %v5013
        %v5015 = vshll.u32 %v4975, 8
        %v5016 = vand.u32 %v5015, 65535
        %v5017 = vshrl.u32 %v5015, 16
        %v5018 = vand.u32 %v5014, 65535
        %v5019 = vshrl.u32 %v5014, 16
        %v5020 = vmul.u32 %v5016, %v5018
        %v5021 = vmul.u32 %v5016, %v5019
        %v5022 = vmul.u32 %v5017, %v5018
        %v5023 = vmul.u32 %v5017, %v5019
        %v5024 = vshll.u32 %v5021, 16
        %v5025 = vshrl.u32 %v5021, 16
        %v5026 = vshll.u32 %v5022, 16
        %v5027 = vshrl.u32 %v5022, 16
        %vm5028 = vc.u32 %v5020, %v5024
        %v5029 = vsel %vm5028, 1, 0
        %v5030 = vadd.s32 %v5020, %v5024
        %v5031 = vadd.s32 %v5023, %v5029
        %vm5032 = vc.u32 %v5030, %v5026
        %v5033 = vsel %vm5032, 1, 0
        %v5034 = vadd.s32 %v5030, %v5026
        %v5035 = vadd.s32 %v5031, %v5033
        %v5036 = vadd.s32 %v5035, %v5025
        %v5037 = vadd.s32 %v5036, %v5027
        %v5038 = vand.u32 %v5015, 65535
        %v5039 = vshrl.u32 %v5015, 16
        %v5040 = vand.u32 %v5010, 65535
        %v5041 = vshrl.u32 %v5010, 16
        %v5042 = vmul.u32 %v5038, %v5040
        %v5043 = vmul.u32 %v5038, %v5041
        %v5044 = vmul.u32 %v5039, %v5040
        %v5045 = vmul.u32 %v5039, %v5041
        %v5046 = vshll.u32 %v5043, 16
        %v5047 = vshrl.u32 %v5043, 16
        %v5048 = vshll.u32 %v5044, 16
        %v5049 = vshrl.u32 %v5044, 16
        %vm5050 = vc.u32 %v5042, %v5046
        %v5051 = vsel %vm5050, 1, 0
        %v5052 = vadd.s32 %v5042, %v5046
        %v5053 = vadd.s32 %v5045, %v5051
        %vm5054 = vc.u32 %v5052, %v5048
        %v5055 = vsel %vm5054, 1, 0
        %v5056 = vadd.s32 %v5052, %v5048
        %v5057 = vadd.s32 %v5053, %v5055
        %v5058 = vadd.s32 %v5057, %v5047
        %v5059 = vadd.s32 %v5058, %v5049
        %v5060 = vmul.u32 %v5015, %v5006
        %v5061 = vadd.s32 %v5037, %v5056
        %vm5062 = vc.u32 %v5037, %v5056
        %v5063 = vadd.s32 %v5059, 1
        %v5064 = vsel %vm5062, %v5063, %v5059
        %v5065 = vadd.s32 %v5060, %v5064
        %v5066 = vadd.s32 %v5065, 536870912
        %v5067 = vshrl.u32 %v5066, 30
        %v5068 = vshll.u32 %v5067, 30
        %v5069 = vsub.s32 %v5065, %v5068
        %vm5070 = vcmp.lt.s32.totalorder %v5069, 0
        %v5071 = vsub.s32 0, %v5069
        %v5072 = vsel %vm5070, %v5071, %v5069
        %v5073 = vclz %v5072
        %v5074 = vsub.s32 %v5073, 2
        %vm5075 = vcmp.gt.s32.totalorder 0, %v5074
        %v5076 = vsel %vm5075, 0, %v5074
        %v5077 = vsub.s32 32, %v5076
        %v5078 = vshll.u32 %v5069, %v5076
        %v5079 = vshrl.u32 %v5061, %v5077
        %v5080 = vor.u32 %v5078, %v5079
        %v5081 = vsub.s32 4294967266, %v5076
        %v5082 = vadd.s32 %v5081, 127
        %v5083 = vshll.u32 %v5082, 23
        %v5084 = vor.u32 4788187, %v5083
        %v5085 = vand.u32 2147483647, %v5084
        %v5087 = vcvt.s32.f32 %v5080
        %v5088 = vmul.f32 %v5087, %v5085
        %v5089 = vxor.u32 %v5088, 2147483648
        %v5090 = vsel %vm4969, %v5089, %v5088
        %v5091 = vsub.s32 4, %v5067
        %v5092 = vsel %vm4969, %v5091, %v5067
        %v5093 = vsel %vm4968, %v623, %v5090
        %v5094 = vsel %vm4968, 0, %v5092
        %v5095 = vmul.f32 %v5093, %v5093
        %v5096 = vmul.f32 %v5095, -0.001358992
        %v5097 = vadd.f32 %v5096, 0.041655596
        %v5098 = vmul.f32 %v5095, %v5097
        %v5099 = vadd.f32 %v5098, -0.4999988
        %v5100 = vmul.f32 %v5095, %v5099
        %v5101 = vadd.f32 1.0, %v5100
        %v5102 = vmul.f32 %v5093, %v5093
        %v5103 = vmul.f32 %v5102, -0.00019511016
        %v5104 = vadd.f32 %v5103, 0.008332121
        %v5105 = vmul.f32 %v5102, %v5104
        %v5106 = vadd.f32 %v5105, -0.16666654
        %v5107 = vmul.f32 %v5102, %v5106
        %v5108 = vadd.f32 %v5107, 1.0
        %v5109 = vmul.f32 %v5108, %v5093
        %vm5110 = vweird.f32 %v623
        %v5111 = vadd.s32 %v5094, 3
        %v5112 = vand.u32 %v5111, 3
        %vm5113 = vcmp.lt.s32.totalorder %v5112, 2
        %vm5114 = vcmp.eq.s32.totalorder %v5112, 0
        %v5115 = vxor.u32 %v5109, 2147483648
        %v5116 = vsel %vm5114, %v5101, %v5115
        %vm5117 = vcmp.eq.s32.totalorder %v5112, 2
        %v5118 = vxor.u32 %v5101, 2147483648
        %v5119 = vsel %vm5117, %v5118, %v5109
        %v5120 = vsel %vm5113, %v5116, %v5119
        %v5121 = vsel %vm5110, nan, %v5120
        %v5122 = vand.u32 2147483647, %v624
        %vm5123 = vcmp.le.f32.partialorder %v5122, 0.7853982
        %vm5124 = vcmp.lt.s32.totalorder %v624, 0
        %v5125 = vand.u32 %v624, 2139095040
        %v5126 = vshrl.u32 %v5125, 23
        %v5127 = vsub.s32 %v5126, 127
        %v5128 = vand.u32 2147483647, %v624
        %v5129 = vand.u32 %v5128, 8388607
        %v5130 = vor.u32 %v5129, 8388608
        %v5131 = vsub.s32 0, %v5130
        %v5132 = vadd.s32 %v5127, 1
        %vm5133 = vcmp.gt.s32.totalorder %v5132, 0
        %v5134 = vsel %vm5133, %v5132, 0
        %v5135 = vshrl.u32 %v5134, 5
        %v5136 = vand.u32 %v5134, 31
        %v5137 = vsub.s32 32, %v5136
        %v5138 = vshrl.u32 683565275, %v5137
        %v5139 = vshll.u32 683565275, %v5136
        %v5140 = vshrl.u32 2475754826, %v5137
        %v5141 = vor.u32 %v5139, %v5140
        %v5142 = vshll.u32 2475754826, %v5136
        %v5143 = vshrl.u32 2131351028, %v5137
        %v5144 = vor.u32 %v5142, %v5143
        %v5145 = vshll.u32 2131351028, %v5136
        %v5146 = vshrl.u32 2102212464, %v5137
        %v5147 = vor.u32 %v5145, %v5146
        %v5148 = vshll.u32 2102212464, %v5136
        %v5149 = vshrl.u32 920167782, %v5137
        %v5150 = vor.u32 %v5148, %v5149
        %v5151 = vshll.u32 920167782, %v5136
        %v5152 = vshrl.u32 1326507024, %v5137
        %v5153 = vor.u32 %v5151, %v5152
        %vm5154 = vcmp.lt.s32.totalorder %v5135, 1
        %vm5155 = vcmp.lt.s32.totalorder %v5135, 2
        %vm5156 = vcmp.lt.s32.totalorder %v5135, 3
        %vm5157 = vcmp.lt.s32.totalorder %v5135, 4
        %v5158 = vsel %vm5154, %v5138, %v5141
        %v5159 = vsel %vm5157, %v5147, 2102212464
        %v5160 = vsel %vm5156, %v5144, %v5159
        %v5161 = vsel %vm5155, %v5158, %v5160
        %v5162 = vsel %vm5154, %v5141, %v5144
        %v5163 = vsel %vm5157, %v5150, 920167782
        %v5164 = vsel %vm5156, %v5147, %v5163
        %v5165 = vsel %vm5155, %v5162, %v5164
        %v5166 = vsel %vm5154, %v5144, %v5147
        %v5167 = vsel %vm5157, %v5153, 1326507024
        %v5168 = vsel %vm5156, %v5150, %v5167
        %v5169 = vsel %vm5155, %v5166, %v5168
        %v5170 = vshll.u32 %v5130, 8
        %v5171 = vand.u32 %v5170, 65535
        %v5172 = vshrl.u32 %v5170, 16
        %v5173 = vand.u32 %v5169, 65535
        %v5174 = vshrl.u32 %v5169, 16
        %v5175 = vmul.u32 %v5171, %v5173
        %v5176 = vmul.u32 %v5171, %v5174
        %v5177 = vmul.u32 %v5172, %v5173
        %v5178 = vmul.u32 %v5172, %v5174
        %v5179 = vshll.u32 %v5176, 16
        %v5180 = vshrl.u32 %v5176, 16
        %v5181 = vshll.u32 %v5177, 16
        %v5182 = vshrl.u32 %v5177, 16
        %vm5183 = vc.u32 %v5175, %v5179
        %v5184 = vsel %vm5183, 1, 0
        %v5185 = vadd.s32 %v5175, %v5179
        %v5186 = vadd.s32 %v5178, %v5184
        %vm5187 = vc.u32 %v5185, %v5181
        %v5188 = vsel %vm5187, 1, 0
        %v5189 = vadd.s32 %v5185, %v5181
        %v5190 = vadd.s32 %v5186, %v5188
        %v5191 = vadd.s32 %v5190, %v5180
        %v5192 = vadd.s32 %v5191, %v5182
        %v5193 = vand.u32 %v5170, 65535
        %v5194 = vshrl.u32 %v5170, 16
        %v5195 = vand.u32 %v5165, 65535
        %v5196 = vshrl.u32 %v5165, 16
        %v5197 = vmul.u32 %v5193, %v5195
        %v5198 = vmul.u32 %v5193, %v5196
        %v5199 = vmul.u32 %v5194, %v5195
        %v5200 = vmul.u32 %v5194, %v5196
        %v5201 = vshll.u32 %v5198, 16
        %v5202 = vshrl.u32 %v5198, 16
        %v5203 = vshll.u32 %v5199, 16
        %v5204 = vshrl.u32 %v5199, 16
        %vm5205 = vc.u32 %v5197, %v5201
        %v5206 = vsel %vm5205, 1, 0
        %v5207 = vadd.s32 %v5197, %v5201
        %v5208 = vadd.s32 %v5200, %v5206
        %vm5209 = vc.u32 %v5207, %v5203
        %v5210 = vsel %vm5209, 1, 0
        %v5211 = vadd.s32 %v5207, %v5203
        %v5212 = vadd.s32 %v5208, %v5210
        %v5213 = vadd.s32 %v5212, %v5202
        %v5214 = vadd.s32 %v5213, %v5204
        %v5215 = vmul.u32 %v5170, %v5161
        %v5216 = vadd.s32 %v5192, %v5211
        %vm5217 = vc.u32 %v5192, %v5211
        %v5218 = vadd.s32 %v5214, 1
        %v5219 = vsel %vm5217, %v5218, %v5214
        %v5220 = vadd.s32 %v5215, %v5219
        %v5221 = vadd.s32 %v5220, 536870912
        %v5222 = vshrl.u32 %v5221, 30
        %v5223 = vshll.u32 %v5222, 30
        %v5224 = vsub.s32 %v5220, %v5223
        %vm5225 = vcmp.lt.s32.totalorder %v5224, 0
        %v5226 = vsub.s32 0, %v5224
        %v5227 = vsel %vm5225, %v5226, %v5224
        %v5228 = vclz %v5227
        %v5229 = vsub.s32 %v5228, 2
        %vm5230 = vcmp.gt.s32.totalorder 0, %v5229
        %v5231 = vsel %vm5230, 0, %v5229
        %v5232 = vsub.s32 32, %v5231
        %v5233 = vshll.u32 %v5224, %v5231
        %v5234 = vshrl.u32 %v5216, %v5232
        %v5235 = vor.u32 %v5233, %v5234
        %v5236 = vsub.s32 4294967266, %v5231
        %v5237 = vadd.s32 %v5236, 127
        %v5238 = vshll.u32 %v5237, 23
        %v5239 = vor.u32 4788187, %v5238
        %v5240 = vand.u32 2147483647, %v5239
        %v5242 = vcvt.s32.f32 %v5235
        %v5243 = vmul.f32 %v5242, %v5240
        %v5244 = vxor.u32 %v5243, 2147483648
        %v5245 = vsel %vm5124, %v5244, %v5243
        %v5246 = vsub.s32 4, %v5222
        %v5247 = vsel %vm5124, %v5246, %v5222
        %v5248 = vsel %vm5123, %v624, %v5245
        %v5249 = vsel %vm5123, 0, %v5247
        %v5250 = vmul.f32 %v5248, %v5248
        %v5251 = vmul.f32 %v5250, -0.001358992
        %v5252 = vadd.f32 %v5251, 0.041655596
        %v5253 = vmul.f32 %v5250, %v5252
        %v5254 = vadd.f32 %v5253, -0.4999988
        %v5255 = vmul.f32 %v5250, %v5254
        %v5256 = vadd.f32 1.0, %v5255
        %v5257 = vmul.f32 %v5248, %v5248
        %v5258 = vmul.f32 %v5257, -0.00019511016
        %v5259 = vadd.f32 %v5258, 0.008332121
        %v5260 = vmul.f32 %v5257, %v5259
        %v5261 = vadd.f32 %v5260, -0.16666654
        %v5262 = vmul.f32 %v5257, %v5261
        %v5263 = vadd.f32 %v5262, 1.0
        %v5264 = vmul.f32 %v5263, %v5248
        %vm5265 = vweird.f32 %v624
        %v5266 = vadd.s32 %v5249, 3
        %v5267 = vand.u32 %v5266, 3
        %vm5268 = vcmp.lt.s32.totalorder %v5267, 2
        %vm5269 = vcmp.eq.s32.totalorder %v5267, 0
        %v5270 = vxor.u32 %v5264, 2147483648
        %v5271 = vsel %vm5269, %v5256, %v5270
        %vm5272 = vcmp.eq.s32.totalorder %v5267, 2
        %v5273 = vxor.u32 %v5256, 2147483648
        %v5274 = vsel %vm5272, %v5273, %v5264
        %v5275 = vsel %vm5268, %v5271, %v5274
        %v5276 = vsel %vm5265, nan, %v5275
        %v5277 = vand.u32 2147483647, %v625
        %vm5278 = vcmp.le.f32.partialorder %v5277, 0.7853982
        %vm5279 = vcmp.lt.s32.totalorder %v625, 0
        %v5280 = vand.u32 %v625, 2139095040
        %v5281 = vshrl.u32 %v5280, 23
        %v5282 = vsub.s32 %v5281, 127
        %v5283 = vand.u32 2147483647, %v625
        %v5284 = vand.u32 %v5283, 8388607
        %v5285 = vor.u32 %v5284, 8388608
        %v5286 = vsub.s32 0, %v5285
        %v5287 = vadd.s32 %v5282, 1
        %vm5288 = vcmp.gt.s32.totalorder %v5287, 0
        %v5289 = vsel %vm5288, %v5287, 0
        %v5290 = vshrl.u32 %v5289, 5
        %v5291 = vand.u32 %v5289, 31
        %v5292 = vsub.s32 32, %v5291
        %v5293 = vshrl.u32 683565275, %v5292
        %v5294 = vshll.u32 683565275, %v5291
        %v5295 = vshrl.u32 2475754826, %v5292
        %v5296 = vor.u32 %v5294, %v5295
        %v5297 = vshll.u32 2475754826, %v5291
        %v5298 = vshrl.u32 2131351028, %v5292
        %v5299 = vor.u32 %v5297, %v5298
        %v5300 = vshll.u32 2131351028, %v5291
        %v5301 = vshrl.u32 2102212464, %v5292
        %v5302 = vor.u32 %v5300, %v5301
        %v5303 = vshll.u32 2102212464, %v5291
        %v5304 = vshrl.u32 920167782, %v5292
        %v5305 = vor.u32 %v5303, %v5304
        %v5306 = vshll.u32 920167782, %v5291
        %v5307 = vshrl.u32 1326507024, %v5292
        %v5308 = vor.u32 %v5306, %v5307
        %vm5309 = vcmp.lt.s32.totalorder %v5290, 1
        %vm5310 = vcmp.lt.s32.totalorder %v5290, 2
        %vm5311 = vcmp.lt.s32.totalorder %v5290, 3
        %vm5312 = vcmp.lt.s32.totalorder %v5290, 4
        %v5313 = vsel %vm5309, %v5293, %v5296
        %v5314 = vsel %vm5312, %v5302, 2102212464
        %v5315 = vsel %vm5311, %v5299, %v5314
        %v5316 = vsel %vm5310, %v5313, %v5315
        %v5317 = vsel %vm5309, %v5296, %v5299
        %v5318 = vsel %vm5312, %v5305, 920167782
        %v5319 = vsel %vm5311, %v5302, %v5318
        %v5320 = vsel %vm5310, %v5317, %v5319
        %v5321 = vsel %vm5309, %v5299, %v5302
        %v5322 = vsel %vm5312, %v5308, 1326507024
        %v5323 = vsel %vm5311, %v5305, %v5322
        %v5324 = vsel %vm5310, %v5321, %v5323
        %v5325 = vshll.u32 %v5285, 8
        %v5326 = vand.u32 %v5325, 65535
        %v5327 = vshrl.u32 %v5325, 16
        %v5328 = vand.u32 %v5324, 65535
        %v5329 = vshrl.u32 %v5324, 16
        %v5330 = vmul.u32 %v5326, %v5328
        %v5331 = vmul.u32 %v5326, %v5329
        %v5332 = vmul.u32 %v5327, %v5328
        %v5333 = vmul.u32 %v5327, %v5329
        %v5334 = vshll.u32 %v5331, 16
        %v5335 = vshrl.u32 %v5331, 16
        %v5336 = vshll.u32 %v5332, 16
        %v5337 = vshrl.u32 %v5332, 16
        %vm5338 = vc.u32 %v5330, %v5334
        %v5339 = vsel %vm5338, 1, 0
        %v5340 = vadd.s32 %v5330, %v5334
        %v5341 = vadd.s32 %v5333, %v5339
        %vm5342 = vc.u32 %v5340, %v5336
        %v5343 = vsel %vm5342, 1, 0
        %v5344 = vadd.s32 %v5340, %v5336
        %v5345 = vadd.s32 %v5341, %v5343
        %v5346 = vadd.s32 %v5345, %v5335
        %v5347 = vadd.s32 %v5346, %v5337
        %v5348 = vand.u32 %v5325, 65535
        %v5349 = vshrl.u32 %v5325, 16
        %v5350 = vand.u32 %v5320, 65535
        %v5351 = vshrl.u32 %v5320, 16
        %v5352 = vmul.u32 %v5348, %v5350
        %v5353 = vmul.u32 %v5348, %v5351
        %v5354 = vmul.u32 %v5349, %v5350
        %v5355 = vmul.u32 %v5349, %v5351
        %v5356 = vshll.u32 %v5353, 16
        %v5357 = vshrl.u32 %v5353, 16
        %v5358 = vshll.u32 %v5354, 16
        %v5359 = vshrl.u32 %v5354, 16
        %vm5360 = vc.u32 %v5352, %v5356
        %v5361 = vsel %vm5360, 1, 0
        %v5362 = vadd.s32 %v5352, %v5356
        %v5363 = vadd.s32 %v5355, %v5361
        %vm5364 = vc.u32 %v5362, %v5358
        %v5365 = vsel %vm5364, 1, 0
        %v5366 = vadd.s32 %v5362, %v5358
        %v5367 = vadd.s32 %v5363, %v5365
        %v5368 = vadd.s32 %v5367, %v5357
        %v5369 = vadd.s32 %v5368, %v5359
        %v5370 = vmul.u32 %v5325, %v5316
        %v5371 = vadd.s32 %v5347, %v5366
        %vm5372 = vc.u32 %v5347, %v5366
        %v5373 = vadd.s32 %v5369, 1
        %v5374 = vsel %vm5372, %v5373, %v5369
        %v5375 = vadd.s32 %v5370, %v5374
        %v5376 = vadd.s32 %v5375, 536870912
        %v5377 = vshrl.u32 %v5376, 30
        %v5378 = vshll.u32 %v5377, 30
        %v5379 = vsub.s32 %v5375, %v5378
        %vm5380 = vcmp.lt.s32.totalorder %v5379, 0
        %v5381 = vsub.s32 0, %v5379
        %v5382 = vsel %vm5380, %v5381, %v5379
        %v5383 = vclz %v5382
        %v5384 = vsub.s32 %v5383, 2
        %vm5385 = vcmp.gt.s32.totalorder 0, %v5384
        %v5386 = vsel %vm5385, 0, %v5384
        %v5387 = vsub.s32 32, %v5386
        %v5388 = vshll.u32 %v5379, %v5386
        %v5389 = vshrl.u32 %v5371, %v5387
        %v5390 = vor.u32 %v5388, %v5389
        %v5391 = vsub.s32 4294967266, %v5386
        %v5392 = vadd.s32 %v5391, 127
        %v5393 = vshll.u32 %v5392, 23
        %v5394 = vor.u32 4788187, %v5393
        %v5395 = vand.u32 2147483647, %v5394
        %v5397 = vcvt.s32.f32 %v5390
        %v5398 = vmul.f32 %v5397, %v5395
        %v5399 = vxor.u32 %v5398, 2147483648
        %v5400 = vsel %vm5279, %v5399, %v5398
        %v5401 = vsub.s32 4, %v5377
        %v5402 = vsel %vm5279, %v5401, %v5377
        %v5403 = vsel %vm5278, %v625, %v5400
        %v5404 = vsel %vm5278, 0, %v5402
        %v5405 = vmul.f32 %v5403, %v5403
        %v5406 = vmul.f32 %v5405, -0.001358992
        %v5407 = vadd.f32 %v5406, 0.041655596
        %v5408 = vmul.f32 %v5405, %v5407
        %v5409 = vadd.f32 %v5408, -0.4999988
        %v5410 = vmul.f32 %v5405, %v5409
        %v5411 = vadd.f32 1.0, %v5410
        %v5412 = vmul.f32 %v5403, %v5403
        %v5413 = vmul.f32 %v5412, -0.00019511016
        %v5414 = vadd.f32 %v5413, 0.008332121
        %v5415 = vmul.f32 %v5412, %v5414
        %v5416 = vadd.f32 %v5415, -0.16666654
        %v5417 = vmul.f32 %v5412, %v5416
        %v5418 = vadd.f32 %v5417, 1.0
        %v5419 = vmul.f32 %v5418, %v5403
        %vm5420 = vweird.f32 %v625
        %v5421 = vadd.s32 %v5404, 3
        %v5422 = vand.u32 %v5421, 3
        %vm5423 = vcmp.lt.s32.totalorder %v5422, 2
        %vm5424 = vcmp.eq.s32.totalorder %v5422, 0
        %v5425 = vxor.u32 %v5419, 2147483648
        %v5426 = vsel %vm5424, %v5411, %v5425
        %vm5427 = vcmp.eq.s32.totalorder %v5422, 2
        %v5428 = vxor.u32 %v5411, 2147483648
        %v5429 = vsel %vm5427, %v5428, %v5419
        %v5430 = vsel %vm5423, %v5426, %v5429
        %v5431 = vsel %vm5420, nan, %v5430
        %v5432 = vand.u32 2147483647, %v626
        %vm5433 = vcmp.le.f32.partialorder %v5432, 0.7853982
        %vm5434 = vcmp.lt.s32.totalorder %v626, 0
        %v5435 = vand.u32 %v626, 2139095040
        %v5436 = vshrl.u32 %v5435, 23
        %v5437 = vsub.s32 %v5436, 127
        %v5438 = vand.u32 2147483647, %v626
        %v5439 = vand.u32 %v5438, 8388607
        %v5440 = vor.u32 %v5439, 8388608
        %v5441 = vsub.s32 0, %v5440
        %v5442 = vadd.s32 %v5437, 1
        %vm5443 = vcmp.gt.s32.totalorder %v5442, 0
        %v5444 = vsel %vm5443, %v5442, 0
        %v5445 = vshrl.u32 %v5444, 5
        %v5446 = vand.u32 %v5444, 31
        %v5447 = vsub.s32 32, %v5446
        %v5448 = vshrl.u32 683565275, %v5447
        %v5449 = vshll.u32 683565275, %v5446
        %v5450 = vshrl.u32 2475754826, %v5447
        %v5451 = vor.u32 %v5449, %v5450
        %v5452 = vshll.u32 2475754826, %v5446
        %v5453 = vshrl.u32 2131351028, %v5447
        %v5454 = vor.u32 %v5452, %v5453
        %v5455 = vshll.u32 2131351028, %v5446
        %v5456 = vshrl.u32 2102212464, %v5447
        %v5457 = vor.u32 %v5455, %v5456
        %v5458 = vshll.u32 2102212464, %v5446
        %v5459 = vshrl.u32 920167782, %v5447
        %v5460 = vor.u32 %v5458, %v5459
        %v5461 = vshll.u32 920167782, %v5446
        %v5462 = vshrl.u32 1326507024, %v5447
        %v5463 = vor.u32 %v5461, %v5462
        %vm5464 = vcmp.lt.s32.totalorder %v5445, 1
        %vm5465 = vcmp.lt.s32.totalorder %v5445, 2
        %vm5466 = vcmp.lt.s32.totalorder %v5445, 3
        %vm5467 = vcmp.lt.s32.totalorder %v5445, 4
        %v5468 = vsel %vm5464, %v5448, %v5451
        %v5469 = vsel %vm5467, %v5457, 2102212464
        %v5470 = vsel %vm5466, %v5454, %v5469
        %v5471 = vsel %vm5465, %v5468, %v5470
        %v5472 = vsel %vm5464, %v5451, %v5454
        %v5473 = vsel %vm5467, %v5460, 920167782
        %v5474 = vsel %vm5466, %v5457, %v5473
        %v5475 = vsel %vm5465, %v5472, %v5474
        %v5476 = vsel %vm5464, %v5454, %v5457
        %v5477 = vsel %vm5467, %v5463, 1326507024
        %v5478 = vsel %vm5466, %v5460, %v5477
        %v5479 = vsel %vm5465, %v5476, %v5478
        %v5480 = vshll.u32 %v5440, 8
        %v5481 = vand.u32 %v5480, 65535
        %v5482 = vshrl.u32 %v5480, 16
        %v5483 = vand.u32 %v5479, 65535
        %v5484 = vshrl.u32 %v5479, 16
        %v5485 = vmul.u32 %v5481, %v5483
        %v5486 = vmul.u32 %v5481, %v5484
        %v5487 = vmul.u32 %v5482, %v5483
        %v5488 = vmul.u32 %v5482, %v5484
        %v5489 = vshll.u32 %v5486, 16
        %v5490 = vshrl.u32 %v5486, 16
        %v5491 = vshll.u32 %v5487, 16
        %v5492 = vshrl.u32 %v5487, 16
        %vm5493 = vc.u32 %v5485, %v5489
        %v5494 = vsel %vm5493, 1, 0
        %v5495 = vadd.s32 %v5485, %v5489
        %v5496 = vadd.s32 %v5488, %v5494
        %vm5497 = vc.u32 %v5495, %v5491
        %v5498 = vsel %vm5497, 1, 0
        %v5499 = vadd.s32 %v5495, %v5491
        %v5500 = vadd.s32 %v5496, %v5498
        %v5501 = vadd.s32 %v5500, %v5490
        %v5502 = vadd.s32 %v5501, %v5492
        %v5503 = vand.u32 %v5480, 65535
        %v5504 = vshrl.u32 %v5480, 16
        %v5505 = vand.u32 %v5475, 65535
        %v5506 = vshrl.u32 %v5475, 16
        %v5507 = vmul.u32 %v5503, %v5505
        %v5508 = vmul.u32 %v5503, %v5506
        %v5509 = vmul.u32 %v5504, %v5505
        %v5510 = vmul.u32 %v5504, %v5506
        %v5511 = vshll.u32 %v5508, 16
        %v5512 = vshrl.u32 %v5508, 16
        %v5513 = vshll.u32 %v5509, 16
        %v5514 = vshrl.u32 %v5509, 16
        %vm5515 = vc.u32 %v5507, %v5511
        %v5516 = vsel %vm5515, 1, 0
        %v5517 = vadd.s32 %v5507, %v5511
        %v5518 = vadd.s32 %v5510, %v5516
        %vm5519 = vc.u32 %v5517, %v5513
        %v5520 = vsel %vm5519, 1, 0
        %v5521 = vadd.s32 %v5517, %v5513
        %v5522 = vadd.s32 %v5518, %v5520
        %v5523 = vadd.s32 %v5522, %v5512
        %v5524 = vadd.s32 %v5523, %v5514
        %v5525 = vmul.u32 %v5480, %v5471
        %v5526 = vadd.s32 %v5502, %v5521
        %vm5527 = vc.u32 %v5502, %v5521
        %v5528 = vadd.s32 %v5524, 1
        %v5529 = vsel %vm5527, %v5528, %v5524
        %v5530 = vadd.s32 %v5525, %v5529
        %v5531 = vadd.s32 %v5530, 536870912
        %v5532 = vshrl.u32 %v5531, 30
        %v5533 = vshll.u32 %v5532, 30
        %v5534 = vsub.s32 %v5530, %v5533
        %vm5535 = vcmp.lt.s32.totalorder %v5534, 0
        %v5536 = vsub.s32 0, %v5534
        %v5537 = vsel %vm5535, %v5536, %v5534
        %v5538 = vclz %v5537
        %v5539 = vsub.s32 %v5538, 2
        %vm5540 = vcmp.gt.s32.totalorder 0, %v5539
        %v5541 = vsel %vm5540, 0, %v5539
        %v5542 = vsub.s32 32, %v5541
        %v5543 = vshll.u32 %v5534, %v5541
        %v5544 = vshrl.u32 %v5526, %v5542
        %v5545 = vor.u32 %v5543, %v5544
        %v5546 = vsub.s32 4294967266, %v5541
        %v5547 = vadd.s32 %v5546, 127
        %v5548 = vshll.u32 %v5547, 23
        %v5549 = vor.u32 4788187, %v5548
        %v5550 = vand.u32 2147483647, %v5549
        %v5552 = vcvt.s32.f32 %v5545
        %v5553 = vmul.f32 %v5552, %v5550
        %v5554 = vxor.u32 %v5553, 2147483648
        %v5555 = vsel %vm5434, %v5554, %v5553
        %v5556 = vsub.s32 4, %v5532
        %v5557 = vsel %vm5434, %v5556, %v5532
        %v5558 = vsel %vm5433, %v626, %v5555
        %v5559 = vsel %vm5433, 0, %v5557
        %v5560 = vmul.f32 %v5558, %v5558
        %v5561 = vmul.f32 %v5560, -0.001358992
        %v5562 = vadd.f32 %v5561, 0.041655596
        %v5563 = vmul.f32 %v5560, %v5562
        %v5564 = vadd.f32 %v5563, -0.4999988
        %v5565 = vmul.f32 %v5560, %v5564
        %v5566 = vadd.f32 1.0, %v5565
        %v5567 = vmul.f32 %v5558, %v5558
        %v5568 = vmul.f32 %v5567, -0.00019511016
        %v5569 = vadd.f32 %v5568, 0.008332121
        %v5570 = vmul.f32 %v5567, %v5569
        %v5571 = vadd.f32 %v5570, -0.16666654
        %v5572 = vmul.f32 %v5567, %v5571
        %v5573 = vadd.f32 %v5572, 1.0
        %v5574 = vmul.f32 %v5573, %v5558
        %vm5575 = vweird.f32 %v626
        %v5576 = vadd.s32 %v5559, 3
        %v5577 = vand.u32 %v5576, 3
        %vm5578 = vcmp.lt.s32.totalorder %v5577, 2
        %vm5579 = vcmp.eq.s32.totalorder %v5577, 0
        %v5580 = vxor.u32 %v5574, 2147483648
        %v5581 = vsel %vm5579, %v5566, %v5580
        %vm5582 = vcmp.eq.s32.totalorder %v5577, 2
        %v5583 = vxor.u32 %v5566, 2147483648
        %v5584 = vsel %vm5582, %v5583, %v5574
        %v5585 = vsel %vm5578, %v5581, %v5584
        %v5586 = vsel %vm5575, nan, %v5585
        %5587 = vst [vmem:[%s191] sm:$0xff] %v781
        %5588 = vst [vmem:[%s191 + $0x8] sm:$0xff] %v936
        %5589 = vst [vmem:[%s191 + $0x10] sm:$0xff] %v1091
        %5590 = vst [vmem:[%s191 + $0x18] sm:$0xff] %v1246
        %5591 = vst [vmem:[%s191 + $0x20] sm:$0xff] %v1401
        %5592 = vst [vmem:[%s191 + $0x28] sm:$0xff] %v1556
        %5593 = vst [vmem:[%s191 + $0x30] sm:$0xff] %v1711
        %5594 = vst [vmem:[%s191 + $0x38] sm:$0xff] %v1866
        %5595 = vst [vmem:[%s191 + $0x40] sm:$0xff] %v2021
        %5596 = vst [vmem:[%s191 + $0x48] sm:$0xff] %v2176
        %5597 = vst [vmem:[%s191 + $0x50] sm:$0xff] %v2331
        %5598 = vst [vmem:[%s191 + $0x58] sm:$0xff] %v2486
        %5599 = vst [vmem:[%s191 + $0x60] sm:$0xff] %v2641
        %5600 = vst [vmem:[%s191 + $0x68] sm:$0xff] %v2796
        %5601 = vst [vmem:[%s191 + $0x70] sm:$0xff] %v2951
        %5602 = vst [vmem:[%s191 + $0x78] sm:$0xff] %v3106
        %5603 = vst [vmem:[%s191 + $0x80] sm:$0xff] %v3261
        %5604 = vst [vmem:[%s191 + $0x88] sm:$0xff] %v3416
        %5605 = vst [vmem:[%s191 + $0x90] sm:$0xff] %v3571
        %5606 = vst [vmem:[%s191 + $0x98] sm:$0xff] %v3726
        %5607 = vst [vmem:[%s191 + $0xa0] sm:$0xff] %v3881
        %5608 = vst [vmem:[%s191 + $0xa8] sm:$0xff] %v4036
        %5609 = vst [vmem:[%s191 + $0xb0] sm:$0xff] %v4191
        %5610 = vst [vmem:[%s191 + $0xb8] sm:$0xff] %v4346
        %5611 = vst [vmem:[%s191 + $0xc0] sm:$0xff] %v4501
        %5612 = vst [vmem:[%s191 + $0xc8] sm:$0xff] %v4656
        %5613 = vst [vmem:[%s191 + $0xd0] sm:$0xff] %v4811
        %5614 = vst [vmem:[%s191 + $0xd8] sm:$0xff] %v4966
        %5615 = vst [vmem:[%s191 + $0xe0] sm:$0xff] %v5121
        %5616 = vst [vmem:[%s191 + $0xe8] sm:$0xff] %v5276
        %5617 = vst [vmem:[%s191 + $0xf0] sm:$0xff] %v5431
        %5618 = vst [vmem:[%s191 + $0xf8] sm:$0xff] %v5586
        %s5619 = sand.u32 %s115, 1
        %s5620 = scalar_lea.sflag [#allocation3], %s5619
        %s5621 = sand.u32 %s115, 1
        %s5622 = smul.addr %s5621, 256
        %s5623 = scalar_lea.vmem [#allocation2], %s5622
        // Predicated region
        $region37: #{tpu_custom_call.1} parent=35 // pred_check
          %p5624 = pneg %p125
        $region38: #{tpu_custom_call.1} parent=35 // pred_check_branch
          %5626 = sbr.rel (%p5624) target = $region40
        $region39: #{tpu_custom_call.1} parent=35 // pred_region
          %s5627 = smul.u32 8, %s18
          %5629 = vsyncadd %s5620, 0
          %s5630 = smul.addr %s5627, 4
          %s5631 = smul.addr %s5630, 8
          %s5632 = scalar_lea.hbm %s4, %s5631
          %s5633 = sshll.u32 %s5623, 4
          %s5634 = int_to_ptr.vmem [resolvable:$true] %s5633
          %s5635 = sshll.u32 %s5632, 4
          %s5636 = int_to_ptr.hbm [resolvable:$true] %s5635
          %5641 = dma.vmem_to_hbm [thread:$0]  %s5634, 4096, %s5636, %s5620, 512, 512, 32
        $region40: #{tpu_custom_call.1} parent=35 // pred_fallthru
          _
      $region36: #{tpu_custom_call.1} parent=5 // pred_fallthru
        _
      %p5642 = scmp.le.s32.totalorder 2, %s13
      // Predicated region
      $region41: #{tpu_custom_call.1} parent=5 // pred_check
        %p5643 = pneg %p5642
      $region42: #{tpu_custom_call.1} parent=5 // pred_check_branch
        %5645 = sbr.rel (%p5643) target = $region44
      $region43: #{tpu_custom_call.1} parent=5 // pred_region
        %s5646 = ssub.s32 %s13, 2
        // Predicated region
        $region45: #{tpu_custom_call.1} parent=43 // pred_check
          %p5647 = pneg %p131
        $region46: #{tpu_custom_call.1} parent=43 // pred_check_branch
          %5649 = sbr.rel (%p5647) target = $region48
        $region47: #{tpu_custom_call.1} parent=43 // pred_region
          %s5650 = sand.u32 %s116, 1
          %s5651 = scalar_lea.sflag [#allocation3], %s5650
          %s5652 = sand.u32 %s116, 1
          %s5653 = smul.addr %s5652, 256
          %s5654 = scalar_lea.vmem [#allocation2], %s5653
          %5656 = dma.done %s5651, 4096
        $region48: #{tpu_custom_call.1} parent=43 // pred_fallthru
          _
      $region44: #{tpu_custom_call.1} parent=5 // pred_fallthru
        _
    $region6: #{tpu_custom_call.1} parent=1 // loop_footer
      %s17 = sadd.s32 1, %s13
    $region7: #{tpu_custom_call.1} parent=1 // loop_footer_branch
      %12 = sbr.rel target = $region3
    $region8: #{tpu_custom_call.1} parent=1 // loop_exit
      _
    %5657 = vsyncpa [#allocation3], 1
    %s5658 = scalar_lea.sflag [#allocation3], 1
    %5659 = vsyncpa %s5658, 1

</llo_original>
